<compile_context>
chip_gen: v7x
topology: tpu7x:2x2x1
jax: 0.10.0
libtpu: 0.0.40
codegen_flags: <defaults>
</compile_context>

<pallas_src>
import functools

import numpy as np
import jax
import jax.numpy as jnp
from jax import lax
from jax.experimental import pallas as pl
from jax.experimental.pallas import tpu as pltpu


_VMEM_LIMIT = 32 * 1024 * 1024   # safe on v5e/v6e/v7x; blocks here are far smaller


# ----------------------------------------------------------------------------
# Pallas kernels (channels-first: channels on sublanes, spatial on lanes)
# ----------------------------------------------------------------------------
def _cf_matmul_kernel(w_ref, b_ref, x_ref, o_ref, *, act):
    y = jnp.dot(w_ref[...], x_ref[0], preferred_element_type=jnp.float32)
    y = y + b_ref[...]
    if act == "relu":
        y = jnp.maximum(y, 0.0)
    o_ref[0] = y.astype(o_ref.dtype)


def conv1x1_cf(x, w, b, act="none", ts=2048):
    """x: (N, Ci, S), w: (Co, Ci), b: (Co,) -> (N, Co, S).  Lane-dense output."""
    N, Ci, S = x.shape
    Co = w.shape[0]
    ts = min(ts, S)                       # ts is either a multiple of 128 or == S
    grid = (N, pl.cdiv(S, ts))
    return pl.pallas_call(
        functools.partial(_cf_matmul_kernel, act=act),
        out_shape=jax.ShapeDtypeStruct((N, Co, S), x.dtype),
        grid=grid,
        in_specs=[
            pl.BlockSpec((Co, Ci), lambda n, s: (0, 0)),
            pl.BlockSpec((Co, 1), lambda n, s: (0, 0)),
            pl.BlockSpec((1, Ci, ts), lambda n, s: (n, 0, s)),
        ],
        out_specs=pl.BlockSpec((1, Co, ts), lambda n, s: (n, 0, s)),
        compiler_params=pltpu.CompilerParams(
            dimension_semantics=("parallel", "parallel"),
            vmem_limit_bytes=_VMEM_LIMIT),
    )(w, b.reshape(Co, 1), x)


def _final_gate_kernel(wf_ref, bf_ref, w4_ref, b4_ref,
                       c3u_ref, c1_ref, x_ref, o_ref):
    # cf = conv_f(c1_);  c4 = conv4(c3u + cf);  out = x * sigmoid(c4)
    cf = jnp.dot(wf_ref[...], c1_ref[0],
                 preferred_element_type=jnp.float32) + bf_ref[...]
    s = c3u_ref[0] + cf
    c4 = jnp.dot(w4_ref[...], s,
                 preferred_element_type=jnp.float32) + b4_ref[...]
    m = 1.0 / (1.0 + jnp.exp(-c4))
    o_ref[0] = (x_ref[0] * m).astype(o_ref.dtype)


def final_gate_cf(c3u, c1_, x, wf, bf, w4, b4, ts=2048):
    """Fused conv_f + conv4 + sigmoid + gate on (N, channels, S) tensors."""
    N, C, S = x.shape
    f = c1_.shape[1]
    ts = min(ts, S)
    grid = (N, pl.cdiv(S, ts))
    return pl.pallas_call(
        _final_gate_kernel,
        out_shape=jax.ShapeDtypeStruct((N, C, S), x.dtype),
        grid=grid,
        in_specs=[
            pl.BlockSpec((f, f), lambda n, s: (0, 0)),
            pl.BlockSpec((f, 1), lambda n, s: (0, 0)),
            pl.BlockSpec((C, f), lambda n, s: (0, 0)),
            pl.BlockSpec((C, 1), lambda n, s: (0, 0)),
            pl.BlockSpec((1, f, ts), lambda n, s: (n, 0, s)),
            pl.BlockSpec((1, f, ts), lambda n, s: (n, 0, s)),
            pl.BlockSpec((1, C, ts), lambda n, s: (n, 0, s)),
        ],
        out_specs=pl.BlockSpec((1, C, ts), lambda n, s: (n, 0, s)),
        compiler_params=pltpu.CompilerParams(
            dimension_semantics=("parallel", "parallel"),
            vmem_limit_bytes=_VMEM_LIMIT),
    )(wf, bf.reshape(f, 1), w4, b4.reshape(C, 1), c3u, c1_, x)


def _maxpool_kernel(x_ref, o_ref, *, f, Hm, Wm):
    v = x_ref[0]                                    # (9f, Hm+2, Wm+2)
    acc = None
    for ky in range(7):
        for kx in range(7):
            p = (ky % 3) * 3 + (kx % 3)
            dy, dx = ky // 3, kx // 3
            tap = v[p * f:(p + 1) * f, dy:dy + Hm, dx:dx + Wm]
            acc = tap if acc is None else jnp.maximum(acc, tap)
    o_ref[0] = acc.astype(o_ref.dtype)


def maxpool_7_3_cf(c1):
    """max_pool2d(kernel=7, stride=3) on (N, f, Ho, Wo), channels-first."""
    N, f, Ho, Wo = c1.shape
    Hm = (Ho - 7) // 3 + 1
    Wm = (Wo - 7) // 3 + 1
    Hq, Wq = Hm + 2, Wm + 2
    # mod-3 space-to-depth: row r -> (q=r//3, p=r%3); padded tail is never read.
    xp = jnp.pad(c1, ((0, 0), (0, 0), (0, 3 * Hq - Ho), (0, 3 * Wq - Wo)))
    xs = xp.reshape(N, f, Hq, 3, Wq, 3)
    xs = xs.transpose(0, 3, 5, 1, 2, 4).reshape(N, 9 * f, Hq, Wq)
    # TODO(synk): tile over output rows (with halo) instead of one block per batch
    # item so that very large feature maps do not exceed VMEM on v7x.
    return pl.pallas_call(
        functools.partial(_maxpool_kernel, f=f, Hm=Hm, Wm=Wm),
        out_shape=jax.ShapeDtypeStruct((N, f, Hm, Wm), c1.dtype),
        grid=(N,),
        in_specs=[pl.BlockSpec((1, 9 * f, Hq, Wq), lambda n: (n, 0, 0, 0))],
        out_specs=pl.BlockSpec((1, f, Hm, Wm), lambda n: (n, 0, 0, 0)),
        compiler_params=pltpu.CompilerParams(dimension_semantics=("parallel",)),
    )(xs)


def _upsample_kernel(ah_ref, awt_ref, c3_ref, o_ref):
    t = jnp.dot(ah_ref[...], c3_ref[0], preferred_element_type=jnp.float32)   # (H, Wm)
    o_ref[0] = jnp.dot(t, awt_ref[...],
                       preferred_element_type=jnp.float32).astype(o_ref.dtype)


def bilinear_matrix(out_size, in_size):
    """PyTorch F.interpolate(mode='bilinear', align_corners=False) weights."""
    A = np.zeros((out_size, in_size), dtype=np.float32)
    scale = in_size / out_size
    for i in range(out_size):
        src = (i + 0.5) * scale - 0.5
        src = max(src, 0.0)
        i0 = min(int(np.floor(src)), in_size - 1)
        i1 = min(i0 + 1, in_size - 1)
        l1 = src - i0
        A[i, i0] += 1.0 - l1
        A[i, i1] += l1
    return jnp.asarray(A)


def bilinear_upsample_cf(c3, H, W):
    """Separable bilinear upsample: per (n, channel) compute Ah @ c3 @ Aw^T."""
    N, f, Hm, Wm = c3.shape
    Ah = bilinear_matrix(H, Hm)            # (H, Hm)
    AwT = bilinear_matrix(W, Wm).T         # (Wm, W)
    c3b = c3.reshape(N * f, Hm, Wm)
    out = pl.pallas_call(
        _upsample_kernel,
        out_shape=jax.ShapeDtypeStruct((N * f, H, W), c3.dtype),
        grid=(N * f,),
        in_specs=[
            pl.BlockSpec((H, Hm), lambda i: (0, 0)),
            pl.BlockSpec((Wm, W), lambda i: (0, 0)),
            pl.BlockSpec((1, Hm, Wm), lambda i: (i, 0, 0)),
        ],
        out_specs=pl.BlockSpec((1, H, W), lambda i: (i, 0, 0)),
        compiler_params=pltpu.CompilerParams(
            dimension_semantics=("parallel",),
            vmem_limit_bytes=_VMEM_LIMIT),
    )(Ah, AwT, c3b)
    return out.reshape(N, f, H, W)


# ----------------------------------------------------------------------------
# 3x3 convs (channels-first im2col -> the lane-dense matmul kernel)
# ----------------------------------------------------------------------------
def _im2col_3x3(x, stride, pad):
    N, Ci, H, W = x.shape
    if pad:
        x = jnp.pad(x, ((0, 0), (0, 0), (pad, pad), (pad, pad)))
    Hp, Wp = H + 2 * pad, W + 2 * pad
    Ho = (Hp - 3) // stride + 1
    Wo = (Wp - 3) // stride + 1
    # TODO(synk): the stride-2 conv still materializes a 9x-wide patch tensor in
    # HBM; an in-kernel halo / strided-window variant would remove that pass.
    taps = [x[:, :, ky:ky + stride * (Ho - 1) + 1:stride,
                    kx:kx + stride * (Wo - 1) + 1:stride]
            for ky in range(3) for kx in range(3)]
    return jnp.concatenate(taps, axis=1), Ho, Wo


def conv3x3_cf(x, w, b, stride, pad, act="none"):
    """x: (N, Ci, H, W); w: (Co, Ci, 3, 3) torch layout."""
    N, Ci, H, W = x.shape
    Co = w.shape[0]
    patches, Ho, Wo = _im2col_3x3(x, stride, pad)
    w2 = jnp.transpose(w, (0, 2, 3, 1)).reshape(Co, 9 * Ci)  # cols = (ky,kx,ci)
    y = conv1x1_cf(patches.reshape(N, 9 * Ci, Ho * Wo), w2, b, act=act)
    return y.reshape(N, Co, Ho, Wo)


# ----------------------------------------------------------------------------
# Parameters & ESA forward
# ----------------------------------------------------------------------------
def init_params(key, n_feats):
    f = n_feats // 4
    shapes = {
        "w1": (f, n_feats, 1, 1), "b1": (f,),
        "w_f": (f, f, 1, 1),      "b_f": (f,),
        "w_max": (f, f, 3, 3),    "b_max": (f,),
        "w2": (f, f, 3, 3),       "b2": (f,),
        "w3": (f, f, 3, 3),       "b3": (f,),
        "w3_": (f, f, 3, 3),      "b3_": (f,),
        "w4": (n_feats, f, 1, 1), "b4": (n_feats,),
    }
    params = {}
    keys = jax.random.split(key, len(shapes))
    for k, (name, shp) in zip(keys, sorted(shapes.items())):
        params[name] = 0.1 * jax.random.normal(k, shp, dtype=jnp.float32)
    return params


def esa_forward(x_nchw, params):
    N, C, H, W = x_nchw.shape
    f = C // 4
    xs = x_nchw.reshape(N, C, H * W)                                   # NCHW, spatial in lanes

    c1_ = conv1x1_cf(xs, params["w1"].reshape(f, C), params["b1"])     # conv1 (1x1)
    c1 = conv3x3_cf(c1_.reshape(N, f, H, W),
                    params["w2"], params["b2"], stride=2, pad=0)       # conv2 (3x3, s2)
    v_max = maxpool_7_3_cf(c1)                                         # max_pool2d(7,3)
    v_range = conv3x3_cf(v_max, params["w_max"], params["b_max"], 1, 1, act="relu")
    c3 = conv3x3_cf(v_range, params["w3"], params["b3"], 1, 1, act="relu")
    c3 = conv3x3_cf(c3, params["w3_"], params["b3_"], 1, 1)
    c3u = bilinear_upsample_cf(c3, H, W)                               # separable bilinear

    out = final_gate_cf(c3u.reshape(N, f, H * W), c1_, xs,             # conv_f + conv4 +
                        params["w_f"].reshape(f, f), params["b_f"],    # sigmoid + gate (fused)
                        params["w4"].reshape(C, f), params["b4"])
    return out.reshape(N, C, H, W)


# ----------------------------------------------------------------------------
# Pure-JAX reference (numerical sanity check)
# ----------------------------------------------------------------------------
def _conv_ref(x, w, b, stride, padding):
    y = lax.conv_general_dilated(
        x, w, window_strides=(stride, stride),
        padding=[(padding, padding), (padding, padding)],
        dimension_numbers=("NCHW", "OIHW", "NCHW"))
    return y + b.reshape(1, -1, 1, 1)


def esa_reference(x, params):
    N, C, H, W = x.shape
    c1_ = _conv_ref(x, params["w1"], params["b1"], 1, 0)
    c1 = _conv_ref(c1_, params["w2"], params["b2"], 2, 0)
    v_max = lax.reduce_window(c1, -jnp.inf, lax.max,
                              (1, 1, 7, 7), (1, 1, 3, 3), "VALID")
    v_range = jax.nn.relu(_conv_ref(v_max, params["w_max"], params["b_max"], 1, 1))
    c3 = jax.nn.relu(_conv_ref(v_range, params["w3"], params["b3"], 1, 1))
    c3 = _conv_ref(c3, params["w3_"], params["b3_"], 1, 1)
    Ah = bilinear_matrix(H, c3.shape[2])
    Aw = bilinear_matrix(W, c3.shape[3])
    c3u = jnp.einsum("hp,wq,ncpq->nchw", Ah, Aw, c3)
    cf = _conv_ref(c1_, params["w_f"], params["b_f"], 1, 0)
    c4 = _conv_ref(c3u + cf, params["w4"], params["b4"], 1, 0)
    return x * jax.nn.sigmoid(c4)


# ----------------------------------------------------------------------------
if __name__ == "__main__":
    key = jax.random.PRNGKey(0)
    k_x, k_p = jax.random.split(key)

    N, C, H, W = 2, 16, 32, 32        # n_feats = 16 -> f = 4
    x = jax.random.normal(k_x, (N, C, H, W), dtype=jnp.float32)
    params = init_params(k_p, C)

    out = jax.block_until_ready(jax.jit(esa_forward)(x, params))
    assert out.shape == (N, C, H, W)
    assert bool(jnp.all(jnp.isfinite(out)))

    ref = jax.block_until_ready(esa_reference(x, params))
    np.testing.assert_allclose(np.asarray(out), np.asarray(ref),
                               rtol=1e-4, atol=1e-4)

    print("KERNEL_OK")
</pallas_src>

<mosaic_0001>
module attributes {stable_mosaic.version = 11 : i64} {
  func.func @_cf_matmul_kernel(%arg0: i32, %arg1: i32, %arg2: memref<4x16xf32, #tpu.memory_space<vmem>>, %arg3: memref<4x1xf32, #tpu.memory_space<vmem>>, %arg4: memref<1x16x1024xf32, #tpu.memory_space<vmem>>, %arg5: memref<1x4x1024xf32, #tpu.memory_space<vmem>>) attributes {dimension_semantics = [#tpu.dimension_semantics<parallel>, #tpu.dimension_semantics<parallel>], iteration_bounds = array<i64: 2, 1>, scalar_prefetch = 0 : i64, scratch_operands = 0 : i64, tpu.core_type = #tpu.core_type<tc>, window_params = [{pipeline_mode = #tpu.pipeline_mode<synchronous>, transform_indices = @transform_0, window_bounds = array<i64: 4, 16>}, {pipeline_mode = #tpu.pipeline_mode<synchronous>, transform_indices = @transform_1, window_bounds = array<i64: 4, 1>}, {transform_indices = @transform_2, window_bounds = array<i64: 1, 16, 1024>}, {transform_indices = @transform_3, window_bounds = array<i64: 1, 4, 1024>}]} {
    %c0 = arith.constant 0 : index
    %c0_0 = arith.constant 0 : index
    %0 = vector.load %arg2[%c0, %c0_0] : memref<4x16xf32, #tpu.memory_space<vmem>>, vector<4x16xf32>
    %c0_1 = arith.constant 0 : index
    %c0_2 = arith.constant 0 : index
    %c0_3 = arith.constant 0 : index
    %1 = vector.load %arg4[%c0_1, %c0_2, %c0_3] : memref<1x16x1024xf32, #tpu.memory_space<vmem>>, vector<1x16x1024xf32>
    %2 = vector.shape_cast %1 : vector<1x16x1024xf32> to vector<16x1024xf32>
    %cst = arith.constant dense<0.000000e+00> : vector<4x1024xf32>
    %3 = tpu.matmul %0, %2, %cst {dimension_numbers = #tpu.dot_dimension_numbers<[1], [0], [0], [1], [0, 0, 1, 1], [], []>} : vector<4x16xf32>, vector<16x1024xf32>, vector<4x1024xf32> -> vector<4x1024xf32>
    %c0_4 = arith.constant 0 : index
    %c0_5 = arith.constant 0 : index
    %4 = vector.load %arg3[%c0_4, %c0_5] : memref<4x1xf32, #tpu.memory_space<vmem>>, vector<4x1xf32>
    %5 = vector.broadcast %4 : vector<4x1xf32> to vector<4x1024xf32>
    %6 = arith.addf %3, %5 : vector<4x1024xf32>
    %c0_6 = arith.constant 0 : index
    %c0_7 = arith.constant 0 : index
    %c0_8 = arith.constant 0 : index
    %7 = vector.load %arg5[%c0_6, %c0_7, %c0_8] : memref<1x4x1024xf32, #tpu.memory_space<vmem>>, vector<1x4x1024xf32>
    %8 = vector.shape_cast %7 : vector<1x4x1024xf32> to vector<4x1024xf32>
    %9 = vector.shape_cast %6 : vector<4x1024xf32> to vector<1x4x1024xf32>
    tpu.vector_store %arg5[%c0_6, %c0_7, %c0_8], %9 {strides = array<i32>} : memref<1x4x1024xf32, #tpu.memory_space<vmem>>, vector<1x4x1024xf32>,
    return
  }
  func.func @transform_0(%arg0: i32, %arg1: i32) -> (i32, i32) {
    %c0_i32 = arith.constant 0 : i32
    %c0_i32_0 = arith.constant 0 : i32
    %c0_i32_1 = arith.constant 0 : i32
    return %c0_i32, %c0_i32_0 : i32, i32
  }
  func.func @transform_1(%arg0: i32, %arg1: i32) -> (i32, i32) {
    %c0_i32 = arith.constant 0 : i32
    %c0_i32_0 = arith.constant 0 : i32
    %c0_i32_1 = arith.constant 0 : i32
    return %c0_i32, %c0_i32_0 : i32, i32
  }
  func.func @transform_2(%arg0: i32, %arg1: i32) -> (i32, i32, i32) {
    %c0_i32 = arith.constant 0 : i32
    %c0_i32_0 = arith.constant 0 : i32
    return %arg0, %c0_i32, %arg1 : i32, i32, i32
  }
  func.func @transform_3(%arg0: i32, %arg1: i32) -> (i32, i32, i32) {
    %c0_i32 = arith.constant 0 : i32
    %c0_i32_0 = arith.constant 0 : i32
    return %arg0, %c0_i32, %arg1 : i32, i32, i32
  }
}

module attributes {stable_mosaic.version = 11 : i64} {
  func.func @_cf_matmul_kernel(%arg0: i32, %arg1: i32, %arg2: memref<4x36xf32, #tpu.memory_space<vmem>>, %arg3: memref<4x1xf32, #tpu.memory_space<vmem>>, %arg4: memref<1x36x225xf32, #tpu.memory_space<vmem>>, %arg5: memref<1x4x225xf32, #tpu.memory_space<vmem>>) attributes {dimension_semantics = [#tpu.dimension_semantics<parallel>, #tpu.dimension_semantics<parallel>], iteration_bounds = array<i64: 2, 1>, scalar_prefetch = 0 : i64, scratch_operands = 0 : i64, tpu.core_type = #tpu.core_type<tc>, window_params = [{pipeline_mode = #tpu.pipeline_mode<synchronous>, transform_indices = @transform_0, window_bounds = array<i64: 4, 36>}, {pipeline_mode = #tpu.pipeline_mode<synchronous>, transform_indices = @transform_1, window_bounds = array<i64: 4, 1>}, {transform_indices = @transform_2, window_bounds = array<i64: 1, 36, 225>}, {transform_indices = @transform_3, window_bounds = array<i64: 1, 4, 225>}]} {
    %c0 = arith.constant 0 : index
    %c0_0 = arith.constant 0 : index
    %0 = vector.load %arg2[%c0, %c0_0] : memref<4x36xf32, #tpu.memory_space<vmem>>, vector<4x36xf32>
    %c0_1 = arith.constant 0 : index
    %c0_2 = arith.constant 0 : index
    %c0_3 = arith.constant 0 : index
    %1 = vector.load %arg4[%c0_1, %c0_2, %c0_3] : memref<1x36x225xf32, #tpu.memory_space<vmem>>, vector<1x36x225xf32>
    %2 = vector.shape_cast %1 : vector<1x36x225xf32> to vector<36x225xf32>
    %cst = arith.constant dense<0.000000e+00> : vector<4x225xf32>
    %3 = tpu.matmul %0, %2, %cst {dimension_numbers = #tpu.dot_dimension_numbers<[1], [0], [0], [1], [0, 0, 1, 1], [], []>} : vector<4x36xf32>, vector<36x225xf32>, vector<4x225xf32> -> vector<4x225xf32>
    %c0_4 = arith.constant 0 : index
    %c0_5 = arith.constant 0 : index
    %4 = vector.load %arg3[%c0_4, %c0_5] : memref<4x1xf32, #tpu.memory_space<vmem>>, vector<4x1xf32>
    %5 = vector.broadcast %4 : vector<4x1xf32> to vector<4x225xf32>
    %6 = arith.addf %3, %5 : vector<4x225xf32>
    %c0_6 = arith.constant 0 : index
    %c0_7 = arith.constant 0 : index
    %c0_8 = arith.constant 0 : index
    %7 = vector.load %arg5[%c0_6, %c0_7, %c0_8] : memref<1x4x225xf32, #tpu.memory_space<vmem>>, vector<1x4x225xf32>
    %8 = vector.shape_cast %7 : vector<1x4x225xf32> to vector<4x225xf32>
    %9 = vector.shape_cast %6 : vector<4x225xf32> to vector<1x4x225xf32>
    tpu.vector_store %arg5[%c0_6, %c0_7, %c0_8], %9 {strides = array<i32>} : memref<1x4x225xf32, #tpu.memory_space<vmem>>, vector<1x4x225xf32>,
    return
  }
  func.func @transform_0(%arg0: i32, %arg1: i32) -> (i32, i32) {
    %c0_i32 = arith.constant 0 : i32
    %c0_i32_0 = arith.constant 0 : i32
    %c0_i32_1 = arith.constant 0 : i32
    return %c0_i32, %c0_i32_0 : i32, i32
  }
  func.func @transform_1(%arg0: i32, %arg1: i32) -> (i32, i32) {
    %c0_i32 = arith.constant 0 : i32
    %c0_i32_0 = arith.constant 0 : i32
    %c0_i32_1 = arith.constant 0 : i32
    return %c0_i32, %c0_i32_0 : i32, i32
  }
  func.func @transform_2(%arg0: i32, %arg1: i32) -> (i32, i32, i32) {
    %c0_i32 = arith.constant 0 : i32
    %c0_i32_0 = arith.constant 0 : i32
    return %arg0, %c0_i32, %arg1 : i32, i32, i32
  }
  func.func @transform_3(%arg0: i32, %arg1: i32) -> (i32, i32, i32) {
    %c0_i32 = arith.constant 0 : i32
    %c0_i32_0 = arith.constant 0 : i32
    return %arg0, %c0_i32, %arg1 : i32, i32, i32
  }
}

module attributes {stable_mosaic.version = 11 : i64} {
  func.func @_maxpool_kernel(%arg0: i32, %arg1: memref<1x36x5x5xf32, #tpu.memory_space<vmem>>, %arg2: memref<1x4x3x3xf32, #tpu.memory_space<vmem>>) attributes {dimension_semantics = [#tpu.dimension_semantics<parallel>], iteration_bounds = array<i64: 2>, scalar_prefetch = 0 : i64, scratch_operands = 0 : i64, tpu.core_type = #tpu.core_type<tc>, window_params = [{transform_indices = @transform_0, window_bounds = array<i64: 1, 36, 5, 5>}, {transform_indices = @transform_1, window_bounds = array<i64: 1, 4, 3, 3>}]} {
    %c0 = arith.constant 0 : index
    %c0_0 = arith.constant 0 : index
    %c0_1 = arith.constant 0 : index
    %c0_2 = arith.constant 0 : index
    %0 = vector.load %arg1[%c0, %c0_0, %c0_1, %c0_2] : memref<1x36x5x5xf32, #tpu.memory_space<vmem>>, vector<1x36x5x5xf32>
    %1 = vector.shape_cast %0 : vector<1x36x5x5xf32> to vector<36x5x5xf32>
    %2 = vector.extract_strided_slice %1 {offsets = [0, 0, 0], sizes = [4, 3, 3], strides = [1, 1, 1]} : vector<36x5x5xf32> to vector<4x3x3xf32>
    %3 = vector.extract_strided_slice %1 {offsets = [4, 0, 0], sizes = [4, 3, 3], strides = [1, 1, 1]} : vector<36x5x5xf32> to vector<4x3x3xf32>
    %4 = arith.maximumf %2, %3 : vector<4x3x3xf32>
    %5 = vector.extract_strided_slice %1 {offsets = [8, 0, 0], sizes = [4, 3, 3], strides = [1, 1, 1]} : vector<36x5x5xf32> to vector<4x3x3xf32>
    %6 = arith.maximumf %4, %5 : vector<4x3x3xf32>
    %7 = vector.extract_strided_slice %1 {offsets = [0, 0, 1], sizes = [4, 3, 3], strides = [1, 1, 1]} : vector<36x5x5xf32> to vector<4x3x3xf32>
    %8 = arith.maximumf %6, %7 : vector<4x3x3xf32>
    %9 = vector.extract_strided_slice %1 {offsets = [4, 0, 1], sizes = [4, 3, 3], strides = [1, 1, 1]} : vector<36x5x5xf32> to vector<4x3x3xf32>
    %10 = arith.maximumf %8, %9 : vector<4x3x3xf32>
    %11 = vector.extract_strided_slice %1 {offsets = [8, 0, 1], sizes = [4, 3, 3], strides = [1, 1, 1]} : vector<36x5x5xf32> to vector<4x3x3xf32>
    %12 = arith.maximumf %10, %11 : vector<4x3x3xf32>
    %13 = vector.extract_strided_slice %1 {offsets = [0, 0, 2], sizes = [4, 3, 3], strides = [1, 1, 1]} : vector<36x5x5xf32> to vector<4x3x3xf32>
    %14 = arith.maximumf %12, %13 : vector<4x3x3xf32>
    %15 = vector.extract_strided_slice %1 {offsets = [12, 0, 0], sizes = [4, 3, 3], strides = [1, 1, 1]} : vector<36x5x5xf32> to vector<4x3x3xf32>
    %16 = arith.maximumf %14, %15 : vector<4x3x3xf32>
    %17 = vector.extract_strided_slice %1 {offsets = [16, 0, 0], sizes = [4, 3, 3], strides = [1, 1, 1]} : vector<36x5x5xf32> to vector<4x3x3xf32>
    %18 = arith.maximumf %16, %17 : vector<4x3x3xf32>
    %19 = vector.extract_strided_slice %1 {offsets = [20, 0, 0], sizes = [4, 3, 3], strides = [1, 1, 1]} : vector<36x5x5xf32> to vector<4x3x3xf32>
    %20 = arith.maximumf %18, %19 : vector<4x3x3xf32>
    %21 = vector.extract_strided_slice %1 {offsets = [12, 0, 1], sizes = [4, 3, 3], strides = [1, 1, 1]} : vector<36x5x5xf32> to vector<4x3x3xf32>
    %22 = arith.maximumf %20, %21 : vector<4x3x3xf32>
    %23 = vector.extract_strided_slice %1 {offsets = [16, 0, 1], sizes = [4, 3, 3], strides = [1, 1, 1]} : vector<36x5x5xf32> to vector<4x3x3xf32>
    %24 = arith.maximumf %22, %23 : vector<4x3x3xf32>
    %25 = vector.extract_strided_slice %1 {offsets = [20, 0, 1], sizes = [4, 3, 3], strides = [1, 1, 1]} : vector<36x5x5xf32> to vector<4x3x3xf32>
    %26 = arith.maximumf %24, %25 : vector<4x3x3xf32>
    %27 = vector.extract_strided_slice %1 {offsets = [12, 0, 2], sizes = [4, 3, 3], strides = [1, 1, 1]} : vector<36x5x5xf32> to vector<4x3x3xf32>
    %28 = arith.maximumf %26, %27 : vector<4x3x3xf32>
    %29 = vector.extract_strided_slice %1 {offsets = [24, 0, 0], sizes = [4, 3, 3], strides = [1, 1, 1]} : vector<36x5x5xf32> to vector<4x3x3xf32>
    %30 = arith.maximumf %28, %29 : vector<4x3x3xf32>
    %31 = vector.extract_strided_slice %1 {offsets = [28, 0, 0], sizes = [4, 3, 3], strides = [1, 1, 1]} : vector<36x5x5xf32> to vector<4x3x3xf32>
    %32 = arith.maximumf %30, %31 : vector<4x3x3xf32>
    %33 = vector.extract_strided_slice %1 {offsets = [32, 0, 0], sizes = [4, 3, 3], strides = [1, 1, 1]} : vector<36x5x5xf32> to vector<4x3x3xf32>
    %34 = arith.maximumf %32, %33 : vector<4x3x3xf32>
    %35 = vector.extract_strided_slice %1 {offsets = [24, 0, 1], sizes = [4, 3, 3], strides = [1, 1, 1]} : vector<36x5x5xf32> to vector<4x3x3xf32>
    %36 = arith.maximumf %34, %35 : vector<4x3x3xf32>
    %37 = vector.extract_strided_slice %1 {offsets = [28, 0, 1], sizes = [4, 3, 3], strides = [1, 1, 1]} : vector<36x5x5xf32> to vector<4x3x3xf32>
    %38 = arith.maximumf %36, %37 : vector<4x3x3xf32>
    %39 = vector.extract_strided_slice %1 {offsets = [32, 0, 1], sizes = [4, 3, 3], strides = [1, 1, 1]} : vector<36x5x5xf32> to vector<4x3x3xf32>
    %40 = arith.maximumf %38, %39 : vector<4x3x3xf32>
    %41 = vector.extract_strided_slice %1 {offsets = [24, 0, 2], sizes = [4, 3, 3], strides = [1, 1, 1]} : vector<36x5x5xf32> to vector<4x3x3xf32>
    %42 = arith.maximumf %40, %41 : vector<4x3x3xf32>
    %43 = vector.extract_strided_slice %1 {offsets = [0, 1, 0], sizes = [4, 3, 3], strides = [1, 1, 1]} : vector<36x5x5xf32> to vector<4x3x3xf32>
    %44 = arith.maximumf %42, %43 : vector<4x3x3xf32>
    %45 = vector.extract_strided_slice %1 {offsets = [4, 1, 0], sizes = [4, 3, 3], strides = [1, 1, 1]} : vector<36x5x5xf32> to vector<4x3x3xf32>
    %46 = arith.maximumf %44, %45 : vector<4x3x3xf32>
    %47 = vector.extract_strided_slice %1 {offsets = [8, 1, 0], sizes = [4, 3, 3], strides = [1, 1, 1]} : vector<36x5x5xf32> to vector<4x3x3xf32>
    %48 = arith.maximumf %46, %47 : vector<4x3x3xf32>
    %49 = vector.extract_strided_slice %1 {offsets = [0, 1, 1], sizes = [4, 3, 3], strides = [1, 1, 1]} : vector<36x5x5xf32> to vector<4x3x3xf32>
    %50 = arith.maximumf %48, %49 : vector<4x3x3xf32>
    %51 = vector.extract_strided_slice %1 {offsets = [4, 1, 1], sizes = [4, 3, 3], strides = [1, 1, 1]} : vector<36x5x5xf32> to vector<4x3x3xf32>
    %52 = arith.maximumf %50, %51 : vector<4x3x3xf32>
    %53 = vector.extract_strided_slice %1 {offsets = [8, 1, 1], sizes = [4, 3, 3], strides = [1, 1, 1]} : vector<36x5x5xf32> to vector<4x3x3xf32>
    %54 = arith.maximumf %52, %53 : vector<4x3x3xf32>
    %55 = vector.extract_strided_slice %1 {offsets = [0, 1, 2], sizes = [4, 3, 3], strides = [1, 1, 1]} : vector<36x5x5xf32> to vector<4x3x3xf32>
    %56 = arith.maximumf %54, %55 : vector<4x3x3xf32>
    %57 = vector.extract_strided_slice %1 {offsets = [12, 1, 0], sizes = [4, 3, 3], strides = [1, 1, 1]} : vector<36x5x5xf32> to vector<4x3x3xf32>
    %58 = arith.maximumf %56, %57 : vector<4x3x3xf32>
    %59 = vector.extract_strided_slice %1 {offsets = [16, 1, 0], sizes = [4, 3, 3], strides = [1, 1, 1]} : vector<36x5x5xf32> to vector<4x3x3xf32>
    %60 = arith.maximumf %58, %59 : vector<4x3x3xf32>
    %61 = vector.extract_strided_slice %1 {offsets = [20, 1, 0], sizes = [4, 3, 3], strides = [1, 1, 1]} : vector<36x5x5xf32> to vector<4x3x3xf32>
    %62 = arith.maximumf %60, %61 : vector<4x3x3xf32>
    %63 = vector.extract_strided_slice %1 {offsets = [12, 1, 1], sizes = [4, 3, 3], strides = [1, 1, 1]} : vector<36x5x5xf32> to vector<4x3x3xf32>
    %64 = arith.maximumf %62, %63 : vector<4x3x3xf32>
    %65 = vector.extract_strided_slice %1 {offsets = [16, 1, 1], sizes = [4, 3, 3], strides = [1, 1, 1]} : vector<36x5x5xf32> to vector<4x3x3xf32>
    %66 = arith.maximumf %64, %65 : vector<4x3x3xf32>
    %67 = vector.extract_strided_slice %1 {offsets = [20, 1, 1], sizes = [4, 3, 3], strides = [1, 1, 1]} : vector<36x5x5xf32> to vector<4x3x3xf32>
    %68 = arith.maximumf %66, %67 : vector<4x3x3xf32>
    %69 = vector.extract_strided_slice %1 {offsets = [12, 1, 2], sizes = [4, 3, 3], strides = [1, 1, 1]} : vector<36x5x5xf32> to vector<4x3x3xf32>
    %70 = arith.maximumf %68, %69 : vector<4x3x3xf32>
    %71 = vector.extract_strided_slice %1 {offsets = [24, 1, 0], sizes = [4, 3, 3], strides = [1, 1, 1]} : vector<36x5x5xf32> to vector<4x3x3xf32>
    %72 = arith.maximumf %70, %71 : vector<4x3x3xf32>
    %73 = vector.extract_strided_slice %1 {offsets = [28, 1, 0], sizes = [4, 3, 3], strides = [1, 1, 1]} : vector<36x5x5xf32> to vector<4x3x3xf32>
    %74 = arith.maximumf %72, %73 : vector<4x3x3xf32>
    %75 = vector.extract_strided_slice %1 {offsets = [32, 1, 0], sizes = [4, 3, 3], strides = [1, 1, 1]} : vector<36x5x5xf32> to vector<4x3x3xf32>
    %76 = arith.maximumf %74, %75 : vector<4x3x3xf32>
    %77 = vector.extract_strided_slice %1 {offsets = [24, 1, 1], sizes = [4, 3, 3], strides = [1, 1, 1]} : vector<36x5x5xf32> to vector<4x3x3xf32>
    %78 = arith.maximumf %76, %77 : vector<4x3x3xf32>
    %79 = vector.extract_strided_slice %1 {offsets = [28, 1, 1], sizes = [4, 3, 3], strides = [1, 1, 1]} : vector<36x5x5xf32> to vector<4x3x3xf32>
    %80 = arith.maximumf %78, %79 : vector<4x3x3xf32>
    %81 = vector.extract_strided_slice %1 {offsets = [32, 1, 1], sizes = [4, 3, 3], strides = [1, 1, 1]} : vector<36x5x5xf32> to vector<4x3x3xf32>
    %82 = arith.maximumf %80, %81 : vector<4x3x3xf32>
    %83 = vector.extract_strided_slice %1 {offsets = [24, 1, 2], sizes = [4, 3, 3], strides = [1, 1, 1]} : vector<36x5x5xf32> to vector<4x3x3xf32>
    %84 = arith.maximumf %82, %83 : vector<4x3x3xf32>
    %85 = vector.extract_strided_slice %1 {offsets = [0, 2, 0], sizes = [4, 3, 3], strides = [1, 1, 1]} : vector<36x5x5xf32> to vector<4x3x3xf32>
    %86 = arith.maximumf %84, %85 : vector<4x3x3xf32>
    %87 = vector.extract_strided_slice %1 {offsets = [4, 2, 0], sizes = [4, 3, 3], strides = [1, 1, 1]} : vector<36x5x5xf32> to vector<4x3x3xf32>
    %88 = arith.maximumf %86, %87 : vector<4x3x3xf32>
    %89 = vector.extract_strided_slice %1 {offsets = [8, 2, 0], sizes = [4, 3, 3], strides = [1, 1, 1]} : vector<36x5x5xf32> to vector<4x3x3xf32>
    %90 = arith.maximumf %88, %89 : vector<4x3x3xf32>
    %91 = vector.extract_strided_slice %1 {offsets = [0, 2, 1], sizes = [4, 3, 3], strides = [1, 1, 1]} : vector<36x5x5xf32> to vector<4x3x3xf32>
    %92 = arith.maximumf %90, %91 : vector<4x3x3xf32>
    %93 = vector.extract_strided_slice %1 {offsets = [4, 2, 1], sizes = [4, 3, 3], strides = [1, 1, 1]} : vector<36x5x5xf32> to vector<4x3x3xf32>
    %94 = arith.maximumf %92, %93 : vector<4x3x3xf32>
    %95 = vector.extract_strided_slice %1 {offsets = [8, 2, 1], sizes = [4, 3, 3], strides = [1, 1, 1]} : vector<36x5x5xf32> to vector<4x3x3xf32>
    %96 = arith.maximumf %94, %95 : vector<4x3x3xf32>
    %97 = vector.extract_strided_slice %1 {offsets = [0, 2, 2], sizes = [4, 3, 3], strides = [1, 1, 1]} : vector<36x5x5xf32> to vector<4x3x3xf32>
    %98 = arith.maximumf %96, %97 : vector<4x3x3xf32>
    %c0_3 = arith.constant 0 : index
    %c0_4 = arith.constant 0 : index
    %c0_5 = arith.constant 0 : index
    %c0_6 = arith.constant 0 : index
    %99 = vector.load %arg2[%c0_3, %c0_4, %c0_5, %c0_6] : memref<1x4x3x3xf32, #tpu.memory_space<vmem>>, vector<1x4x3x3xf32>
    %100 = vector.shape_cast %99 : vector<1x4x3x3xf32> to vector<4x3x3xf32>
    %101 = vector.shape_cast %98 : vector<4x3x3xf32> to vector<1x4x3x3xf32>
    tpu.vector_store %arg2[%c0_3, %c0_4, %c0_5, %c0_6], %101 {strides = array<i32>} : memref<1x4x3x3xf32, #tpu.memory_space<vmem>>, vector<1x4x3x3xf32>,
    return
  }
  func.func @transform_0(%arg0: i32) -> (i32, i32, i32, i32) {
    %c0_i32 = arith.constant 0 : i32
    %c0_i32_0 = arith.constant 0 : i32
    %c0_i32_1 = arith.constant 0 : i32
    %c0_i32_2 = arith.constant 0 : i32
    return %arg0, %c0_i32, %c0_i32_0, %c0_i32_1 : i32, i32, i32, i32
  }
  func.func @transform_1(%arg0: i32) -> (i32, i32, i32, i32) {
    %c0_i32 = arith.constant 0 : i32
    %c0_i32_0 = arith.constant 0 : i32
    %c0_i32_1 = arith.constant 0 : i32
    %c0_i32_2 = arith.constant 0 : i32
    return %arg0, %c0_i32, %c0_i32_0, %c0_i32_1 : i32, i32, i32, i32
  }
}

module attributes {stable_mosaic.version = 11 : i64} {
  func.func @_cf_matmul_kernel(%arg0: i32, %arg1: i32, %arg2: memref<4x36xf32, #tpu.memory_space<vmem>>, %arg3: memref<4x1xf32, #tpu.memory_space<vmem>>, %arg4: memref<1x36x9xf32, #tpu.memory_space<vmem>>, %arg5: memref<1x4x9xf32, #tpu.memory_space<vmem>>) attributes {dimension_semantics = [#tpu.dimension_semantics<parallel>, #tpu.dimension_semantics<parallel>], iteration_bounds = array<i64: 2, 1>, scalar_prefetch = 0 : i64, scratch_operands = 0 : i64, tpu.core_type = #tpu.core_type<tc>, window_params = [{pipeline_mode = #tpu.pipeline_mode<synchronous>, transform_indices = @transform_0, window_bounds = array<i64: 4, 36>}, {pipeline_mode = #tpu.pipeline_mode<synchronous>, transform_indices = @transform_1, window_bounds = array<i64: 4, 1>}, {transform_indices = @transform_2, window_bounds = array<i64: 1, 36, 9>}, {transform_indices = @transform_3, window_bounds = array<i64: 1, 4, 9>}]} {
    %c0 = arith.constant 0 : index
    %c0_0 = arith.constant 0 : index
    %0 = vector.load %arg2[%c0, %c0_0] : memref<4x36xf32, #tpu.memory_space<vmem>>, vector<4x36xf32>
    %c0_1 = arith.constant 0 : index
    %c0_2 = arith.constant 0 : index
    %c0_3 = arith.constant 0 : index
    %1 = vector.load %arg4[%c0_1, %c0_2, %c0_3] : memref<1x36x9xf32, #tpu.memory_space<vmem>>, vector<1x36x9xf32>
    %2 = vector.shape_cast %1 : vector<1x36x9xf32> to vector<36x9xf32>
    %cst = arith.constant dense<0.000000e+00> : vector<4x9xf32>
    %3 = tpu.matmul %0, %2, %cst {dimension_numbers = #tpu.dot_dimension_numbers<[1], [0], [0], [1], [0, 0, 1, 1], [], []>} : vector<4x36xf32>, vector<36x9xf32>, vector<4x9xf32> -> vector<4x9xf32>
    %c0_4 = arith.constant 0 : index
    %c0_5 = arith.constant 0 : index
    %4 = vector.load %arg3[%c0_4, %c0_5] : memref<4x1xf32, #tpu.memory_space<vmem>>, vector<4x1xf32>
    %5 = vector.broadcast %4 : vector<4x1xf32> to vector<4x9xf32>
    %6 = arith.addf %3, %5 : vector<4x9xf32>
    %cst_6 = arith.constant 0.000000e+00 : f32
    %7 = vector.broadcast %cst_6 : f32 to vector<4x9xf32>
    %8 = arith.maximumf %6, %7 : vector<4x9xf32>
    %c0_7 = arith.constant 0 : index
    %c0_8 = arith.constant 0 : index
    %c0_9 = arith.constant 0 : index
    %9 = vector.load %arg5[%c0_7, %c0_8, %c0_9] : memref<1x4x9xf32, #tpu.memory_space<vmem>>, vector<1x4x9xf32>
    %10 = vector.shape_cast %9 : vector<1x4x9xf32> to vector<4x9xf32>
    %11 = vector.shape_cast %8 : vector<4x9xf32> to vector<1x4x9xf32>
    tpu.vector_store %arg5[%c0_7, %c0_8, %c0_9], %11 {strides = array<i32>} : memref<1x4x9xf32, #tpu.memory_space<vmem>>, vector<1x4x9xf32>,
    return
  }
  func.func @transform_0(%arg0: i32, %arg1: i32) -> (i32, i32) {
    %c0_i32 = arith.constant 0 : i32
    %c0_i32_0 = arith.constant 0 : i32
    %c0_i32_1 = arith.constant 0 : i32
    return %c0_i32, %c0_i32_0 : i32, i32
  }
  func.func @transform_1(%arg0: i32, %arg1: i32) -> (i32, i32) {
    %c0_i32 = arith.constant 0 : i32
    %c0_i32_0 = arith.constant 0 : i32
    %c0_i32_1 = arith.constant 0 : i32
    return %c0_i32, %c0_i32_0 : i32, i32
  }
  func.func @transform_2(%arg0: i32, %arg1: i32) -> (i32, i32, i32) {
    %c0_i32 = arith.constant 0 : i32
    %c0_i32_0 = arith.constant 0 : i32
    return %arg0, %c0_i32, %arg1 : i32, i32, i32
  }
  func.func @transform_3(%arg0: i32, %arg1: i32) -> (i32, i32, i32) {
    %c0_i32 = arith.constant 0 : i32
    %c0_i32_0 = arith.constant 0 : i32
    return %arg0, %c0_i32, %arg1 : i32, i32, i32
  }
}

module attributes {stable_mosaic.version = 11 : i64} {
  func.func @_cf_matmul_kernel(%arg0: i32, %arg1: i32, %arg2: memref<4x36xf32, #tpu.memory_space<vmem>>, %arg3: memref<4x1xf32, #tpu.memory_space<vmem>>, %arg4: memref<1x36x9xf32, #tpu.memory_space<vmem>>, %arg5: memref<1x4x9xf32, #tpu.memory_space<vmem>>) attributes {dimension_semantics = [#tpu.dimension_semantics<parallel>, #tpu.dimension_semantics<parallel>], iteration_bounds = array<i64: 2, 1>, scalar_prefetch = 0 : i64, scratch_operands = 0 : i64, tpu.core_type = #tpu.core_type<tc>, window_params = [{pipeline_mode = #tpu.pipeline_mode<synchronous>, transform_indices = @transform_0, window_bounds = array<i64: 4, 36>}, {pipeline_mode = #tpu.pipeline_mode<synchronous>, transform_indices = @transform_1, window_bounds = array<i64: 4, 1>}, {transform_indices = @transform_2, window_bounds = array<i64: 1, 36, 9>}, {transform_indices = @transform_3, window_bounds = array<i64: 1, 4, 9>}]} {
    %c0 = arith.constant 0 : index
    %c0_0 = arith.constant 0 : index
    %0 = vector.load %arg2[%c0, %c0_0] : memref<4x36xf32, #tpu.memory_space<vmem>>, vector<4x36xf32>
    %c0_1 = arith.constant 0 : index
    %c0_2 = arith.constant 0 : index
    %c0_3 = arith.constant 0 : index
    %1 = vector.load %arg4[%c0_1, %c0_2, %c0_3] : memref<1x36x9xf32, #tpu.memory_space<vmem>>, vector<1x36x9xf32>
    %2 = vector.shape_cast %1 : vector<1x36x9xf32> to vector<36x9xf32>
    %cst = arith.constant dense<0.000000e+00> : vector<4x9xf32>
    %3 = tpu.matmul %0, %2, %cst {dimension_numbers = #tpu.dot_dimension_numbers<[1], [0], [0], [1], [0, 0, 1, 1], [], []>} : vector<4x36xf32>, vector<36x9xf32>, vector<4x9xf32> -> vector<4x9xf32>
    %c0_4 = arith.constant 0 : index
    %c0_5 = arith.constant 0 : index
    %4 = vector.load %arg3[%c0_4, %c0_5] : memref<4x1xf32, #tpu.memory_space<vmem>>, vector<4x1xf32>
    %5 = vector.broadcast %4 : vector<4x1xf32> to vector<4x9xf32>
    %6 = arith.addf %3, %5 : vector<4x9xf32>
    %c0_6 = arith.constant 0 : index
    %c0_7 = arith.constant 0 : index
    %c0_8 = arith.constant 0 : index
    %7 = vector.load %arg5[%c0_6, %c0_7, %c0_8] : memref<1x4x9xf32, #tpu.memory_space<vmem>>, vector<1x4x9xf32>
    %8 = vector.shape_cast %7 : vector<1x4x9xf32> to vector<4x9xf32>
    %9 = vector.shape_cast %6 : vector<4x9xf32> to vector<1x4x9xf32>
    tpu.vector_store %arg5[%c0_6, %c0_7, %c0_8], %9 {strides = array<i32>} : memref<1x4x9xf32, #tpu.memory_space<vmem>>, vector<1x4x9xf32>,
    return
  }
  func.func @transform_0(%arg0: i32, %arg1: i32) -> (i32, i32) {
    %c0_i32 = arith.constant 0 : i32
    %c0_i32_0 = arith.constant 0 : i32
    %c0_i32_1 = arith.constant 0 : i32
    return %c0_i32, %c0_i32_0 : i32, i32
  }
  func.func @transform_1(%arg0: i32, %arg1: i32) -> (i32, i32) {
    %c0_i32 = arith.constant 0 : i32
    %c0_i32_0 = arith.constant 0 : i32
    %c0_i32_1 = arith.constant 0 : i32
    return %c0_i32, %c0_i32_0 : i32, i32
  }
  func.func @transform_2(%arg0: i32, %arg1: i32) -> (i32, i32, i32) {
    %c0_i32 = arith.constant 0 : i32
    %c0_i32_0 = arith.constant 0 : i32
    return %arg0, %c0_i32, %arg1 : i32, i32, i32
  }
  func.func @transform_3(%arg0: i32, %arg1: i32) -> (i32, i32, i32) {
    %c0_i32 = arith.constant 0 : i32
    %c0_i32_0 = arith.constant 0 : i32
    return %arg0, %c0_i32, %arg1 : i32, i32, i32
  }
}

module attributes {stable_mosaic.version = 11 : i64} {
  func.func @_upsample_kernel(%arg0: i32, %arg1: memref<32x3xf32, #tpu.memory_space<vmem>>, %arg2: memref<3x32xf32, #tpu.memory_space<vmem>>, %arg3: memref<1x3x3xf32, #tpu.memory_space<vmem>>, %arg4: memref<1x32x32xf32, #tpu.memory_space<vmem>>) attributes {dimension_semantics = [#tpu.dimension_semantics<parallel>], iteration_bounds = array<i64: 8>, scalar_prefetch = 0 : i64, scratch_operands = 0 : i64, tpu.core_type = #tpu.core_type<tc>, window_params = [{pipeline_mode = #tpu.pipeline_mode<synchronous>, transform_indices = @transform_0, window_bounds = array<i64: 32, 3>}, {pipeline_mode = #tpu.pipeline_mode<synchronous>, transform_indices = @transform_1, window_bounds = array<i64: 3, 32>}, {transform_indices = @transform_2, window_bounds = array<i64: 1, 3, 3>}, {transform_indices = @transform_3, window_bounds = array<i64: 1, 32, 32>}]} {
    %c0 = arith.constant 0 : index
    %c0_0 = arith.constant 0 : index
    %0 = vector.load %arg1[%c0, %c0_0] : memref<32x3xf32, #tpu.memory_space<vmem>>, vector<32x3xf32>
    %c0_1 = arith.constant 0 : index
    %c0_2 = arith.constant 0 : index
    %c0_3 = arith.constant 0 : index
    %1 = vector.load %arg3[%c0_1, %c0_2, %c0_3] : memref<1x3x3xf32, #tpu.memory_space<vmem>>, vector<1x3x3xf32>
    %2 = vector.shape_cast %1 : vector<1x3x3xf32> to vector<3x3xf32>
    %cst = arith.constant dense<0.000000e+00> : vector<32x3xf32>
    %3 = tpu.matmul %0, %2, %cst {dimension_numbers = #tpu.dot_dimension_numbers<[1], [0], [0], [1], [0, 0, 1, 1], [], []>} : vector<32x3xf32>, vector<3x3xf32>, vector<32x3xf32> -> vector<32x3xf32>
    %c0_4 = arith.constant 0 : index
    %c0_5 = arith.constant 0 : index
    %4 = vector.load %arg2[%c0_4, %c0_5] : memref<3x32xf32, #tpu.memory_space<vmem>>, vector<3x32xf32>
    %cst_6 = arith.constant dense<0.000000e+00> : vector<32x32xf32>
    %5 = tpu.matmul %3, %4, %cst_6 {dimension_numbers = #tpu.dot_dimension_numbers<[1], [0], [0], [1], [0, 0, 1, 1], [], []>} : vector<32x3xf32>, vector<3x32xf32>, vector<32x32xf32> -> vector<32x32xf32>
    %c0_7 = arith.constant 0 : index
    %c0_8 = arith.constant 0 : index
    %c0_9 = arith.constant 0 : index
    %6 = vector.load %arg4[%c0_7, %c0_8, %c0_9] : memref<1x32x32xf32, #tpu.memory_space<vmem>>, vector<1x32x32xf32>
    %7 = vector.shape_cast %6 : vector<1x32x32xf32> to vector<32x32xf32>
    %8 = vector.shape_cast %5 : vector<32x32xf32> to vector<1x32x32xf32>
    tpu.vector_store %arg4[%c0_7, %c0_8, %c0_9], %8 {strides = array<i32>} : memref<1x32x32xf32, #tpu.memory_space<vmem>>, vector<1x32x32xf32>,
    return
  }
  func.func @transform_0(%arg0: i32) -> (i32, i32) {
    %c0_i32 = arith.constant 0 : i32
    %c0_i32_0 = arith.constant 0 : i32
    %c0_i32_1 = arith.constant 0 : i32
    return %c0_i32, %c0_i32_0 : i32, i32
  }
  func.func @transform_1(%arg0: i32) -> (i32, i32) {
    %c0_i32 = arith.constant 0 : i32
    %c0_i32_0 = arith.constant 0 : i32
    %c0_i32_1 = arith.constant 0 : i32
    return %c0_i32, %c0_i32_0 : i32, i32
  }
  func.func @transform_2(%arg0: i32) -> (i32, i32, i32) {
    %c0_i32 = arith.constant 0 : i32
    %c0_i32_0 = arith.constant 0 : i32
    %c0_i32_1 = arith.constant 0 : i32
    return %arg0, %c0_i32, %c0_i32_0 : i32, i32, i32
  }
  func.func @transform_3(%arg0: i32) -> (i32, i32, i32) {
    %c0_i32 = arith.constant 0 : i32
    %c0_i32_0 = arith.constant 0 : i32
    %c0_i32_1 = arith.constant 0 : i32
    return %arg0, %c0_i32, %c0_i32_0 : i32, i32, i32
  }
}

module attributes {stable_mosaic.version = 11 : i64} {
  func.func @_final_gate_kernel(%arg0: i32, %arg1: i32, %arg2: memref<4x4xf32, #tpu.memory_space<vmem>>, %arg3: memref<4x1xf32, #tpu.memory_space<vmem>>, %arg4: memref<16x4xf32, #tpu.memory_space<vmem>>, %arg5: memref<16x1xf32, #tpu.memory_space<vmem>>, %arg6: memref<1x4x1024xf32, #tpu.memory_space<vmem>>, %arg7: memref<1x4x1024xf32, #tpu.memory_space<vmem>>, %arg8: memref<1x16x1024xf32, #tpu.memory_space<vmem>>, %arg9: memref<1x16x1024xf32, #tpu.memory_space<vmem>>) attributes {dimension_semantics = [#tpu.dimension_semantics<parallel>, #tpu.dimension_semantics<parallel>], iteration_bounds = array<i64: 2, 1>, scalar_prefetch = 0 : i64, scratch_operands = 0 : i64, tpu.core_type = #tpu.core_type<tc>, window_params = [{pipeline_mode = #tpu.pipeline_mode<synchronous>, transform_indices = @transform_0, window_bounds = array<i64: 4, 4>}, {pipeline_mode = #tpu.pipeline_mode<synchronous>, transform_indices = @transform_1, window_bounds = array<i64: 4, 1>}, {pipeline_mode = #tpu.pipeline_mode<synchronous>, transform_indices = @transform_2, window_bounds = array<i64: 16, 4>}, {pipeline_mode = #tpu.pipeline_mode<synchronous>, transform_indices = @transform_3, window_bounds = array<i64: 16, 1>}, {transform_indices = @transform_4, window_bounds = array<i64: 1, 4, 1024>}, {transform_indices = @transform_5, window_bounds = array<i64: 1, 4, 1024>}, {transform_indices = @transform_6, window_bounds = array<i64: 1, 16, 1024>}, {transform_indices = @transform_7, window_bounds = array<i64: 1, 16, 1024>}]} {
    %c0 = arith.constant 0 : index
    %c0_0 = arith.constant 0 : index
    %0 = vector.load %arg2[%c0, %c0_0] : memref<4x4xf32, #tpu.memory_space<vmem>>, vector<4x4xf32>
    %c0_1 = arith.constant 0 : index
    %c0_2 = arith.constant 0 : index
    %c0_3 = arith.constant 0 : index
    %1 = vector.load %arg7[%c0_1, %c0_2, %c0_3] : memref<1x4x1024xf32, #tpu.memory_space<vmem>>, vector<1x4x1024xf32>
    %2 = vector.shape_cast %1 : vector<1x4x1024xf32> to vector<4x1024xf32>
    %cst = arith.constant dense<0.000000e+00> : vector<4x1024xf32>
    %3 = tpu.matmul %0, %2, %cst {dimension_numbers = #tpu.dot_dimension_numbers<[1], [0], [0], [1], [0, 0, 1, 1], [], []>} : vector<4x4xf32>, vector<4x1024xf32>, vector<4x1024xf32> -> vector<4x1024xf32>
    %c0_4 = arith.constant 0 : index
    %c0_5 = arith.constant 0 : index
    %4 = vector.load %arg3[%c0_4, %c0_5] : memref<4x1xf32, #tpu.memory_space<vmem>>, vector<4x1xf32>
    %5 = vector.broadcast %4 : vector<4x1xf32> to vector<4x1024xf32>
    %6 = arith.addf %3, %5 : vector<4x1024xf32>
    %c0_6 = arith.constant 0 : index
    %c0_7 = arith.constant 0 : index
    %c0_8 = arith.constant 0 : index
    %7 = vector.load %arg6[%c0_6, %c0_7, %c0_8] : memref<1x4x1024xf32, #tpu.memory_space<vmem>>, vector<1x4x1024xf32>
    %8 = vector.shape_cast %7 : vector<1x4x1024xf32> to vector<4x1024xf32>
    %9 = arith.addf %8, %6 : vector<4x1024xf32>
    %c0_9 = arith.constant 0 : index
    %c0_10 = arith.constant 0 : index
    %10 = vector.load %arg4[%c0_9, %c0_10] : memref<16x4xf32, #tpu.memory_space<vmem>>, vector<16x4xf32>
    %cst_11 = arith.constant dense<0.000000e+00> : vector<16x1024xf32>
    %11 = tpu.matmul %10, %9, %cst_11 {dimension_numbers = #tpu.dot_dimension_numbers<[1], [0], [0], [1], [0, 0, 1, 1], [], []>} : vector<16x4xf32>, vector<4x1024xf32>, vector<16x1024xf32> -> vector<16x1024xf32>
    %c0_12 = arith.constant 0 : index
    %c0_13 = arith.constant 0 : index
    %12 = vector.load %arg5[%c0_12, %c0_13] : memref<16x1xf32, #tpu.memory_space<vmem>>, vector<16x1xf32>
    %13 = vector.broadcast %12 : vector<16x1xf32> to vector<16x1024xf32>
    %14 = arith.addf %11, %13 : vector<16x1024xf32>
    %cst_14 = arith.constant 0.000000e+00 : f32
    %15 = vector.broadcast %cst_14 : f32 to vector<16x1024xf32>
    %16 = arith.subf %15, %14 : vector<16x1024xf32>
    %17 = math.exp %16 : vector<16x1024xf32>
    %cst_15 = arith.constant 1.000000e+00 : f32
    %18 = vector.broadcast %cst_15 : f32 to vector<16x1024xf32>
    %19 = arith.addf %18, %17 : vector<16x1024xf32>
    %cst_16 = arith.constant 1.000000e+00 : f32
    %20 = vector.broadcast %cst_16 : f32 to vector<16x1024xf32>
    %21 = arith.divf %20, %19 : vector<16x1024xf32>
    %c0_17 = arith.constant 0 : index
    %c0_18 = arith.constant 0 : index
    %c0_19 = arith.constant 0 : index
    %22 = vector.load %arg8[%c0_17, %c0_18, %c0_19] : memref<1x16x1024xf32, #tpu.memory_space<vmem>>, vector<1x16x1024xf32>
    %23 = vector.shape_cast %22 : vector<1x16x1024xf32> to vector<16x1024xf32>
    %24 = arith.mulf %23, %21 : vector<16x1024xf32>
    %c0_20 = arith.constant 0 : index
    %c0_21 = arith.constant 0 : index
    %c0_22 = arith.constant 0 : index
    %25 = vector.load %arg9[%c0_20, %c0_21, %c0_22] : memref<1x16x1024xf32, #tpu.memory_space<vmem>>, vector<1x16x1024xf32>
    %26 = vector.shape_cast %25 : vector<1x16x1024xf32> to vector<16x1024xf32>
    %27 = vector.shape_cast %24 : vector<16x1024xf32> to vector<1x16x1024xf32>
    tpu.vector_store %arg9[%c0_20, %c0_21, %c0_22], %27 {strides = array<i32>} : memref<1x16x1024xf32, #tpu.memory_space<vmem>>, vector<1x16x1024xf32>,
    return
  }
  func.func @transform_0(%arg0: i32, %arg1: i32) -> (i32, i32) {
    %c0_i32 = arith.constant 0 : i32
    %c0_i32_0 = arith.constant 0 : i32
    %c0_i32_1 = arith.constant 0 : i32
    return %c0_i32, %c0_i32_0 : i32, i32
  }
  func.func @transform_1(%arg0: i32, %arg1: i32) -> (i32, i32) {
    %c0_i32 = arith.constant 0 : i32
    %c0_i32_0 = arith.constant 0 : i32
    %c0_i32_1 = arith.constant 0 : i32
    return %c0_i32, %c0_i32_0 : i32, i32
  }
  func.func @transform_2(%arg0: i32, %arg1: i32) -> (i32, i32) {
    %c0_i32 = arith.constant 0 : i32
    %c0_i32_0 = arith.constant 0 : i32
    %c0_i32_1 = arith.constant 0 : i32
    return %c0_i32, %c0_i32_0 : i32, i32
  }
  func.func @transform_3(%arg0: i32, %arg1: i32) -> (i32, i32) {
    %c0_i32 = arith.constant 0 : i32
    %c0_i32_0 = arith.constant 0 : i32
    %c0_i32_1 = arith.constant 0 : i32
    return %c0_i32, %c0_i32_0 : i32, i32
  }
  func.func @transform_4(%arg0: i32, %arg1: i32) -> (i32, i32, i32) {
    %c0_i32 = arith.constant 0 : i32
    %c0_i32_0 = arith.constant 0 : i32
    return %arg0, %c0_i32, %arg1 : i32, i32, i32
  }
  func.func @transform_5(%arg0: i32, %arg1: i32) -> (i32, i32, i32) {
    %c0_i32 = arith.constant 0 : i32
    %c0_i32_0 = arith.constant 0 : i32
    return %arg0, %c0_i32, %arg1 : i32, i32, i32
  }
  func.func @transform_6(%arg0: i32, %arg1: i32) -> (i32, i32, i32) {
    %c0_i32 = arith.constant 0 : i32
    %c0_i32_0 = arith.constant 0 : i32
    return %arg0, %c0_i32, %arg1 : i32, i32, i32
  }
  func.func @transform_7(%arg0: i32, %arg1: i32) -> (i32, i32, i32) {
    %c0_i32 = arith.constant 0 : i32
    %c0_i32_0 = arith.constant 0 : i32
    return %arg0, %c0_i32, %arg1 : i32, i32, i32
  }
}

</mosaic_0001>

<llo_original>
// kernel: esa_forward.8
$region0: #{esa_forward.8}
  #allocation0 [shape = 'u32[]', space=smem, size = 0x4, offset = 0x4, fixed_abs, tag = 'smem constant byte address 0x4 - core index']
  #allocation1 [shape = 'u32[144,128]{1,0:T(1,128)}', space=vmem, size = 0x12000, scoped, tag = 'internal scratch']
  %s0 = inlined_call_operand.vmem [shape: f32[4,16], index: 0, kind: input, shape index: {}]
  %s1 = inlined_call_operand.vmem [shape: f32[4,1], index: 1, kind: input, shape index: {}]
  %s2 = inlined_call_operand.vmem [shape: f32[2,16,1024], index: 2, kind: input, shape index: {}]
  %s3 = inlined_call_operand.vmem [shape: f32[2,4,1024], index: 3, kind: output, shape index: {}]
  %s4 = sld [smem:[#allocation0]]
  $region45: #{esa_forward.8} parent=0
    _
  %s6 = ssub.s32 1, %s4
  %s7 = scalar_select 0, %s6, %s4
  loop: start=0, step=1, limit=4
  $region2: #{esa_forward.8} parent=0 // loop_pre_header
    _
  $region3: #{esa_forward.8} parent=0 // loop_header
    %s9 = sphi 0, %s13
    %p10 = scmp.ge.s32.totalorder %s9, 4
    %s16 = sphi 0, %s28
    %s17 = sphi 0, %s24
    %s18 = sphi 0, %s16
    %s19 = sphi 0, %s17
    %s20 = sphi 0, %s18
    %s21 = sphi 0, %s19
    %s29 = sphi 0, %s29
    %s31 = sphi 0, %s29
    %s32 = sphi 0, %s31
    %s46 = sphi 0, %s32
    %s50 = sphi 0, %s50
    %s52 = sphi 0, %s50
    %s53 = sphi 0, %s52
    %s67 = sphi 0, %s53
    %s75 = sphi 0, %s77
    %s78 = sphi 0, %s75
    %s79 = sphi 0, %s78
    %s95 = sphi 0, %s79
    %s103 = sphi 0, %s105
    %s106 = sphi 0, %s103
    %s107 = sphi 0, %s106
    %s123 = sphi 0, %s107
  $region4: #{esa_forward.8} parent=0 // loop_header_branch
    %12 = sbr.rel (%p10) target = $region8
  $region5: #{esa_forward.8} parent=0 // loop_body
    %s14 = ssub.s32 %s9, 1
    %s15 = ssub.s32 %s9, 2
    %s22 = sadd.s32 1, %s17
    %p23 = scmp.ge.s32.totalorder %s22, 1
    %s24 = scalar_select %p23, 0, %s22
    %s25 = sadd.s32 1, %s16
    %s26 = scalar_select %p23, %s25, %s16
    %p27 = scmp.ge.s32.totalorder %s26, 2
    %s28 = scalar_select %p27, 0, %s26
    %s30 = sadd.s32 %s29, 1
    %p33 = scmp.eq.s32.totalorder %s9, 1
    %p34 = scmp.ne.s32.totalorder %s29, %s31
    %p35 = scmp.eq.s32.totalorder %s9, 0
    %p36 = por %p34, %p35
    %p37 = scmp.ne.s32.totalorder %s29, %s31
    %p38 = scmp.eq.s32.totalorder %s14, 1
    %p39 = por %p37, %p38
    %p40 = scmp.ne.s32.totalorder %s31, %s32
    %p41 = scmp.eq.s32.totalorder %s14, 0
    %p42 = por %p40, %p41
    %p43 = scmp.ne.s32.totalorder %s31, %s32
    %p44 = scmp.eq.s32.totalorder %s15, 1
    %p45 = por %p43, %p44
    %p47 = scmp.ne.s32.totalorder %s32, %s46
    %p48 = scmp.eq.s32.totalorder %s15, 0
    %p49 = por %p47, %p48
    %s51 = sadd.s32 %s50, 1
    %p54 = scmp.eq.s32.totalorder %s9, 1
    %p55 = scmp.ne.s32.totalorder %s50, %s52
    %p56 = scmp.eq.s32.totalorder %s9, 0
    %p57 = por %p55, %p56
    %p58 = scmp.ne.s32.totalorder %s50, %s52
    %p59 = scmp.eq.s32.totalorder %s14, 1
    %p60 = por %p58, %p59
    %p61 = scmp.ne.s32.totalorder %s52, %s53
    %p62 = scmp.eq.s32.totalorder %s14, 0
    %p63 = por %p61, %p62
    %p64 = scmp.ne.s32.totalorder %s52, %s53
    %p65 = scmp.eq.s32.totalorder %s15, 1
    %p66 = por %p64, %p65
    %p68 = scmp.ne.s32.totalorder %s53, %s67
    %p69 = scmp.eq.s32.totalorder %s15, 0
    %p70 = por %p68, %p69
    %s71 = ssub.s32 %s16, %s28
    %s72 = ssub.s32 %s17, %s24
    %s73 = sor.u32 %s71, %s72
    %p74 = scmp.eq.s32.totalorder %s73, 0
    %s76 = sadd.s32 %s75, 1
    %s77 = scalar_select %p74, %s75, %s76
    %p80 = pneg %p74
    %p81 = scmp.eq.s32.totalorder %s9, 1
    %p82 = por %p80, %p81
    %p83 = scmp.ne.s32.totalorder %s75, %s78
    %p84 = scmp.eq.s32.totalorder %s9, 0
    %p85 = por %p83, %p84
    %p86 = scmp.ne.s32.totalorder %s75, %s78
    %p87 = scmp.eq.s32.totalorder %s14, 1
    %p88 = por %p86, %p87
    %p89 = scmp.ne.s32.totalorder %s78, %s79
    %p90 = scmp.eq.s32.totalorder %s14, 0
    %p91 = por %p89, %p90
    %p92 = scmp.ne.s32.totalorder %s78, %s79
    %p93 = scmp.eq.s32.totalorder %s15, 1
    %p94 = por %p92, %p93
    %p96 = scmp.ne.s32.totalorder %s79, %s95
    %p97 = scmp.eq.s32.totalorder %s15, 0
    %p98 = por %p96, %p97
    %s99 = ssub.s32 %s16, %s28
    %s100 = ssub.s32 %s17, %s24
    %s101 = sor.u32 %s99, %s100
    %p102 = scmp.eq.s32.totalorder %s101, 0
    %s104 = sadd.s32 %s103, 1
    %s105 = scalar_select %p102, %s103, %s104
    %p108 = pneg %p102
    %p109 = scmp.eq.s32.totalorder %s9, 1
    %p110 = por %p108, %p109
    %p111 = scmp.ne.s32.totalorder %s103, %s106
    %p112 = scmp.eq.s32.totalorder %s9, 0
    %p113 = por %p111, %p112
    %p114 = scmp.ne.s32.totalorder %s103, %s106
    %p115 = scmp.eq.s32.totalorder %s14, 1
    %p116 = por %p114, %p115
    %p117 = scmp.ne.s32.totalorder %s106, %s107
    %p118 = scmp.eq.s32.totalorder %s14, 0
    %p119 = por %p117, %p118
    %p120 = scmp.ne.s32.totalorder %s106, %s107
    %p121 = scmp.eq.s32.totalorder %s15, 1
    %p122 = por %p120, %p121
    %p124 = scmp.ne.s32.totalorder %s107, %s123
    %p125 = scmp.eq.s32.totalorder %s15, 0
    %p126 = por %p124, %p125
    %p127 = scmp.le.s32.totalorder 1, %s9
    %p128 = scmp.lt.s32.totalorder %s9, 3
    %p129 = pnand %p127, %p128
    %p130 = pneg %p129
    // Predicated region
    $region9: #{esa_forward.8} parent=5 // pred_check
      _
    $region10: #{esa_forward.8} parent=5 // pred_check_branch
      %132 = sbr.rel (%p129) target = $region12
    $region11: #{esa_forward.8} parent=5 // pred_region
      %s133 = ssub.s32 %s9, 1
      // Predicated region
      $region13: #{esa_forward.8} parent=11 // pred_check
        %p134 = pneg %p42
      $region14: #{esa_forward.8} parent=11 // pred_check_branch
        %136 = sbr.rel (%p134) target = $region16
      $region15: #{esa_forward.8} parent=11 // pred_region
        _
      $region16: #{esa_forward.8} parent=11 // pred_fallthru
        _
      // Predicated region
      $region17: #{esa_forward.8} parent=11 // pred_check
        %p137 = pneg %p63
      $region18: #{esa_forward.8} parent=11 // pred_check_branch
        %139 = sbr.rel (%p137) target = $region20
      $region19: #{esa_forward.8} parent=11 // pred_region
        _
      $region20: #{esa_forward.8} parent=11 // pred_fallthru
        _
    $region12: #{esa_forward.8} parent=5 // pred_fallthru
      _
    %p140 = scmp.lt.s32.totalorder %s9, 2
    // Predicated region
    $region21: #{esa_forward.8} parent=5 // pred_check
      %p141 = pneg %p140
    $region22: #{esa_forward.8} parent=5 // pred_check_branch
      %143 = sbr.rel (%p141) target = $region24
    $region23: #{esa_forward.8} parent=5 // pred_region
      // Predicated region
      $region25: #{esa_forward.8} parent=23 // pred_check
        %p144 = pneg %p85
      $region26: #{esa_forward.8} parent=23 // pred_check_branch
        %146 = sbr.rel (%p144) target = $region28
      $region27: #{esa_forward.8} parent=23 // pred_region
        %s147 = smul.u32 8, %s17
        %p148 = scmp.lt.s32.totalorder %s16, 1
        %s149 = scalar_select %p148, %s16, 1
        %p150 = scmp.lt.s32.totalorder %s147, 7
        %s151 = scalar_select %p150, %s147, 7
        %s152 = smul.addr %s149, 16
        %s153 = sadd.s32 %s151, %s152
        %s154 = smul.addr %s153, 8
        %s155 = scalar_lea.vmem %s2, %s154
        %s156 = smul.u32 8, %s17
      $region28: #{esa_forward.8} parent=23 // pred_fallthru
        _
    $region24: #{esa_forward.8} parent=5 // pred_fallthru
      _
    %p157 = scmp.le.s32.totalorder 1, %s9
    %p158 = scmp.lt.s32.totalorder %s9, 3
    %p159 = pnand %p157, %p158
    %p160 = pneg %p159
    // Predicated region
    $region29: #{esa_forward.8} parent=5 // pred_check
      _
    $region30: #{esa_forward.8} parent=5 // pred_check_branch
      %162 = sbr.rel (%p159) target = $region32
    $region31: #{esa_forward.8} parent=5 // pred_region
      %s163 = ssub.s32 %s9, 1
      %p164 = pneg %p42
      %p165 = pneg %p39
      %p166 = pneg %p63
      %p167 = pneg %p60
      %s168 = smul.u32 8, %s19
      %p169 = scmp.lt.s32.totalorder %s18, 1
      %s170 = scalar_select %p169, %s18, 1
      %p171 = scmp.lt.s32.totalorder %s168, 7
      %s172 = scalar_select %p171, %s168, 7
      %s173 = smul.addr %s170, 16
      %s174 = sadd.s32 %s172, %s173
      %s175 = smul.addr %s174, 8
      %s176 = scalar_lea.vmem %s2, %s175
      %p177 = pneg %p91
      %p178 = pneg %p88
      %p179 = pneg %p119
      %p180 = pneg %p116
      %s181 = smul.u32 8, %s19
      %p182 = scmp.lt.s32.totalorder %s18, 1
      %s183 = scalar_select %p182, %s18, 1
      %p184 = scmp.lt.s32.totalorder %s181, 7
      %s185 = scalar_select %p184, %s181, 7
      %s186 = smul.addr %s183, 8
      %s187 = sadd.s32 %s185, %s186
      %s188 = smul.addr %s187, 4
      %s189 = scalar_lea.vmem %s3, %s188
      %s190 = smul.u32 8, %s19
      %p191 = scmp.lt.s32.totalorder %s18, 1
      %s192 = scalar_select %p191, %s18, 1
      %p193 = scmp.lt.s32.totalorder %s190, 7
      %s194 = scalar_select %p193, %s190, 7
      %s195 = smul.addr %s192, 16
      %s196 = sadd.s32 %s194, %s195
      %s197 = smul.addr %s196, 8
      %s198 = scalar_lea.vmem %s2, %s197
      %s199 = smul.u32 8, %s19
      %s200 = smul.u32 8, %s19
      %p201 = scmp.lt.s32.totalorder %s18, 1
      %s202 = scalar_select %p201, %s18, 1
      %p203 = scmp.lt.s32.totalorder %s200, 7
      %s204 = scalar_select %p203, %s200, 7
      %s205 = smul.addr %s202, 8
      %s206 = sadd.s32 %s204, %s205
      %s207 = smul.addr %s206, 4
      %s208 = scalar_lea.vmem %s3, %s207
      %s209 = smul.u32 8, %s19
      %v210 = vld [vmem:[%s0] sm:$0xf]
      %v211 = vld [vmem:[%s198] sm:$0xff]
      %v212 = vld [vmem:[%s198 + $0x8] sm:$0xff]
      %v213 = vld [vmem:[%s198 + $0x10] sm:$0xff]
      %v214 = vld [vmem:[%s198 + $0x18] sm:$0xff]
      %v215 = vld [vmem:[%s198 + $0x20] sm:$0xff]
      %v216 = vld [vmem:[%s198 + $0x28] sm:$0xff]
      %v217 = vld [vmem:[%s198 + $0x30] sm:$0xff]
      %v218 = vld [vmem:[%s198 + $0x38] sm:$0xff]
      %v219 = vld [vmem:[%s198 + $0x40] sm:$0xff]
      %v220 = vld [vmem:[%s198 + $0x48] sm:$0xff]
      %v221 = vld [vmem:[%s198 + $0x50] sm:$0xff]
      %v222 = vld [vmem:[%s198 + $0x58] sm:$0xff]
      %v223 = vld [vmem:[%s198 + $0x60] sm:$0xff]
      %v224 = vld [vmem:[%s198 + $0x68] sm:$0xff]
      %v225 = vld [vmem:[%s198 + $0x70] sm:$0xff]
      %v226 = vld [vmem:[%s198 + $0x78] sm:$0xff]
      %v227 = vld [vmem:[%s1] sm:$0xf]
      %229 = vset.pattern.permute.xlu0 0
      %230 = vperm.xlu0 %229, %v227
      %v231 = vpop.permute.xlu0 %230
      %vm233 = vcmask 130048
      %v235 = vsel %vm233, %v210, 0
      %237 = vmatprep.subr.mxu0 %v212
      %238 = vmatpush1.msra.mxu0 %v211
      %239 = vmatprep.subr.mxu0 %v220
      %240 = vmatpush1.msra.mxu0 %v219
      %241 = vmatprep.subr.mxu0 0.0
      %242 = vmatpush1.msra.mxu0 0.0
      %243 = vmatprep.subr.mxu0 0.0
      %244 = vmatpush1.msra.mxu0 0.0
      %245 = vmatprep.subr.mxu0 0.0
      %246 = vmatpush1.msra.mxu0 0.0
      %247 = vmatprep.subr.mxu0 0.0
      %248 = vmatpush1.msra.mxu0 0.0
      %249 = vmatprep.subr.mxu0 0.0
      %250 = vmatpush1.msra.mxu0 0.0
      %251 = vmatprep.subr.mxu0 0.0
      %252 = vmatpush1.msra.mxu0 0.0
      %253 = vmatprep.subr.mxu0 0.0
      %254 = vmatpush1.msra.mxu0 0.0
      %255 = vmatprep.subr.mxu0 0.0
      %256 = vmatpush1.msra.mxu0 0.0
      %257 = vmatprep.subr.mxu0 0.0
      %258 = vmatpush1.msra.mxu0 0.0
      %259 = vmatprep.subr.mxu0 0.0
      %260 = vmatpush1.msra.mxu0 0.0
      %261 = vmatprep.subr.mxu0 0.0
      %262 = vmatpush1.msra.mxu0 0.0
      %263 = vmatprep.subr.mxu0 0.0
      %264 = vmatpush1.msra.mxu0 0.0
      %265 = vmatprep.subr.mxu0 0.0
      %266 = vmatpush1.msra.mxu0 0.0
      %267 = vmatprep.subr.mxu0 0.0
      %268 = vmatpush1.msra.mxu0 0.0
      %269 = vmatprep.subr.mxu0 0.0
      %270 = vmatpush1.msra.mxu0 0.0
      %271 = vmatprep.subr.mxu0 0.0
      %272 = vmatpush1.msra.mxu0 0.0
      %273 = vmatprep.subr.mxu0 0.0
      %274 = vmatpush1.msra.mxu0 0.0
      %275 = vmatprep.subr.mxu0 0.0
      %276 = vmatpush1.msra.mxu0 0.0
      %277 = vmatprep.subr.mxu0 0.0
      %278 = vmatpush1.msra.mxu0 0.0
      %279 = vmatprep.subr.mxu0 0.0
      %280 = vmatpush1.msra.mxu0 0.0
      %281 = vmatprep.subr.mxu0 0.0
      %282 = vmatpush1.msra.mxu0 0.0
      %283 = vmatprep.subr.mxu0 0.0
      %284 = vmatpush1.msra.mxu0 0.0
      %285 = vmatprep.subr.mxu0 0.0
      %286 = vmatpush1.msra.mxu0 0.0
      %287 = vmatprep.subr.mxu0 0.0
      %288 = vmatpush1.msra.mxu0 0.0
      %289 = vmatprep.subr.mxu0 0.0
      %290 = vmatpush1.msra.mxu0 0.0
      %291 = vmatprep.subr.mxu0 0.0
      %292 = vmatpush1.msra.mxu0 0.0
      %293 = vmatprep.subr.mxu0 0.0
      %294 = vmatpush1.msra.mxu0 0.0
      %295 = vmatprep.subr.mxu0 0.0
      %296 = vmatpush1.msra.mxu0 0.0
      %297 = vmatprep.subr.mxu0 0.0
      %298 = vmatpush1.msra.mxu0 0.0
      %299 = vmatprep.subr.mxu0 0.0
      %300 = vmatpush1.msra.mxu0 0.0
      %301 = vmatprep.mubr.f32.mxu0 0.0
      %302 = vmatmul.mubr.f32.gmra.mrb[0].mxu0 %v235
      %v303 = vpop.f32.mrb[0].mxu0
      %v304 = vadd.f32 %v231, %v303
      %v305 = vpop.f32.mrb[0].mxu0
      %v306 = vadd.f32 %v231, %v305
      %307 = vdwg.mxu0
      %308 = vmatprep.subr.mxu0 %v214
      %309 = vmatpush1.msra.mxu0 %v213
      %310 = vmatprep.subr.mxu0 %v222
      %311 = vmatpush1.msra.mxu0 %v221
      %312 = vmatprep.subr.mxu0 0.0
      %313 = vmatpush1.msra.mxu0 0.0
      %314 = vmatprep.subr.mxu0 0.0
      %315 = vmatpush1.msra.mxu0 0.0
      %316 = vmatprep.subr.mxu0 0.0
      %317 = vmatpush1.msra.mxu0 0.0
      %318 = vmatprep.subr.mxu0 0.0
      %319 = vmatpush1.msra.mxu0 0.0
      %320 = vmatprep.subr.mxu0 0.0
      %321 = vmatpush1.msra.mxu0 0.0
      %322 = vmatprep.subr.mxu0 0.0
      %323 = vmatpush1.msra.mxu0 0.0
      %324 = vmatprep.subr.mxu0 0.0
      %325 = vmatpush1.msra.mxu0 0.0
      %326 = vmatprep.subr.mxu0 0.0
      %327 = vmatpush1.msra.mxu0 0.0
      %328 = vmatprep.subr.mxu0 0.0
      %329 = vmatpush1.msra.mxu0 0.0
      %330 = vmatprep.subr.mxu0 0.0
      %331 = vmatpush1.msra.mxu0 0.0
      %332 = vmatprep.subr.mxu0 0.0
      %333 = vmatpush1.msra.mxu0 0.0
      %334 = vmatprep.subr.mxu0 0.0
      %335 = vmatpush1.msra.mxu0 0.0
      %336 = vmatprep.subr.mxu0 0.0
      %337 = vmatpush1.msra.mxu0 0.0
      %338 = vmatprep.subr.mxu0 0.0
      %339 = vmatpush1.msra.mxu0 0.0
      %340 = vmatprep.subr.mxu0 0.0
      %341 = vmatpush1.msra.mxu0 0.0
      %342 = vmatprep.subr.mxu0 0.0
      %343 = vmatpush1.msra.mxu0 0.0
      %344 = vmatprep.subr.mxu0 0.0
      %345 = vmatpush1.msra.mxu0 0.0
      %346 = vmatprep.subr.mxu0 0.0
      %347 = vmatpush1.msra.mxu0 0.0
      %348 = vmatprep.subr.mxu0 0.0
      %349 = vmatpush1.msra.mxu0 0.0
      %350 = vmatprep.subr.mxu0 0.0
      %351 = vmatpush1.msra.mxu0 0.0
      %352 = vmatprep.subr.mxu0 0.0
      %353 = vmatpush1.msra.mxu0 0.0
      %354 = vmatprep.subr.mxu0 0.0
      %355 = vmatpush1.msra.mxu0 0.0
      %356 = vmatprep.subr.mxu0 0.0
      %357 = vmatpush1.msra.mxu0 0.0
      %358 = vmatprep.subr.mxu0 0.0
      %359 = vmatpush1.msra.mxu0 0.0
      %360 = vmatprep.subr.mxu0 0.0
      %361 = vmatpush1.msra.mxu0 0.0
      %362 = vmatprep.subr.mxu0 0.0
      %363 = vmatpush1.msra.mxu0 0.0
      %364 = vmatprep.subr.mxu0 0.0
      %365 = vmatpush1.msra.mxu0 0.0
      %366 = vmatprep.subr.mxu0 0.0
      %367 = vmatpush1.msra.mxu0 0.0
      %368 = vmatprep.subr.mxu0 0.0
      %369 = vmatpush1.msra.mxu0 0.0
      %370 = vmatprep.subr.mxu0 0.0
      %371 = vmatpush1.msra.mxu0 0.0
      %372 = vmatprep.mubr.f32.mxu0 0.0
      %373 = vmatmul.mubr.f32.gmra.mrb[0].mxu0 %v235
      %v374 = vpop.f32.mrb[0].mxu0
      %v375 = vadd.f32 %v231, %v374
      %v376 = vpop.f32.mrb[0].mxu0
      %v377 = vadd.f32 %v231, %v376
      %378 = vdwg.mxu0
      %379 = vmatprep.subr.mxu0 %v216
      %380 = vmatpush1.msra.mxu0 %v215
      %381 = vmatprep.subr.mxu0 %v224
      %382 = vmatpush1.msra.mxu0 %v223
      %383 = vmatprep.subr.mxu0 0.0
      %384 = vmatpush1.msra.mxu0 0.0
      %385 = vmatprep.subr.mxu0 0.0
      %386 = vmatpush1.msra.mxu0 0.0
      %387 = vmatprep.subr.mxu0 0.0
      %388 = vmatpush1.msra.mxu0 0.0
      %389 = vmatprep.subr.mxu0 0.0
      %390 = vmatpush1.msra.mxu0 0.0
      %391 = vmatprep.subr.mxu0 0.0
      %392 = vmatpush1.msra.mxu0 0.0
      %393 = vmatprep.subr.mxu0 0.0
      %394 = vmatpush1.msra.mxu0 0.0
      %395 = vmatprep.subr.mxu0 0.0
      %396 = vmatpush1.msra.mxu0 0.0
      %397 = vmatprep.subr.mxu0 0.0
      %398 = vmatpush1.msra.mxu0 0.0
      %399 = vmatprep.subr.mxu0 0.0
      %400 = vmatpush1.msra.mxu0 0.0
      %401 = vmatprep.subr.mxu0 0.0
      %402 = vmatpush1.msra.mxu0 0.0
      %403 = vmatprep.subr.mxu0 0.0
      %404 = vmatpush1.msra.mxu0 0.0
      %405 = vmatprep.subr.mxu0 0.0
      %406 = vmatpush1.msra.mxu0 0.0
      %407 = vmatprep.subr.mxu0 0.0
      %408 = vmatpush1.msra.mxu0 0.0
      %409 = vmatprep.subr.mxu0 0.0
      %410 = vmatpush1.msra.mxu0 0.0
      %411 = vmatprep.subr.mxu0 0.0
      %412 = vmatpush1.msra.mxu0 0.0
      %413 = vmatprep.subr.mxu0 0.0
      %414 = vmatpush1.msra.mxu0 0.0
      %415 = vmatprep.subr.mxu0 0.0
      %416 = vmatpush1.msra.mxu0 0.0
      %417 = vmatprep.subr.mxu0 0.0
      %418 = vmatpush1.msra.mxu0 0.0
      %419 = vmatprep.subr.mxu0 0.0
      %420 = vmatpush1.msra.mxu0 0.0
      %421 = vmatprep.subr.mxu0 0.0
      %422 = vmatpush1.msra.mxu0 0.0
      %423 = vmatprep.subr.mxu0 0.0
      %424 = vmatpush1.msra.mxu0 0.0
      %425 = vmatprep.subr.mxu0 0.0
      %426 = vmatpush1.msra.mxu0 0.0
      %427 = vmatprep.subr.mxu0 0.0
      %428 = vmatpush1.msra.mxu0 0.0
      %429 = vmatprep.subr.mxu0 0.0
      %430 = vmatpush1.msra.mxu0 0.0
      %431 = vmatprep.subr.mxu0 0.0
      %432 = vmatpush1.msra.mxu0 0.0
      %433 = vmatprep.subr.mxu0 0.0
      %434 = vmatpush1.msra.mxu0 0.0
      %435 = vmatprep.subr.mxu0 0.0
      %436 = vmatpush1.msra.mxu0 0.0
      %437 = vmatprep.subr.mxu0 0.0
      %438 = vmatpush1.msra.mxu0 0.0
      %439 = vmatprep.subr.mxu0 0.0
      %440 = vmatpush1.msra.mxu0 0.0
      %441 = vmatprep.subr.mxu0 0.0
      %442 = vmatpush1.msra.mxu0 0.0
      %443 = vmatprep.mubr.f32.mxu0 0.0
      %444 = vmatmul.mubr.f32.gmra.mrb[0].mxu0 %v235
      %v445 = vpop.f32.mrb[0].mxu0
      %v446 = vadd.f32 %v231, %v445
      %v447 = vpop.f32.mrb[0].mxu0
      %v448 = vadd.f32 %v231, %v447
      %449 = vdwg.mxu0
      %450 = vmatprep.subr.mxu0 %v218
      %451 = vmatpush1.msra.mxu0 %v217
      %452 = vmatprep.subr.mxu0 %v226
      %453 = vmatpush1.msra.mxu0 %v225
      %454 = vmatprep.subr.mxu0 0.0
      %455 = vmatpush1.msra.mxu0 0.0
      %456 = vmatprep.subr.mxu0 0.0
      %457 = vmatpush1.msra.mxu0 0.0
      %458 = vmatprep.subr.mxu0 0.0
      %459 = vmatpush1.msra.mxu0 0.0
      %460 = vmatprep.subr.mxu0 0.0
      %461 = vmatpush1.msra.mxu0 0.0
      %462 = vmatprep.subr.mxu0 0.0
      %463 = vmatpush1.msra.mxu0 0.0
      %464 = vmatprep.subr.mxu0 0.0
      %465 = vmatpush1.msra.mxu0 0.0
      %466 = vmatprep.subr.mxu0 0.0
      %467 = vmatpush1.msra.mxu0 0.0
      %468 = vmatprep.subr.mxu0 0.0
      %469 = vmatpush1.msra.mxu0 0.0
      %470 = vmatprep.subr.mxu0 0.0
      %471 = vmatpush1.msra.mxu0 0.0
      %472 = vmatprep.subr.mxu0 0.0
      %473 = vmatpush1.msra.mxu0 0.0
      %474 = vmatprep.subr.mxu0 0.0
      %475 = vmatpush1.msra.mxu0 0.0
      %476 = vmatprep.subr.mxu0 0.0
      %477 = vmatpush1.msra.mxu0 0.0
      %478 = vmatprep.subr.mxu0 0.0
      %479 = vmatpush1.msra.mxu0 0.0
      %480 = vmatprep.subr.mxu0 0.0
      %481 = vmatpush1.msra.mxu0 0.0
      %482 = vmatprep.subr.mxu0 0.0
      %483 = vmatpush1.msra.mxu0 0.0
      %484 = vmatprep.subr.mxu0 0.0
      %485 = vmatpush1.msra.mxu0 0.0
      %486 = vmatprep.subr.mxu0 0.0
      %487 = vmatpush1.msra.mxu0 0.0
      %488 = vmatprep.subr.mxu0 0.0
      %489 = vmatpush1.msra.mxu0 0.0
      %490 = vmatprep.subr.mxu0 0.0
      %491 = vmatpush1.msra.mxu0 0.0
      %492 = vmatprep.subr.mxu0 0.0
      %493 = vmatpush1.msra.mxu0 0.0
      %494 = vmatprep.subr.mxu0 0.0
      %495 = vmatpush1.msra.mxu0 0.0
      %496 = vmatprep.subr.mxu0 0.0
      %497 = vmatpush1.msra.mxu0 0.0
      %498 = vmatprep.subr.mxu0 0.0
      %499 = vmatpush1.msra.mxu0 0.0
      %500 = vmatprep.subr.mxu0 0.0
      %501 = vmatpush1.msra.mxu0 0.0
      %502 = vmatprep.subr.mxu0 0.0
      %503 = vmatpush1.msra.mxu0 0.0
      %504 = vmatprep.subr.mxu0 0.0
      %505 = vmatpush1.msra.mxu0 0.0
      %506 = vmatprep.subr.mxu0 0.0
      %507 = vmatpush1.msra.mxu0 0.0
      %508 = vmatprep.subr.mxu0 0.0
      %509 = vmatpush1.msra.mxu0 0.0
      %510 = vmatprep.subr.mxu0 0.0
      %511 = vmatpush1.msra.mxu0 0.0
      %512 = vmatprep.subr.mxu0 0.0
      %513 = vmatpush1.msra.mxu0 0.0
      %514 = vmatprep.mubr.f32.mxu0 0.0
      %515 = vmatmul.mubr.f32.gmra.mrb[0].mxu0 %v235
      %v516 = vpop.f32.mrb[0].mxu0
      %v517 = vadd.f32 %v231, %v516
      %v518 = vpop.f32.mrb[0].mxu0
      %v519 = vadd.f32 %v231, %v518
      %520 = vdwg.mxu0
      %v529 = vcombine.low %v304, %v306
      %v530 = vcombine.low %v375, %v377
      %v531 = vcombine.low %v446, %v448
      %v532 = vcombine.low %v517, %v519
      %537 = vst [vmem:[%s208] sm:$0xff] %v529
      %538 = vst [vmem:[%s208 + $0x8] sm:$0xff] %v530
      %539 = vst [vmem:[%s208 + $0x10] sm:$0xff] %v531
      %540 = vst [vmem:[%s208 + $0x18] sm:$0xff] %v532
      %s541 = smul.u32 8, %s19
      %p542 = scmp.lt.s32.totalorder %s18, 1
      %s543 = scalar_select %p542, %s18, 1
      %p544 = scmp.lt.s32.totalorder %s541, 7
      %s545 = scalar_select %p544, %s541, 7
      %s546 = smul.addr %s543, 8
      %s547 = sadd.s32 %s545, %s546
      %s548 = smul.addr %s547, 4
      %s549 = scalar_lea.vmem %s3, %s548
      // Predicated region
      $region33: #{esa_forward.8} parent=31 // pred_check
        %p550 = pneg %p116
      $region34: #{esa_forward.8} parent=31 // pred_check_branch
        %552 = sbr.rel (%p550) target = $region36
      $region35: #{esa_forward.8} parent=31 // pred_region
        %s553 = smul.u32 8, %s19
      $region36: #{esa_forward.8} parent=31 // pred_fallthru
        _
    $region32: #{esa_forward.8} parent=5 // pred_fallthru
      _
    %p554 = scmp.le.s32.totalorder 2, %s9
    // Predicated region
    $region37: #{esa_forward.8} parent=5 // pred_check
      %p555 = pneg %p554
    $region38: #{esa_forward.8} parent=5 // pred_check_branch
      %557 = sbr.rel (%p555) target = $region40
    $region39: #{esa_forward.8} parent=5 // pred_region
      %s558 = ssub.s32 %s9, 2
      // Predicated region
      $region41: #{esa_forward.8} parent=39 // pred_check
        %p559 = pneg %p122
      $region42: #{esa_forward.8} parent=39 // pred_check_branch
        %561 = sbr.rel (%p559) target = $region44
      $region43: #{esa_forward.8} parent=39 // pred_region
        %s562 = smul.u32 8, %s21
        %p563 = scmp.lt.s32.totalorder %s20, 1
        %s564 = scalar_select %p563, %s20, 1
        %p565 = scmp.lt.s32.totalorder %s562, 7
        %s566 = scalar_select %p565, %s562, 7
        %s567 = smul.addr %s564, 8
        %s568 = sadd.s32 %s566, %s567
        %s569 = smul.addr %s568, 4
        %s570 = scalar_lea.vmem %s3, %s569
      $region44: #{esa_forward.8} parent=39 // pred_fallthru
        _
    $region40: #{esa_forward.8} parent=5 // pred_fallthru
      _
  $region6: #{esa_forward.8} parent=0 // loop_footer
    %s13 = sadd.s32 1, %s9
  $region7: #{esa_forward.8} parent=0 // loop_footer_branch
    %8 = sbr.rel target = $region3
  $region8: #{esa_forward.8} parent=0 // loop_exit
    _

// kernel: esa_forward.9
$region0: #{esa_forward.9}
  #allocation0 [shape = 'u32[]', space=smem, size = 0x4, offset = 0x4, fixed_abs, tag = 'smem constant byte address 0x4 - core index']
  #allocation1 [shape = 'u32[144,128]{1,0:T(1,128)}', space=vmem, size = 0x12000, scoped, tag = 'internal scratch']
  %s0 = inlined_call_operand.vmem [shape: f32[4,36], index: 0, kind: input, shape index: {}]
  %s1 = inlined_call_operand.vmem [shape: f32[4,1], index: 1, kind: input, shape index: {}]
  %s2 = inlined_call_operand.vmem [shape: f32[2,36,225], index: 2, kind: input, shape index: {}]
  %s3 = inlined_call_operand.vmem [shape: f32[2,4,225], index: 3, kind: output, shape index: {}]
  %s4 = sld [smem:[#allocation0]]
  $region45: #{esa_forward.9} parent=0
    _
  %s6 = ssub.s32 1, %s4
  %s7 = scalar_select 0, %s6, %s4
  loop: start=0, step=1, limit=4
  $region2: #{esa_forward.9} parent=0 // loop_pre_header
    _
  $region3: #{esa_forward.9} parent=0 // loop_header
    %s9 = sphi 0, %s13
    %p10 = scmp.ge.s32.totalorder %s9, 4
    %s16 = sphi 0, %s28
    %s17 = sphi 0, %s24
    %s18 = sphi 0, %s16
    %s19 = sphi 0, %s17
    %s20 = sphi 0, %s18
    %s21 = sphi 0, %s19
    %s29 = sphi 0, %s29
    %s31 = sphi 0, %s29
    %s32 = sphi 0, %s31
    %s46 = sphi 0, %s32
    %s50 = sphi 0, %s50
    %s52 = sphi 0, %s50
    %s53 = sphi 0, %s52
    %s67 = sphi 0, %s53
    %s75 = sphi 0, %s77
    %s78 = sphi 0, %s75
    %s79 = sphi 0, %s78
    %s95 = sphi 0, %s79
    %s103 = sphi 0, %s105
    %s106 = sphi 0, %s103
    %s107 = sphi 0, %s106
    %s123 = sphi 0, %s107
  $region4: #{esa_forward.9} parent=0 // loop_header_branch
    %12 = sbr.rel (%p10) target = $region8
  $region5: #{esa_forward.9} parent=0 // loop_body
    %s14 = ssub.s32 %s9, 1
    %s15 = ssub.s32 %s9, 2
    %s22 = sadd.s32 1, %s17
    %p23 = scmp.ge.s32.totalorder %s22, 1
    %s24 = scalar_select %p23, 0, %s22
    %s25 = sadd.s32 1, %s16
    %s26 = scalar_select %p23, %s25, %s16
    %p27 = scmp.ge.s32.totalorder %s26, 2
    %s28 = scalar_select %p27, 0, %s26
    %s30 = sadd.s32 %s29, 1
    %p33 = scmp.eq.s32.totalorder %s9, 1
    %p34 = scmp.ne.s32.totalorder %s29, %s31
    %p35 = scmp.eq.s32.totalorder %s9, 0
    %p36 = por %p34, %p35
    %p37 = scmp.ne.s32.totalorder %s29, %s31
    %p38 = scmp.eq.s32.totalorder %s14, 1
    %p39 = por %p37, %p38
    %p40 = scmp.ne.s32.totalorder %s31, %s32
    %p41 = scmp.eq.s32.totalorder %s14, 0
    %p42 = por %p40, %p41
    %p43 = scmp.ne.s32.totalorder %s31, %s32
    %p44 = scmp.eq.s32.totalorder %s15, 1
    %p45 = por %p43, %p44
    %p47 = scmp.ne.s32.totalorder %s32, %s46
    %p48 = scmp.eq.s32.totalorder %s15, 0
    %p49 = por %p47, %p48
    %s51 = sadd.s32 %s50, 1
    %p54 = scmp.eq.s32.totalorder %s9, 1
    %p55 = scmp.ne.s32.totalorder %s50, %s52
    %p56 = scmp.eq.s32.totalorder %s9, 0
    %p57 = por %p55, %p56
    %p58 = scmp.ne.s32.totalorder %s50, %s52
    %p59 = scmp.eq.s32.totalorder %s14, 1
    %p60 = por %p58, %p59
    %p61 = scmp.ne.s32.totalorder %s52, %s53
    %p62 = scmp.eq.s32.totalorder %s14, 0
    %p63 = por %p61, %p62
    %p64 = scmp.ne.s32.totalorder %s52, %s53
    %p65 = scmp.eq.s32.totalorder %s15, 1
    %p66 = por %p64, %p65
    %p68 = scmp.ne.s32.totalorder %s53, %s67
    %p69 = scmp.eq.s32.totalorder %s15, 0
    %p70 = por %p68, %p69
    %s71 = ssub.s32 %s16, %s28
    %s72 = ssub.s32 %s17, %s24
    %s73 = sor.u32 %s71, %s72
    %p74 = scmp.eq.s32.totalorder %s73, 0
    %s76 = sadd.s32 %s75, 1
    %s77 = scalar_select %p74, %s75, %s76
    %p80 = pneg %p74
    %p81 = scmp.eq.s32.totalorder %s9, 1
    %p82 = por %p80, %p81
    %p83 = scmp.ne.s32.totalorder %s75, %s78
    %p84 = scmp.eq.s32.totalorder %s9, 0
    %p85 = por %p83, %p84
    %p86 = scmp.ne.s32.totalorder %s75, %s78
    %p87 = scmp.eq.s32.totalorder %s14, 1
    %p88 = por %p86, %p87
    %p89 = scmp.ne.s32.totalorder %s78, %s79
    %p90 = scmp.eq.s32.totalorder %s14, 0
    %p91 = por %p89, %p90
    %p92 = scmp.ne.s32.totalorder %s78, %s79
    %p93 = scmp.eq.s32.totalorder %s15, 1
    %p94 = por %p92, %p93
    %p96 = scmp.ne.s32.totalorder %s79, %s95
    %p97 = scmp.eq.s32.totalorder %s15, 0
    %p98 = por %p96, %p97
    %s99 = ssub.s32 %s16, %s28
    %s100 = ssub.s32 %s17, %s24
    %s101 = sor.u32 %s99, %s100
    %p102 = scmp.eq.s32.totalorder %s101, 0
    %s104 = sadd.s32 %s103, 1
    %s105 = scalar_select %p102, %s103, %s104
    %p108 = pneg %p102
    %p109 = scmp.eq.s32.totalorder %s9, 1
    %p110 = por %p108, %p109
    %p111 = scmp.ne.s32.totalorder %s103, %s106
    %p112 = scmp.eq.s32.totalorder %s9, 0
    %p113 = por %p111, %p112
    %p114 = scmp.ne.s32.totalorder %s103, %s106
    %p115 = scmp.eq.s32.totalorder %s14, 1
    %p116 = por %p114, %p115
    %p117 = scmp.ne.s32.totalorder %s106, %s107
    %p118 = scmp.eq.s32.totalorder %s14, 0
    %p119 = por %p117, %p118
    %p120 = scmp.ne.s32.totalorder %s106, %s107
    %p121 = scmp.eq.s32.totalorder %s15, 1
    %p122 = por %p120, %p121
    %p124 = scmp.ne.s32.totalorder %s107, %s123
    %p125 = scmp.eq.s32.totalorder %s15, 0
    %p126 = por %p124, %p125
    %p127 = scmp.le.s32.totalorder 1, %s9
    %p128 = scmp.lt.s32.totalorder %s9, 3
    %p129 = pnand %p127, %p128
    %p130 = pneg %p129
    // Predicated region
    $region9: #{esa_forward.9} parent=5 // pred_check
      _
    $region10: #{esa_forward.9} parent=5 // pred_check_branch
      %132 = sbr.rel (%p129) target = $region12
    $region11: #{esa_forward.9} parent=5 // pred_region
      %s133 = ssub.s32 %s9, 1
      // Predicated region
      $region13: #{esa_forward.9} parent=11 // pred_check
        %p134 = pneg %p42
      $region14: #{esa_forward.9} parent=11 // pred_check_branch
        %136 = sbr.rel (%p134) target = $region16
      $region15: #{esa_forward.9} parent=11 // pred_region
        _
      $region16: #{esa_forward.9} parent=11 // pred_fallthru
        _
      // Predicated region
      $region17: #{esa_forward.9} parent=11 // pred_check
        %p137 = pneg %p63
      $region18: #{esa_forward.9} parent=11 // pred_check_branch
        %139 = sbr.rel (%p137) target = $region20
      $region19: #{esa_forward.9} parent=11 // pred_region
        _
      $region20: #{esa_forward.9} parent=11 // pred_fallthru
        _
    $region12: #{esa_forward.9} parent=5 // pred_fallthru
      _
    %p140 = scmp.lt.s32.totalorder %s9, 2
    // Predicated region
    $region21: #{esa_forward.9} parent=5 // pred_check
      %p141 = pneg %p140
    $region22: #{esa_forward.9} parent=5 // pred_check_branch
      %143 = sbr.rel (%p141) target = $region24
    $region23: #{esa_forward.9} parent=5 // pred_region
      // Predicated region
      $region25: #{esa_forward.9} parent=23 // pred_check
        %p144 = pneg %p85
      $region26: #{esa_forward.9} parent=23 // pred_check_branch
        %146 = sbr.rel (%p144) target = $region28
      $region27: #{esa_forward.9} parent=23 // pred_region
        %s147 = smul.u32 2, %s17
        %p148 = scmp.lt.s32.totalorder %s16, 1
        %s149 = scalar_select %p148, %s16, 1
        %p150 = scmp.lt.s32.totalorder %s147, 1
        %s151 = scalar_select %p150, %s147, 1
        %s152 = smul.addr %s149, 10
        %s153 = sadd.s32 %s151, %s152
        %s154 = smul.addr %s153, 8
        %s155 = scalar_lea.vmem %s2, %s154
        %s156 = smul.u32 2, %s17
      $region28: #{esa_forward.9} parent=23 // pred_fallthru
        _
    $region24: #{esa_forward.9} parent=5 // pred_fallthru
      _
    %p157 = scmp.le.s32.totalorder 1, %s9
    %p158 = scmp.lt.s32.totalorder %s9, 3
    %p159 = pnand %p157, %p158
    %p160 = pneg %p159
    // Predicated region
    $region29: #{esa_forward.9} parent=5 // pred_check
      _
    $region30: #{esa_forward.9} parent=5 // pred_check_branch
      %162 = sbr.rel (%p159) target = $region32
    $region31: #{esa_forward.9} parent=5 // pred_region
      %s163 = ssub.s32 %s9, 1
      %p164 = pneg %p42
      %p165 = pneg %p39
      %p166 = pneg %p63
      %p167 = pneg %p60
      %s168 = smul.u32 2, %s19
      %p169 = scmp.lt.s32.totalorder %s18, 1
      %s170 = scalar_select %p169, %s18, 1
      %p171 = scmp.lt.s32.totalorder %s168, 1
      %s172 = scalar_select %p171, %s168, 1
      %s173 = smul.addr %s170, 10
      %s174 = sadd.s32 %s172, %s173
      %s175 = smul.addr %s174, 8
      %s176 = scalar_lea.vmem %s2, %s175
      %p177 = pneg %p91
      %p178 = pneg %p88
      %p179 = pneg %p119
      %p180 = pneg %p116
      %s181 = smul.u32 2, %s19
      %p182 = scmp.lt.s32.totalorder %s18, 1
      %s183 = scalar_select %p182, %s18, 1
      %p184 = scmp.lt.s32.totalorder %s181, 1
      %s185 = scalar_select %p184, %s181, 1
      %s186 = smul.addr %s183, 2
      %s187 = sadd.s32 %s185, %s186
      %s188 = smul.addr %s187, 4
      %s189 = scalar_lea.vmem %s3, %s188
      %s190 = smul.u32 2, %s19
      %p191 = scmp.lt.s32.totalorder %s18, 1
      %s192 = scalar_select %p191, %s18, 1
      %p193 = scmp.lt.s32.totalorder %s190, 1
      %s194 = scalar_select %p193, %s190, 1
      %s195 = smul.addr %s192, 10
      %s196 = sadd.s32 %s194, %s195
      %s197 = smul.addr %s196, 8
      %s198 = scalar_lea.vmem %s2, %s197
      %s199 = smul.u32 2, %s19
      %s200 = smul.u32 2, %s19
      %p201 = scmp.lt.s32.totalorder %s18, 1
      %s202 = scalar_select %p201, %s18, 1
      %p203 = scmp.lt.s32.totalorder %s200, 1
      %s204 = scalar_select %p203, %s200, 1
      %s205 = smul.addr %s202, 2
      %s206 = sadd.s32 %s204, %s205
      %s207 = smul.addr %s206, 4
      %s208 = scalar_lea.vmem %s3, %s207
      %s209 = smul.u32 2, %s19
      %v210 = vld [vmem:[%s0] sm:$0xf]
      %v211 = vld [vmem:[%s198] sm:$0xff]
      %v212 = vld [vmem:[%s198 + $0x8] sm:$0xff]
      %v213 = vld [vmem:[%s198 + $0x10] sm:$0xff]
      %v214 = vld [vmem:[%s198 + $0x18] sm:$0xff]
      %v215 = vld [vmem:[%s198 + $0x20] sm:$0xff]
      %v216 = vld [vmem:[%s198 + $0x28] sm:$0xff]
      %v217 = vld [vmem:[%s198 + $0x30] sm:$0xff]
      %v218 = vld [vmem:[%s198 + $0x38] sm:$0xff]
      %v219 = vld [vmem:[%s198 + $0x40] sm:$0xf]
      %v220 = vld [vmem:[%s198 + $0x48] sm:$0xf]
      %v221 = vld [vmem:[%s1] sm:$0xf]
      %223 = vset.pattern.permute.xlu0 0
      %224 = vperm.xlu0 %223, %v221
      %v225 = vpop.permute.xlu0 %224
      %vm227 = vcmask 293888
      %v229 = vsel %vm227, %v210, 0
      %vm231 = vcmask 1043456
      %v233 = vsel %vm231, %v219, 0
      %v236 = vsel %vm231, %v220, 0
      %238 = vmatprep.subr.mxu0 %v212
      %239 = vmatpush1.msra.mxu0 %v211
      %240 = vmatprep.subr.mxu0 %v214
      %241 = vmatpush1.msra.mxu0 %v213
      %242 = vmatprep.subr.mxu0 %v216
      %243 = vmatpush1.msra.mxu0 %v215
      %244 = vmatprep.subr.mxu0 %v218
      %245 = vmatpush1.msra.mxu0 %v217
      %246 = vmatprep.subr.mxu0 %v236
      %247 = vmatpush1.msra.mxu0 %v233
      %248 = vmatprep.subr.mxu0 0.0
      %249 = vmatpush1.msra.mxu0 0.0
      %250 = vmatprep.subr.mxu0 0.0
      %251 = vmatpush1.msra.mxu0 0.0
      %252 = vmatprep.subr.mxu0 0.0
      %253 = vmatpush1.msra.mxu0 0.0
      %254 = vmatprep.subr.mxu0 0.0
      %255 = vmatpush1.msra.mxu0 0.0
      %256 = vmatprep.subr.mxu0 0.0
      %257 = vmatpush1.msra.mxu0 0.0
      %258 = vmatprep.subr.mxu0 0.0
      %259 = vmatpush1.msra.mxu0 0.0
      %260 = vmatprep.subr.mxu0 0.0
      %261 = vmatpush1.msra.mxu0 0.0
      %262 = vmatprep.subr.mxu0 0.0
      %263 = vmatpush1.msra.mxu0 0.0
      %264 = vmatprep.subr.mxu0 0.0
      %265 = vmatpush1.msra.mxu0 0.0
      %266 = vmatprep.subr.mxu0 0.0
      %267 = vmatpush1.msra.mxu0 0.0
      %268 = vmatprep.subr.mxu0 0.0
      %269 = vmatpush1.msra.mxu0 0.0
      %270 = vmatprep.subr.mxu0 0.0
      %271 = vmatpush1.msra.mxu0 0.0
      %272 = vmatprep.subr.mxu0 0.0
      %273 = vmatpush1.msra.mxu0 0.0
      %274 = vmatprep.subr.mxu0 0.0
      %275 = vmatpush1.msra.mxu0 0.0
      %276 = vmatprep.subr.mxu0 0.0
      %277 = vmatpush1.msra.mxu0 0.0
      %278 = vmatprep.subr.mxu0 0.0
      %279 = vmatpush1.msra.mxu0 0.0
      %280 = vmatprep.subr.mxu0 0.0
      %281 = vmatpush1.msra.mxu0 0.0
      %282 = vmatprep.subr.mxu0 0.0
      %283 = vmatpush1.msra.mxu0 0.0
      %284 = vmatprep.subr.mxu0 0.0
      %285 = vmatpush1.msra.mxu0 0.0
      %286 = vmatprep.subr.mxu0 0.0
      %287 = vmatpush1.msra.mxu0 0.0
      %288 = vmatprep.subr.mxu0 0.0
      %289 = vmatpush1.msra.mxu0 0.0
      %290 = vmatprep.subr.mxu0 0.0
      %291 = vmatpush1.msra.mxu0 0.0
      %292 = vmatprep.subr.mxu0 0.0
      %293 = vmatpush1.msra.mxu0 0.0
      %294 = vmatprep.subr.mxu0 0.0
      %295 = vmatpush1.msra.mxu0 0.0
      %296 = vmatprep.subr.mxu0 0.0
      %297 = vmatpush1.msra.mxu0 0.0
      %298 = vmatprep.subr.mxu0 0.0
      %299 = vmatpush1.msra.mxu0 0.0
      %300 = vmatprep.subr.mxu0 0.0
      %301 = vmatpush1.msra.mxu0 0.0
      %302 = vmatprep.mubr.f32.mxu0 0.0
      %303 = vmatmul.mubr.f32.gmra.mrb[0].mxu0 %v229
      %v304 = vpop.f32.mrb[0].mxu0
      %v305 = vadd.f32 %v225, %v304
      %v306 = vpop.f32.mrb[0].mxu0
      %v307 = vadd.f32 %v225, %v306
      %308 = vdwg.mxu0
      %v311 = vcombine.low %v305, %v307
      %vm313 = vcmask 793604
      %vm314 = vmor %vm313, %vm231
      %315 = vst.msk [vmem:[%s208] sm:$0xff] %vm314, %v311
      %s316 = smul.u32 2, %s19
      %p317 = scmp.lt.s32.totalorder %s18, 1
      %s318 = scalar_select %p317, %s18, 1
      %p319 = scmp.lt.s32.totalorder %s316, 1
      %s320 = scalar_select %p319, %s316, 1
      %s321 = smul.addr %s318, 2
      %s322 = sadd.s32 %s320, %s321
      %s323 = smul.addr %s322, 4
      %s324 = scalar_lea.vmem %s3, %s323
      // Predicated region
      $region33: #{esa_forward.9} parent=31 // pred_check
        %p325 = pneg %p116
      $region34: #{esa_forward.9} parent=31 // pred_check_branch
        %327 = sbr.rel (%p325) target = $region36
      $region35: #{esa_forward.9} parent=31 // pred_region
        %s328 = smul.u32 2, %s19
      $region36: #{esa_forward.9} parent=31 // pred_fallthru
        _
    $region32: #{esa_forward.9} parent=5 // pred_fallthru
      _
    %p329 = scmp.le.s32.totalorder 2, %s9
    // Predicated region
    $region37: #{esa_forward.9} parent=5 // pred_check
      %p330 = pneg %p329
    $region38: #{esa_forward.9} parent=5 // pred_check_branch
      %332 = sbr.rel (%p330) target = $region40
    $region39: #{esa_forward.9} parent=5 // pred_region
      %s333 = ssub.s32 %s9, 2
      // Predicated region
      $region41: #{esa_forward.9} parent=39 // pred_check
        %p334 = pneg %p122
      $region42: #{esa_forward.9} parent=39 // pred_check_branch
        %336 = sbr.rel (%p334) target = $region44
      $region43: #{esa_forward.9} parent=39 // pred_region
        %s337 = smul.u32 2, %s21
        %p338 = scmp.lt.s32.totalorder %s20, 1
        %s339 = scalar_select %p338, %s20, 1
        %p340 = scmp.lt.s32.totalorder %s337, 1
        %s341 = scalar_select %p340, %s337, 1
        %s342 = smul.addr %s339, 2
        %s343 = sadd.s32 %s341, %s342
        %s344 = smul.addr %s343, 4
        %s345 = scalar_lea.vmem %s3, %s344
      $region44: #{esa_forward.9} parent=39 // pred_fallthru
        _
    $region40: #{esa_forward.9} parent=5 // pred_fallthru
      _
  $region6: #{esa_forward.9} parent=0 // loop_footer
    %s13 = sadd.s32 1, %s9
  $region7: #{esa_forward.9} parent=0 // loop_footer_branch
    %8 = sbr.rel target = $region3
  $region8: #{esa_forward.9} parent=0 // loop_exit
    _

// kernel: esa_forward.10
$region0: #{esa_forward.10}
  #allocation0 [shape = 'u32[]', space=smem, size = 0x4, offset = 0x4, fixed_abs, tag = 'smem constant byte address 0x4 - core index']
  #allocation1 [shape = 'u32[144,128]{1,0:T(1,128)}', space=vmem, size = 0x12000, scoped, tag = 'internal scratch']
  %s0 = inlined_call_operand.vmem [shape: f32[2,36,5,5], index: 0, kind: input, shape index: {}]
  %s1 = inlined_call_operand.vmem [shape: f32[2,4,3,3], index: 1, kind: output, shape index: {}]
  %s2 = sld [smem:[#allocation0]]
  $region37: #{esa_forward.10} parent=0
    _
  %s4 = ssub.s32 1, %s2
  %s5 = scalar_select 0, %s4, %s2
  loop: start=0, step=1, limit=4
  $region2: #{esa_forward.10} parent=0 // loop_pre_header
    _
  $region3: #{esa_forward.10} parent=0 // loop_header
    %s7 = sphi 0, %s11
    %p8 = scmp.ge.s32.totalorder %s7, 4
    %s17 = sphi 0, %s19
    %s20 = sphi 0, %s17
    %s21 = sphi 0, %s20
    %s37 = sphi 0, %s21
    %s43 = sphi 0, %s45
    %s46 = sphi 0, %s43
    %s47 = sphi 0, %s46
    %s63 = sphi 0, %s47
  $region4: #{esa_forward.10} parent=0 // loop_header_branch
    %10 = sbr.rel (%p8) target = $region8
  $region5: #{esa_forward.10} parent=0 // loop_body
    %s12 = ssub.s32 %s7, 1
    %s13 = ssub.s32 %s7, 2
    %s14 = sadd.s32 %s7, 1
    %s15 = ssub.s32 %s7, %s14
    %p16 = scmp.eq.s32.totalorder %s15, 0
    %s18 = sadd.s32 %s17, 1
    %s19 = scalar_select %p16, %s17, %s18
    %p22 = pneg %p16
    %p23 = scmp.eq.s32.totalorder %s7, 1
    %p24 = por %p22, %p23
    %p25 = scmp.ne.s32.totalorder %s17, %s20
    %p26 = scmp.eq.s32.totalorder %s7, 0
    %p27 = por %p25, %p26
    %p28 = scmp.ne.s32.totalorder %s17, %s20
    %p29 = scmp.eq.s32.totalorder %s12, 1
    %p30 = por %p28, %p29
    %p31 = scmp.ne.s32.totalorder %s20, %s21
    %p32 = scmp.eq.s32.totalorder %s12, 0
    %p33 = por %p31, %p32
    %p34 = scmp.ne.s32.totalorder %s20, %s21
    %p35 = scmp.eq.s32.totalorder %s13, 1
    %p36 = por %p34, %p35
    %p38 = scmp.ne.s32.totalorder %s21, %s37
    %p39 = scmp.eq.s32.totalorder %s13, 0
    %p40 = por %p38, %p39
    %s41 = ssub.s32 %s7, %s14
    %p42 = scmp.eq.s32.totalorder %s41, 0
    %s44 = sadd.s32 %s43, 1
    %s45 = scalar_select %p42, %s43, %s44
    %p48 = pneg %p42
    %p49 = scmp.eq.s32.totalorder %s7, 1
    %p50 = por %p48, %p49
    %p51 = scmp.ne.s32.totalorder %s43, %s46
    %p52 = scmp.eq.s32.totalorder %s7, 0
    %p53 = por %p51, %p52
    %p54 = scmp.ne.s32.totalorder %s43, %s46
    %p55 = scmp.eq.s32.totalorder %s12, 1
    %p56 = por %p54, %p55
    %p57 = scmp.ne.s32.totalorder %s46, %s47
    %p58 = scmp.eq.s32.totalorder %s12, 0
    %p59 = por %p57, %p58
    %p60 = scmp.ne.s32.totalorder %s46, %s47
    %p61 = scmp.eq.s32.totalorder %s13, 1
    %p62 = por %p60, %p61
    %p64 = scmp.ne.s32.totalorder %s47, %s63
    %p65 = scmp.eq.s32.totalorder %s13, 0
    %p66 = por %p64, %p65
    %p67 = scmp.le.s32.totalorder 1, %s7
    %p68 = scmp.lt.s32.totalorder %s7, 3
    %p69 = pnand %p67, %p68
    %p70 = pneg %p69
    // Predicated region
    $region9: #{esa_forward.10} parent=5 // pred_check
      _
    $region10: #{esa_forward.10} parent=5 // pred_check_branch
      %72 = sbr.rel (%p69) target = $region12
    $region11: #{esa_forward.10} parent=5 // pred_region
      %s73 = ssub.s32 %s7, 1
    $region12: #{esa_forward.10} parent=5 // pred_fallthru
      _
    %p74 = scmp.lt.s32.totalorder %s7, 2
    // Predicated region
    $region13: #{esa_forward.10} parent=5 // pred_check
      %p75 = pneg %p74
    $region14: #{esa_forward.10} parent=5 // pred_check_branch
      %77 = sbr.rel (%p75) target = $region16
    $region15: #{esa_forward.10} parent=5 // pred_region
      // Predicated region
      $region17: #{esa_forward.10} parent=15 // pred_check
        %p78 = pneg %p27
      $region18: #{esa_forward.10} parent=15 // pred_check_branch
        %80 = sbr.rel (%p78) target = $region20
      $region19: #{esa_forward.10} parent=15 // pred_region
        %p81 = scmp.lt.s32.totalorder %s7, 1
        %s82 = scalar_select %p81, %s7, 1
        %s83 = smul.addr %s82, 36
        %s84 = smul.addr %s83, 8
        %s85 = scalar_lea.vmem %s0, %s84
      $region20: #{esa_forward.10} parent=15 // pred_fallthru
        _
    $region16: #{esa_forward.10} parent=5 // pred_fallthru
      _
    %p86 = scmp.le.s32.totalorder 1, %s7
    %p87 = scmp.lt.s32.totalorder %s7, 3
    %p88 = pnand %p86, %p87
    %p89 = pneg %p88
    // Predicated region
    $region21: #{esa_forward.10} parent=5 // pred_check
      _
    $region22: #{esa_forward.10} parent=5 // pred_check_branch
      %91 = sbr.rel (%p88) target = $region24
    $region23: #{esa_forward.10} parent=5 // pred_region
      %s92 = ssub.s32 %s7, 1
      %p93 = scmp.lt.s32.totalorder %s12, 1
      %s94 = scalar_select %p93, %s12, 1
      %s95 = smul.addr %s94, 36
      %s96 = smul.addr %s95, 8
      %s97 = scalar_lea.vmem %s0, %s96
      %p98 = pneg %p33
      %p99 = pneg %p30
      %p100 = pneg %p59
      %p101 = pneg %p56
      %p102 = scmp.lt.s32.totalorder %s12, 1
      %s103 = scalar_select %p102, %s12, 1
      %s104 = smul.addr %s103, 4
      %s105 = smul.addr %s104, 4
      %s106 = scalar_lea.vmem %s1, %s105
      %p107 = scmp.lt.s32.totalorder %s12, 1
      %s108 = scalar_select %p107, %s12, 1
      %s109 = smul.addr %s108, 36
      %s110 = smul.addr %s109, 8
      %s111 = scalar_lea.vmem %s0, %s110
      %p112 = scmp.lt.s32.totalorder %s12, 1
      %s113 = scalar_select %p112, %s12, 1
      %s114 = smul.addr %s113, 4
      %s115 = smul.addr %s114, 4
      %s116 = scalar_lea.vmem %s1, %s115
      %v117 = vld [vmem:[%s111] sm:$0x1f]
      %v118 = vld [vmem:[%s111 + $0x8] sm:$0x1f]
      %v119 = vld [vmem:[%s111 + $0x10] sm:$0x1f]
      %v120 = vld [vmem:[%s111 + $0x18] sm:$0x1f]
      %v121 = vld [vmem:[%s111 + $0x20] sm:$0x1f]
      %v122 = vld [vmem:[%s111 + $0x28] sm:$0x1f]
      %v123 = vld [vmem:[%s111 + $0x30] sm:$0x1f]
      %v124 = vld [vmem:[%s111 + $0x38] sm:$0x1f]
      %v125 = vld [vmem:[%s111 + $0x40] sm:$0x1f]
      %v126 = vld [vmem:[%s111 + $0x48] sm:$0x1f]
      %v127 = vld [vmem:[%s111 + $0x50] sm:$0x1f]
      %v128 = vld [vmem:[%s111 + $0x58] sm:$0x1f]
      %v129 = vld [vmem:[%s111 + $0x60] sm:$0x1f]
      %v130 = vld [vmem:[%s111 + $0x68] sm:$0x1f]
      %v131 = vld [vmem:[%s111 + $0x70] sm:$0x1f]
      %v132 = vld [vmem:[%s111 + $0x78] sm:$0x1f]
      %v133 = vld [vmem:[%s111 + $0x80] sm:$0x1f]
      %v134 = vld [vmem:[%s111 + $0x88] sm:$0x1f]
      %v135 = vld [vmem:[%s111 + $0x90] sm:$0x1f]
      %v136 = vld [vmem:[%s111 + $0x98] sm:$0x1f]
      %v137 = vld [vmem:[%s111 + $0xa0] sm:$0x1f]
      %v138 = vld [vmem:[%s111 + $0xa8] sm:$0x1f]
      %v139 = vld [vmem:[%s111 + $0xb0] sm:$0x1f]
      %v140 = vld [vmem:[%s111 + $0xb8] sm:$0x1f]
      %v141 = vld [vmem:[%s111 + $0xc0] sm:$0x1f]
      %v142 = vld [vmem:[%s111 + $0xc8] sm:$0x1f]
      %v143 = vld [vmem:[%s111 + $0xd0] sm:$0x1f]
      %v144 = vld [vmem:[%s111 + $0xd8] sm:$0x1f]
      %v145 = vld [vmem:[%s111 + $0xe0] sm:$0x1f]
      %v146 = vld [vmem:[%s111 + $0xe8] sm:$0x1f]
      %v147 = vld [vmem:[%s111 + $0xf0] sm:$0x1f]
      %v148 = vld [vmem:[%s111 + $0xf8] sm:$0x1f]
      %v149 = vld [vmem:[%s111 + $0x100] sm:$0x1f]
      %v150 = vld [vmem:[%s111 + $0x108] sm:$0x1f]
      %v151 = vld [vmem:[%s111 + $0x110] sm:$0x1f]
      %v152 = vld [vmem:[%s111 + $0x118] sm:$0x1f]
      %v153 = vmax.f32 %v117, %v121
      %v154 = vmax.f32 %v118, %v122
      %v155 = vmax.f32 %v119, %v123
      %v156 = vmax.f32 %v120, %v124
      %v157 = vmax.f32 %v153, %v125
      %v158 = vmax.f32 %v154, %v126
      %v159 = vmax.f32 %v155, %v127
      %v160 = vmax.f32 %v156, %v128
      %165 = vrot.lane.b32.xlu0 %v117, 127
      %v166 = vpop.permute.xlu0 %165
      %167 = vrot.lane.b32.xlu0 %v118, 127
      %v168 = vpop.permute.xlu0 %167
      %169 = vrot.lane.b32.xlu0 %v119, 127
      %v170 = vpop.permute.xlu0 %169
      %171 = vrot.lane.b32.xlu0 %v120, 127
      %v172 = vpop.permute.xlu0 %171
      %v177 = vmax.f32 %v157, %v166
      %v178 = vmax.f32 %v158, %v168
      %v179 = vmax.f32 %v159, %v170
      %v180 = vmax.f32 %v160, %v172
      %185 = vrot.lane.b32.xlu0 %v121, 127
      %v186 = vpop.permute.xlu0 %185
      %187 = vrot.lane.b32.xlu0 %v122, 127
      %v188 = vpop.permute.xlu0 %187
      %189 = vrot.lane.b32.xlu0 %v123, 127
      %v190 = vpop.permute.xlu0 %189
      %191 = vrot.lane.b32.xlu0 %v124, 127
      %v192 = vpop.permute.xlu0 %191
      %v197 = vmax.f32 %v177, %v186
      %v198 = vmax.f32 %v178, %v188
      %v199 = vmax.f32 %v179, %v190
      %v200 = vmax.f32 %v180, %v192
      %205 = vrot.lane.b32.xlu0 %v125, 127
      %v206 = vpop.permute.xlu0 %205
      %207 = vrot.lane.b32.xlu0 %v126, 127
      %v208 = vpop.permute.xlu0 %207
      %209 = vrot.lane.b32.xlu0 %v127, 127
      %v210 = vpop.permute.xlu0 %209
      %211 = vrot.lane.b32.xlu0 %v128, 127
      %v212 = vpop.permute.xlu0 %211
      %v217 = vmax.f32 %v197, %v206
      %v218 = vmax.f32 %v198, %v208
      %v219 = vmax.f32 %v199, %v210
      %v220 = vmax.f32 %v200, %v212
      %221 = vrot.lane.b32.xlu0 %v117, 126
      %v222 = vpop.permute.xlu0 %221
      %223 = vrot.lane.b32.xlu0 %v118, 126
      %v224 = vpop.permute.xlu0 %223
      %225 = vrot.lane.b32.xlu0 %v119, 126
      %v226 = vpop.permute.xlu0 %225
      %227 = vrot.lane.b32.xlu0 %v120, 126
      %v228 = vpop.permute.xlu0 %227
      %v233 = vmax.f32 %v217, %v222
      %v234 = vmax.f32 %v218, %v224
      %v235 = vmax.f32 %v219, %v226
      %v236 = vmax.f32 %v220, %v228
      %v237 = vmax.f32 %v233, %v129
      %v238 = vmax.f32 %v234, %v130
      %v239 = vmax.f32 %v235, %v131
      %v240 = vmax.f32 %v236, %v132
      %v241 = vmax.f32 %v237, %v133
      %v242 = vmax.f32 %v238, %v134
      %v243 = vmax.f32 %v239, %v135
      %v244 = vmax.f32 %v240, %v136
      %v245 = vmax.f32 %v241, %v137
      %v246 = vmax.f32 %v242, %v138
      %v247 = vmax.f32 %v243, %v139
      %v248 = vmax.f32 %v244, %v140
      %253 = vrot.lane.b32.xlu0 %v129, 127
      %v254 = vpop.permute.xlu0 %253
      %255 = vrot.lane.b32.xlu0 %v130, 127
      %v256 = vpop.permute.xlu0 %255
      %257 = vrot.lane.b32.xlu0 %v131, 127
      %v258 = vpop.permute.xlu0 %257
      %259 = vrot.lane.b32.xlu0 %v132, 127
      %v260 = vpop.permute.xlu0 %259
      %v265 = vmax.f32 %v245, %v254
      %v266 = vmax.f32 %v246, %v256
      %v267 = vmax.f32 %v247, %v258
      %v268 = vmax.f32 %v248, %v260
      %273 = vrot.lane.b32.xlu0 %v133, 127
      %v274 = vpop.permute.xlu0 %273
      %275 = vrot.lane.b32.xlu0 %v134, 127
      %v276 = vpop.permute.xlu0 %275
      %277 = vrot.lane.b32.xlu0 %v135, 127
      %v278 = vpop.permute.xlu0 %277
      %279 = vrot.lane.b32.xlu0 %v136, 127
      %v280 = vpop.permute.xlu0 %279
      %v285 = vmax.f32 %v265, %v274
      %v286 = vmax.f32 %v266, %v276
      %v287 = vmax.f32 %v267, %v278
      %v288 = vmax.f32 %v268, %v280
      %293 = vrot.lane.b32.xlu0 %v137, 127
      %v294 = vpop.permute.xlu0 %293
      %295 = vrot.lane.b32.xlu0 %v138, 127
      %v296 = vpop.permute.xlu0 %295
      %297 = vrot.lane.b32.xlu0 %v139, 127
      %v298 = vpop.permute.xlu0 %297
      %299 = vrot.lane.b32.xlu0 %v140, 127
      %v300 = vpop.permute.xlu0 %299
      %v305 = vmax.f32 %v285, %v294
      %v306 = vmax.f32 %v286, %v296
      %v307 = vmax.f32 %v287, %v298
      %v308 = vmax.f32 %v288, %v300
      %309 = vrot.lane.b32.xlu0 %v129, 126
      %v310 = vpop.permute.xlu0 %309
      %311 = vrot.lane.b32.xlu0 %v130, 126
      %v312 = vpop.permute.xlu0 %311
      %313 = vrot.lane.b32.xlu0 %v131, 126
      %v314 = vpop.permute.xlu0 %313
      %315 = vrot.lane.b32.xlu0 %v132, 126
      %v316 = vpop.permute.xlu0 %315
      %v321 = vmax.f32 %v305, %v310
      %v322 = vmax.f32 %v306, %v312
      %v323 = vmax.f32 %v307, %v314
      %v324 = vmax.f32 %v308, %v316
      %v325 = vmax.f32 %v321, %v141
      %v326 = vmax.f32 %v322, %v142
      %v327 = vmax.f32 %v323, %v143
      %v328 = vmax.f32 %v324, %v144
      %v329 = vmax.f32 %v325, %v145
      %v330 = vmax.f32 %v326, %v146
      %v331 = vmax.f32 %v327, %v147
      %v332 = vmax.f32 %v328, %v148
      %v333 = vmax.f32 %v329, %v149
      %v334 = vmax.f32 %v330, %v150
      %v335 = vmax.f32 %v331, %v151
      %v336 = vmax.f32 %v332, %v152
      %341 = vrot.lane.b32.xlu0 %v141, 127
      %v342 = vpop.permute.xlu0 %341
      %343 = vrot.lane.b32.xlu0 %v142, 127
      %v344 = vpop.permute.xlu0 %343
      %345 = vrot.lane.b32.xlu0 %v143, 127
      %v346 = vpop.permute.xlu0 %345
      %347 = vrot.lane.b32.xlu0 %v144, 127
      %v348 = vpop.permute.xlu0 %347
      %v353 = vmax.f32 %v333, %v342
      %v354 = vmax.f32 %v334, %v344
      %v355 = vmax.f32 %v335, %v346
      %v356 = vmax.f32 %v336, %v348
      %361 = vrot.lane.b32.xlu0 %v145, 127
      %v362 = vpop.permute.xlu0 %361
      %363 = vrot.lane.b32.xlu0 %v146, 127
      %v364 = vpop.permute.xlu0 %363
      %365 = vrot.lane.b32.xlu0 %v147, 127
      %v366 = vpop.permute.xlu0 %365
      %367 = vrot.lane.b32.xlu0 %v148, 127
      %v368 = vpop.permute.xlu0 %367
      %v373 = vmax.f32 %v353, %v362
      %v374 = vmax.f32 %v354, %v364
      %v375 = vmax.f32 %v355, %v366
      %v376 = vmax.f32 %v356, %v368
      %381 = vrot.lane.b32.xlu0 %v149, 127
      %v382 = vpop.permute.xlu0 %381
      %383 = vrot.lane.b32.xlu0 %v150, 127
      %v384 = vpop.permute.xlu0 %383
      %385 = vrot.lane.b32.xlu0 %v151, 127
      %v386 = vpop.permute.xlu0 %385
      %387 = vrot.lane.b32.xlu0 %v152, 127
      %v388 = vpop.permute.xlu0 %387
      %v393 = vmax.f32 %v373, %v382
      %v394 = vmax.f32 %v374, %v384
      %v395 = vmax.f32 %v375, %v386
      %v396 = vmax.f32 %v376, %v388
      %397 = vrot.lane.b32.xlu0 %v141, 126
      %v398 = vpop.permute.xlu0 %397
      %399 = vrot.lane.b32.xlu0 %v142, 126
      %v400 = vpop.permute.xlu0 %399
      %401 = vrot.lane.b32.xlu0 %v143, 126
      %v402 = vpop.permute.xlu0 %401
      %403 = vrot.lane.b32.xlu0 %v144, 126
      %v404 = vpop.permute.xlu0 %403
      %v409 = vmax.f32 %v393, %v398
      %v410 = vmax.f32 %v394, %v400
      %v411 = vmax.f32 %v395, %v402
      %v412 = vmax.f32 %v396, %v404
      %v413 = vrot.slane %v117, 1
      %v414 = vrot.slane %v118, 1
      %v415 = vrot.slane %v119, 1
      %v416 = vrot.slane %v120, 1
      %v421 = vmax.f32 %v409, %v413
      %v422 = vmax.f32 %v410, %v414
      %v423 = vmax.f32 %v411, %v415
      %v424 = vmax.f32 %v412, %v416
      %v425 = vrot.slane %v121, 1
      %v426 = vrot.slane %v122, 1
      %v427 = vrot.slane %v123, 1
      %v428 = vrot.slane %v124, 1
      %v433 = vmax.f32 %v421, %v425
      %v434 = vmax.f32 %v422, %v426
      %v435 = vmax.f32 %v423, %v427
      %v436 = vmax.f32 %v424, %v428
      %v437 = vrot.slane %v125, 1
      %v438 = vrot.slane %v126, 1
      %v439 = vrot.slane %v127, 1
      %v440 = vrot.slane %v128, 1
      %v445 = vmax.f32 %v433, %v437
      %v446 = vmax.f32 %v434, %v438
      %v447 = vmax.f32 %v435, %v439
      %v448 = vmax.f32 %v436, %v440
      %449 = vrot.lane.b32.xlu0 %v413, 127
      %v450 = vpop.permute.xlu0 %449
      %451 = vrot.lane.b32.xlu0 %v414, 127
      %v452 = vpop.permute.xlu0 %451
      %453 = vrot.lane.b32.xlu0 %v415, 127
      %v454 = vpop.permute.xlu0 %453
      %455 = vrot.lane.b32.xlu0 %v416, 127
      %v456 = vpop.permute.xlu0 %455
      %v461 = vmax.f32 %v445, %v450
      %v462 = vmax.f32 %v446, %v452
      %v463 = vmax.f32 %v447, %v454
      %v464 = vmax.f32 %v448, %v456
      %465 = vrot.lane.b32.xlu0 %v425, 127
      %v466 = vpop.permute.xlu0 %465
      %467 = vrot.lane.b32.xlu0 %v426, 127
      %v468 = vpop.permute.xlu0 %467
      %469 = vrot.lane.b32.xlu0 %v427, 127
      %v470 = vpop.permute.xlu0 %469
      %471 = vrot.lane.b32.xlu0 %v428, 127
      %v472 = vpop.permute.xlu0 %471
      %v477 = vmax.f32 %v461, %v466
      %v478 = vmax.f32 %v462, %v468
      %v479 = vmax.f32 %v463, %v470
      %v480 = vmax.f32 %v464, %v472
      %481 = vrot.lane.b32.xlu0 %v437, 127
      %v482 = vpop.permute.xlu0 %481
      %483 = vrot.lane.b32.xlu0 %v438, 127
      %v484 = vpop.permute.xlu0 %483
      %485 = vrot.lane.b32.xlu0 %v439, 127
      %v486 = vpop.permute.xlu0 %485
      %487 = vrot.lane.b32.xlu0 %v440, 127
      %v488 = vpop.permute.xlu0 %487
      %v493 = vmax.f32 %v477, %v482
      %v494 = vmax.f32 %v478, %v484
      %v495 = vmax.f32 %v479, %v486
      %v496 = vmax.f32 %v480, %v488
      %497 = vrot.lane.b32.xlu0 %v413, 126
      %v498 = vpop.permute.xlu0 %497
      %499 = vrot.lane.b32.xlu0 %v414, 126
      %v500 = vpop.permute.xlu0 %499
      %501 = vrot.lane.b32.xlu0 %v415, 126
      %v502 = vpop.permute.xlu0 %501
      %503 = vrot.lane.b32.xlu0 %v416, 126
      %v504 = vpop.permute.xlu0 %503
      %v509 = vmax.f32 %v493, %v498
      %v510 = vmax.f32 %v494, %v500
      %v511 = vmax.f32 %v495, %v502
      %v512 = vmax.f32 %v496, %v504
      %v513 = vrot.slane %v129, 1
      %v514 = vrot.slane %v130, 1
      %v515 = vrot.slane %v131, 1
      %v516 = vrot.slane %v132, 1
      %v521 = vmax.f32 %v509, %v513
      %v522 = vmax.f32 %v510, %v514
      %v523 = vmax.f32 %v511, %v515
      %v524 = vmax.f32 %v512, %v516
      %v525 = vrot.slane %v133, 1
      %v526 = vrot.slane %v134, 1
      %v527 = vrot.slane %v135, 1
      %v528 = vrot.slane %v136, 1
      %v533 = vmax.f32 %v521, %v525
      %v534 = vmax.f32 %v522, %v526
      %v535 = vmax.f32 %v523, %v527
      %v536 = vmax.f32 %v524, %v528
      %v537 = vrot.slane %v137, 1
      %v538 = vrot.slane %v138, 1
      %v539 = vrot.slane %v139, 1
      %v540 = vrot.slane %v140, 1
      %v545 = vmax.f32 %v533, %v537
      %v546 = vmax.f32 %v534, %v538
      %v547 = vmax.f32 %v535, %v539
      %v548 = vmax.f32 %v536, %v540
      %549 = vrot.lane.b32.xlu0 %v513, 127
      %v550 = vpop.permute.xlu0 %549
      %551 = vrot.lane.b32.xlu0 %v514, 127
      %v552 = vpop.permute.xlu0 %551
      %553 = vrot.lane.b32.xlu0 %v515, 127
      %v554 = vpop.permute.xlu0 %553
      %555 = vrot.lane.b32.xlu0 %v516, 127
      %v556 = vpop.permute.xlu0 %555
      %v561 = vmax.f32 %v545, %v550
      %v562 = vmax.f32 %v546, %v552
      %v563 = vmax.f32 %v547, %v554
      %v564 = vmax.f32 %v548, %v556
      %565 = vrot.lane.b32.xlu0 %v525, 127
      %v566 = vpop.permute.xlu0 %565
      %567 = vrot.lane.b32.xlu0 %v526, 127
      %v568 = vpop.permute.xlu0 %567
      %569 = vrot.lane.b32.xlu0 %v527, 127
      %v570 = vpop.permute.xlu0 %569
      %571 = vrot.lane.b32.xlu0 %v528, 127
      %v572 = vpop.permute.xlu0 %571
      %v577 = vmax.f32 %v561, %v566
      %v578 = vmax.f32 %v562, %v568
      %v579 = vmax.f32 %v563, %v570
      %v580 = vmax.f32 %v564, %v572
      %581 = vrot.lane.b32.xlu0 %v537, 127
      %v582 = vpop.permute.xlu0 %581
      %583 = vrot.lane.b32.xlu0 %v538, 127
      %v584 = vpop.permute.xlu0 %583
      %585 = vrot.lane.b32.xlu0 %v539, 127
      %v586 = vpop.permute.xlu0 %585
      %587 = vrot.lane.b32.xlu0 %v540, 127
      %v588 = vpop.permute.xlu0 %587
      %v593 = vmax.f32 %v577, %v582
      %v594 = vmax.f32 %v578, %v584
      %v595 = vmax.f32 %v579, %v586
      %v596 = vmax.f32 %v580, %v588
      %597 = vrot.lane.b32.xlu0 %v513, 126
      %v598 = vpop.permute.xlu0 %597
      %599 = vrot.lane.b32.xlu0 %v514, 126
      %v600 = vpop.permute.xlu0 %599
      %601 = vrot.lane.b32.xlu0 %v515, 126
      %v602 = vpop.permute.xlu0 %601
      %603 = vrot.lane.b32.xlu0 %v516, 126
      %v604 = vpop.permute.xlu0 %603
      %v609 = vmax.f32 %v593, %v598
      %v610 = vmax.f32 %v594, %v600
      %v611 = vmax.f32 %v595, %v602
      %v612 = vmax.f32 %v596, %v604
      %v613 = vrot.slane %v141, 1
      %v614 = vrot.slane %v142, 1
      %v615 = vrot.slane %v143, 1
      %v616 = vrot.slane %v144, 1
      %v621 = vmax.f32 %v609, %v613
      %v622 = vmax.f32 %v610, %v614
      %v623 = vmax.f32 %v611, %v615
      %v624 = vmax.f32 %v612, %v616
      %v625 = vrot.slane %v145, 1
      %v626 = vrot.slane %v146, 1
      %v627 = vrot.slane %v147, 1
      %v628 = vrot.slane %v148, 1
      %v633 = vmax.f32 %v621, %v625
      %v634 = vmax.f32 %v622, %v626
      %v635 = vmax.f32 %v623, %v627
      %v636 = vmax.f32 %v624, %v628
      %v637 = vrot.slane %v149, 1
      %v638 = vrot.slane %v150, 1
      %v639 = vrot.slane %v151, 1
      %v640 = vrot.slane %v152, 1
      %v645 = vmax.f32 %v633, %v637
      %v646 = vmax.f32 %v634, %v638
      %v647 = vmax.f32 %v635, %v639
      %v648 = vmax.f32 %v636, %v640
      %649 = vrot.lane.b32.xlu0 %v613, 127
      %v650 = vpop.permute.xlu0 %649
      %651 = vrot.lane.b32.xlu0 %v614, 127
      %v652 = vpop.permute.xlu0 %651
      %653 = vrot.lane.b32.xlu0 %v615, 127
      %v654 = vpop.permute.xlu0 %653
      %655 = vrot.lane.b32.xlu0 %v616, 127
      %v656 = vpop.permute.xlu0 %655
      %v661 = vmax.f32 %v645, %v650
      %v662 = vmax.f32 %v646, %v652
      %v663 = vmax.f32 %v647, %v654
      %v664 = vmax.f32 %v648, %v656
      %665 = vrot.lane.b32.xlu0 %v625, 127
      %v666 = vpop.permute.xlu0 %665
      %667 = vrot.lane.b32.xlu0 %v626, 127
      %v668 = vpop.permute.xlu0 %667
      %669 = vrot.lane.b32.xlu0 %v627, 127
      %v670 = vpop.permute.xlu0 %669
      %671 = vrot.lane.b32.xlu0 %v628, 127
      %v672 = vpop.permute.xlu0 %671
      %v677 = vmax.f32 %v661, %v666
      %v678 = vmax.f32 %v662, %v668
      %v679 = vmax.f32 %v663, %v670
      %v680 = vmax.f32 %v664, %v672
      %681 = vrot.lane.b32.xlu0 %v637, 127
      %v682 = vpop.permute.xlu0 %681
      %683 = vrot.lane.b32.xlu0 %v638, 127
      %v684 = vpop.permute.xlu0 %683
      %685 = vrot.lane.b32.xlu0 %v639, 127
      %v686 = vpop.permute.xlu0 %685
      %687 = vrot.lane.b32.xlu0 %v640, 127
      %v688 = vpop.permute.xlu0 %687
      %v693 = vmax.f32 %v677, %v682
      %v694 = vmax.f32 %v678, %v684
      %v695 = vmax.f32 %v679, %v686
      %v696 = vmax.f32 %v680, %v688
      %697 = vrot.lane.b32.xlu0 %v613, 126
      %v698 = vpop.permute.xlu0 %697
      %699 = vrot.lane.b32.xlu0 %v614, 126
      %v700 = vpop.permute.xlu0 %699
      %701 = vrot.lane.b32.xlu0 %v615, 126
      %v702 = vpop.permute.xlu0 %701
      %703 = vrot.lane.b32.xlu0 %v616, 126
      %v704 = vpop.permute.xlu0 %703
      %v709 = vmax.f32 %v693, %v698
      %v710 = vmax.f32 %v694, %v700
      %v711 = vmax.f32 %v695, %v702
      %v712 = vmax.f32 %v696, %v704
      %v713 = vrot.slane %v117, 2
      %v714 = vrot.slane %v118, 2
      %v715 = vrot.slane %v119, 2
      %v716 = vrot.slane %v120, 2
      %v721 = vmax.f32 %v709, %v713
      %v722 = vmax.f32 %v710, %v714
      %v723 = vmax.f32 %v711, %v715
      %v724 = vmax.f32 %v712, %v716
      %v725 = vrot.slane %v121, 2
      %v726 = vrot.slane %v122, 2
      %v727 = vrot.slane %v123, 2
      %v728 = vrot.slane %v124, 2
      %v733 = vmax.f32 %v721, %v725
      %v734 = vmax.f32 %v722, %v726
      %v735 = vmax.f32 %v723, %v727
      %v736 = vmax.f32 %v724, %v728
      %v737 = vrot.slane %v125, 2
      %v738 = vrot.slane %v126, 2
      %v739 = vrot.slane %v127, 2
      %v740 = vrot.slane %v128, 2
      %v745 = vmax.f32 %v733, %v737
      %v746 = vmax.f32 %v734, %v738
      %v747 = vmax.f32 %v735, %v739
      %v748 = vmax.f32 %v736, %v740
      %749 = vrot.lane.b32.xlu0 %v713, 127
      %v750 = vpop.permute.xlu0 %749
      %751 = vrot.lane.b32.xlu0 %v714, 127
      %v752 = vpop.permute.xlu0 %751
      %753 = vrot.lane.b32.xlu0 %v715, 127
      %v754 = vpop.permute.xlu0 %753
      %755 = vrot.lane.b32.xlu0 %v716, 127
      %v756 = vpop.permute.xlu0 %755
      %v761 = vmax.f32 %v745, %v750
      %v762 = vmax.f32 %v746, %v752
      %v763 = vmax.f32 %v747, %v754
      %v764 = vmax.f32 %v748, %v756
      %765 = vrot.lane.b32.xlu0 %v725, 127
      %v766 = vpop.permute.xlu0 %765
      %767 = vrot.lane.b32.xlu0 %v726, 127
      %v768 = vpop.permute.xlu0 %767
      %769 = vrot.lane.b32.xlu0 %v727, 127
      %v770 = vpop.permute.xlu0 %769
      %771 = vrot.lane.b32.xlu0 %v728, 127
      %v772 = vpop.permute.xlu0 %771
      %v777 = vmax.f32 %v761, %v766
      %v778 = vmax.f32 %v762, %v768
      %v779 = vmax.f32 %v763, %v770
      %v780 = vmax.f32 %v764, %v772
      %781 = vrot.lane.b32.xlu0 %v737, 127
      %v782 = vpop.permute.xlu0 %781
      %783 = vrot.lane.b32.xlu0 %v738, 127
      %v784 = vpop.permute.xlu0 %783
      %785 = vrot.lane.b32.xlu0 %v739, 127
      %v786 = vpop.permute.xlu0 %785
      %787 = vrot.lane.b32.xlu0 %v740, 127
      %v788 = vpop.permute.xlu0 %787
      %v793 = vmax.f32 %v777, %v782
      %v794 = vmax.f32 %v778, %v784
      %v795 = vmax.f32 %v779, %v786
      %v796 = vmax.f32 %v780, %v788
      %797 = vrot.lane.b32.xlu0 %v713, 126
      %v798 = vpop.permute.xlu0 %797
      %799 = vrot.lane.b32.xlu0 %v714, 126
      %v800 = vpop.permute.xlu0 %799
      %801 = vrot.lane.b32.xlu0 %v715, 126
      %v802 = vpop.permute.xlu0 %801
      %803 = vrot.lane.b32.xlu0 %v716, 126
      %v804 = vpop.permute.xlu0 %803
      %v809 = vmax.f32 %v793, %v798
      %v810 = vmax.f32 %v794, %v800
      %v811 = vmax.f32 %v795, %v802
      %v812 = vmax.f32 %v796, %v804
      %vm813 = vcmask 18432
      %814 = vst.msk [vmem:[%s116] sm:$0x7] %vm813, %v809
      %815 = vst.msk [vmem:[%s116 + $0x4] sm:$0x7] %vm813, %v810
      %816 = vst.msk [vmem:[%s116 + $0x8] sm:$0x7] %vm813, %v811
      %817 = vst.msk [vmem:[%s116 + $0xc] sm:$0x7] %vm813, %v812
      %p818 = scmp.lt.s32.totalorder %s12, 1
      %s819 = scalar_select %p818, %s12, 1
      %s820 = smul.addr %s819, 4
      %s821 = smul.addr %s820, 4
      %s822 = scalar_lea.vmem %s1, %s821
      // Predicated region
      $region25: #{esa_forward.10} parent=23 // pred_check
        %p823 = pneg %p56
      $region26: #{esa_forward.10} parent=23 // pred_check_branch
        %825 = sbr.rel (%p823) target = $region28
      $region27: #{esa_forward.10} parent=23 // pred_region
        _
      $region28: #{esa_forward.10} parent=23 // pred_fallthru
        _
    $region24: #{esa_forward.10} parent=5 // pred_fallthru
      _
    %p826 = scmp.le.s32.totalorder 2, %s7
    // Predicated region
    $region29: #{esa_forward.10} parent=5 // pred_check
      %p827 = pneg %p826
    $region30: #{esa_forward.10} parent=5 // pred_check_branch
      %829 = sbr.rel (%p827) target = $region32
    $region31: #{esa_forward.10} parent=5 // pred_region
      %s830 = ssub.s32 %s7, 2
      // Predicated region
      $region33: #{esa_forward.10} parent=31 // pred_check
        %p831 = pneg %p62
      $region34: #{esa_forward.10} parent=31 // pred_check_branch
        %833 = sbr.rel (%p831) target = $region36
      $region35: #{esa_forward.10} parent=31 // pred_region
        %p834 = scmp.lt.s32.totalorder %s13, 1
        %s835 = scalar_select %p834, %s13, 1
        %s836 = smul.addr %s835, 4
        %s837 = smul.addr %s836, 4
        %s838 = scalar_lea.vmem %s1, %s837
      $region36: #{esa_forward.10} parent=31 // pred_fallthru
        _
    $region32: #{esa_forward.10} parent=5 // pred_fallthru
      _
  $region6: #{esa_forward.10} parent=0 // loop_footer
    %s11 = sadd.s32 1, %s7
  $region7: #{esa_forward.10} parent=0 // loop_footer_branch
    %6 = sbr.rel target = $region3
  $region8: #{esa_forward.10} parent=0 // loop_exit
    _

// kernel: esa_forward.11
$region0: #{esa_forward.11}
  #allocation0 [shape = 'u32[]', space=smem, size = 0x4, offset = 0x4, fixed_abs, tag = 'smem constant byte address 0x4 - core index']
  #allocation1 [shape = 'u32[144,128]{1,0:T(1,128)}', space=vmem, size = 0x12000, scoped, tag = 'internal scratch']
  %s0 = inlined_call_operand.vmem [shape: f32[4,36], index: 0, kind: input, shape index: {}]
  %s1 = inlined_call_operand.vmem [shape: f32[4,1], index: 1, kind: input, shape index: {}]
  %s2 = inlined_call_operand.vmem [shape: f32[2,36,9], index: 2, kind: input, shape index: {}]
  %s3 = inlined_call_operand.vmem [shape: f32[2,4,9], index: 3, kind: output, shape index: {}]
  %s4 = sld [smem:[#allocation0]]
  $region45: #{esa_forward.11} parent=0
    _
  %s6 = ssub.s32 1, %s4
  %s7 = scalar_select 0, %s6, %s4
  loop: start=0, step=1, limit=4
  $region2: #{esa_forward.11} parent=0 // loop_pre_header
    _
  $region3: #{esa_forward.11} parent=0 // loop_header
    %s9 = sphi 0, %s13
    %p10 = scmp.ge.s32.totalorder %s9, 4
    %s16 = sphi 0, %s28
    %s17 = sphi 0, %s24
    %s18 = sphi 0, %s16
    %s19 = sphi 0, %s17
    %s20 = sphi 0, %s18
    %s21 = sphi 0, %s19
    %s29 = sphi 0, %s29
    %s31 = sphi 0, %s29
    %s32 = sphi 0, %s31
    %s46 = sphi 0, %s32
    %s50 = sphi 0, %s50
    %s52 = sphi 0, %s50
    %s53 = sphi 0, %s52
    %s67 = sphi 0, %s53
    %s75 = sphi 0, %s77
    %s78 = sphi 0, %s75
    %s79 = sphi 0, %s78
    %s95 = sphi 0, %s79
    %s103 = sphi 0, %s105
    %s106 = sphi 0, %s103
    %s107 = sphi 0, %s106
    %s123 = sphi 0, %s107
  $region4: #{esa_forward.11} parent=0 // loop_header_branch
    %12 = sbr.rel (%p10) target = $region8
  $region5: #{esa_forward.11} parent=0 // loop_body
    %s14 = ssub.s32 %s9, 1
    %s15 = ssub.s32 %s9, 2
    %s22 = sadd.s32 1, %s17
    %p23 = scmp.ge.s32.totalorder %s22, 1
    %s24 = scalar_select %p23, 0, %s22
    %s25 = sadd.s32 1, %s16
    %s26 = scalar_select %p23, %s25, %s16
    %p27 = scmp.ge.s32.totalorder %s26, 2
    %s28 = scalar_select %p27, 0, %s26
    %s30 = sadd.s32 %s29, 1
    %p33 = scmp.eq.s32.totalorder %s9, 1
    %p34 = scmp.ne.s32.totalorder %s29, %s31
    %p35 = scmp.eq.s32.totalorder %s9, 0
    %p36 = por %p34, %p35
    %p37 = scmp.ne.s32.totalorder %s29, %s31
    %p38 = scmp.eq.s32.totalorder %s14, 1
    %p39 = por %p37, %p38
    %p40 = scmp.ne.s32.totalorder %s31, %s32
    %p41 = scmp.eq.s32.totalorder %s14, 0
    %p42 = por %p40, %p41
    %p43 = scmp.ne.s32.totalorder %s31, %s32
    %p44 = scmp.eq.s32.totalorder %s15, 1
    %p45 = por %p43, %p44
    %p47 = scmp.ne.s32.totalorder %s32, %s46
    %p48 = scmp.eq.s32.totalorder %s15, 0
    %p49 = por %p47, %p48
    %s51 = sadd.s32 %s50, 1
    %p54 = scmp.eq.s32.totalorder %s9, 1
    %p55 = scmp.ne.s32.totalorder %s50, %s52
    %p56 = scmp.eq.s32.totalorder %s9, 0
    %p57 = por %p55, %p56
    %p58 = scmp.ne.s32.totalorder %s50, %s52
    %p59 = scmp.eq.s32.totalorder %s14, 1
    %p60 = por %p58, %p59
    %p61 = scmp.ne.s32.totalorder %s52, %s53
    %p62 = scmp.eq.s32.totalorder %s14, 0
    %p63 = por %p61, %p62
    %p64 = scmp.ne.s32.totalorder %s52, %s53
    %p65 = scmp.eq.s32.totalorder %s15, 1
    %p66 = por %p64, %p65
    %p68 = scmp.ne.s32.totalorder %s53, %s67
    %p69 = scmp.eq.s32.totalorder %s15, 0
    %p70 = por %p68, %p69
    %s71 = ssub.s32 %s16, %s28
    %s72 = ssub.s32 %s17, %s24
    %s73 = sor.u32 %s71, %s72
    %p74 = scmp.eq.s32.totalorder %s73, 0
    %s76 = sadd.s32 %s75, 1
    %s77 = scalar_select %p74, %s75, %s76
    %p80 = pneg %p74
    %p81 = scmp.eq.s32.totalorder %s9, 1
    %p82 = por %p80, %p81
    %p83 = scmp.ne.s32.totalorder %s75, %s78
    %p84 = scmp.eq.s32.totalorder %s9, 0
    %p85 = por %p83, %p84
    %p86 = scmp.ne.s32.totalorder %s75, %s78
    %p87 = scmp.eq.s32.totalorder %s14, 1
    %p88 = por %p86, %p87
    %p89 = scmp.ne.s32.totalorder %s78, %s79
    %p90 = scmp.eq.s32.totalorder %s14, 0
    %p91 = por %p89, %p90
    %p92 = scmp.ne.s32.totalorder %s78, %s79
    %p93 = scmp.eq.s32.totalorder %s15, 1
    %p94 = por %p92, %p93
    %p96 = scmp.ne.s32.totalorder %s79, %s95
    %p97 = scmp.eq.s32.totalorder %s15, 0
    %p98 = por %p96, %p97
    %s99 = ssub.s32 %s16, %s28
    %s100 = ssub.s32 %s17, %s24
    %s101 = sor.u32 %s99, %s100
    %p102 = scmp.eq.s32.totalorder %s101, 0
    %s104 = sadd.s32 %s103, 1
    %s105 = scalar_select %p102, %s103, %s104
    %p108 = pneg %p102
    %p109 = scmp.eq.s32.totalorder %s9, 1
    %p110 = por %p108, %p109
    %p111 = scmp.ne.s32.totalorder %s103, %s106
    %p112 = scmp.eq.s32.totalorder %s9, 0
    %p113 = por %p111, %p112
    %p114 = scmp.ne.s32.totalorder %s103, %s106
    %p115 = scmp.eq.s32.totalorder %s14, 1
    %p116 = por %p114, %p115
    %p117 = scmp.ne.s32.totalorder %s106, %s107
    %p118 = scmp.eq.s32.totalorder %s14, 0
    %p119 = por %p117, %p118
    %p120 = scmp.ne.s32.totalorder %s106, %s107
    %p121 = scmp.eq.s32.totalorder %s15, 1
    %p122 = por %p120, %p121
    %p124 = scmp.ne.s32.totalorder %s107, %s123
    %p125 = scmp.eq.s32.totalorder %s15, 0
    %p126 = por %p124, %p125
    %p127 = scmp.le.s32.totalorder 1, %s9
    %p128 = scmp.lt.s32.totalorder %s9, 3
    %p129 = pnand %p127, %p128
    %p130 = pneg %p129
    // Predicated region
    $region9: #{esa_forward.11} parent=5 // pred_check
      _
    $region10: #{esa_forward.11} parent=5 // pred_check_branch
      %132 = sbr.rel (%p129) target = $region12
    $region11: #{esa_forward.11} parent=5 // pred_region
      %s133 = ssub.s32 %s9, 1
      // Predicated region
      $region13: #{esa_forward.11} parent=11 // pred_check
        %p134 = pneg %p42
      $region14: #{esa_forward.11} parent=11 // pred_check_branch
        %136 = sbr.rel (%p134) target = $region16
      $region15: #{esa_forward.11} parent=11 // pred_region
        _
      $region16: #{esa_forward.11} parent=11 // pred_fallthru
        _
      // Predicated region
      $region17: #{esa_forward.11} parent=11 // pred_check
        %p137 = pneg %p63
      $region18: #{esa_forward.11} parent=11 // pred_check_branch
        %139 = sbr.rel (%p137) target = $region20
      $region19: #{esa_forward.11} parent=11 // pred_region
        _
      $region20: #{esa_forward.11} parent=11 // pred_fallthru
        _
    $region12: #{esa_forward.11} parent=5 // pred_fallthru
      _
    %p140 = scmp.lt.s32.totalorder %s9, 2
    // Predicated region
    $region21: #{esa_forward.11} parent=5 // pred_check
      %p141 = pneg %p140
    $region22: #{esa_forward.11} parent=5 // pred_check_branch
      %143 = sbr.rel (%p141) target = $region24
    $region23: #{esa_forward.11} parent=5 // pred_region
      // Predicated region
      $region25: #{esa_forward.11} parent=23 // pred_check
        %p144 = pneg %p85
      $region26: #{esa_forward.11} parent=23 // pred_check_branch
        %146 = sbr.rel (%p144) target = $region28
      $region27: #{esa_forward.11} parent=23 // pred_region
        %p147 = scmp.lt.s32.totalorder %s16, 1
        %s148 = scalar_select %p147, %s16, 1
        %p149 = scmp.lt.s32.totalorder %s17, 0
        %s150 = scalar_select %p149, %s17, 0
        %s151 = smul.addr %s148, 5
        %s152 = sadd.s32 %s150, %s151
        %s153 = smul.addr %s152, 8
        %s154 = scalar_lea.vmem %s2, %s153
      $region28: #{esa_forward.11} parent=23 // pred_fallthru
        _
    $region24: #{esa_forward.11} parent=5 // pred_fallthru
      _
    %p155 = scmp.le.s32.totalorder 1, %s9
    %p156 = scmp.lt.s32.totalorder %s9, 3
    %p157 = pnand %p155, %p156
    %p158 = pneg %p157
    // Predicated region
    $region29: #{esa_forward.11} parent=5 // pred_check
      _
    $region30: #{esa_forward.11} parent=5 // pred_check_branch
      %160 = sbr.rel (%p157) target = $region32
    $region31: #{esa_forward.11} parent=5 // pred_region
      %s161 = ssub.s32 %s9, 1
      %p162 = pneg %p42
      %p163 = pneg %p39
      %p164 = pneg %p63
      %p165 = pneg %p60
      %p166 = scmp.lt.s32.totalorder %s18, 1
      %s167 = scalar_select %p166, %s18, 1
      %p168 = scmp.lt.s32.totalorder %s19, 0
      %s169 = scalar_select %p168, %s19, 0
      %s170 = smul.addr %s167, 5
      %s171 = sadd.s32 %s169, %s170
      %s172 = smul.addr %s171, 8
      %s173 = scalar_lea.vmem %s2, %s172
      %p174 = pneg %p91
      %p175 = pneg %p88
      %p176 = pneg %p119
      %p177 = pneg %p116
      %p178 = scmp.lt.s32.totalorder %s18, 1
      %s179 = scalar_select %p178, %s18, 1
      %p180 = scmp.lt.s32.totalorder %s19, 0
      %s181 = scalar_select %p180, %s19, 0
      %s182 = sadd.s32 %s181, %s179
      %s183 = smul.addr %s182, 4
      %s184 = scalar_lea.vmem %s3, %s183
      %p185 = scmp.lt.s32.totalorder %s18, 1
      %s186 = scalar_select %p185, %s18, 1
      %p187 = scmp.lt.s32.totalorder %s19, 0
      %s188 = scalar_select %p187, %s19, 0
      %s189 = smul.addr %s186, 5
      %s190 = sadd.s32 %s188, %s189
      %s191 = smul.addr %s190, 8
      %s192 = scalar_lea.vmem %s2, %s191
      %p193 = scmp.lt.s32.totalorder %s18, 1
      %s194 = scalar_select %p193, %s18, 1
      %p195 = scmp.lt.s32.totalorder %s19, 0
      %s196 = scalar_select %p195, %s19, 0
      %s197 = sadd.s32 %s196, %s194
      %s198 = smul.addr %s197, 4
      %s199 = scalar_lea.vmem %s3, %s198
      %v200 = vld [vmem:[%s0] sm:$0xf]
      %v201 = vld [vmem:[%s192] sm:$0xff]
      %v202 = vld [vmem:[%s192 + $0x8] sm:$0xff]
      %v203 = vld [vmem:[%s192 + $0x10] sm:$0xff]
      %v204 = vld [vmem:[%s192 + $0x18] sm:$0xff]
      %v205 = vld [vmem:[%s192 + $0x20] sm:$0xf]
      %v206 = vld [vmem:[%s1] sm:$0xf]
      %208 = vset.pattern.permute.xlu0 0
      %209 = vperm.xlu0 %208, %v206
      %v210 = vpop.permute.xlu0 %209
      %vm212 = vcmask 293888
      %v214 = vsel %vm212, %v200, 0
      %vm216 = vcmask 1043456
      %v218 = vsel %vm216, %v205, 0
      %220 = vmatprep.subr.mxu0 0.0
      %221 = vmatpush1.msra.mxu0 %v201
      %222 = vmatprep.subr.mxu0 0.0
      %223 = vmatpush1.msra.mxu0 %v202
      %224 = vmatprep.subr.mxu0 0.0
      %225 = vmatpush1.msra.mxu0 %v203
      %226 = vmatprep.subr.mxu0 0.0
      %227 = vmatpush1.msra.mxu0 %v204
      %228 = vmatprep.subr.mxu0 0.0
      %229 = vmatpush1.msra.mxu0 %v218
      %230 = vmatprep.subr.mxu0 0.0
      %231 = vmatpush1.msra.mxu0 0.0
      %232 = vmatprep.subr.mxu0 0.0
      %233 = vmatpush1.msra.mxu0 0.0
      %234 = vmatprep.subr.mxu0 0.0
      %235 = vmatpush1.msra.mxu0 0.0
      %236 = vmatprep.subr.mxu0 0.0
      %237 = vmatpush1.msra.mxu0 0.0
      %238 = vmatprep.subr.mxu0 0.0
      %239 = vmatpush1.msra.mxu0 0.0
      %240 = vmatprep.subr.mxu0 0.0
      %241 = vmatpush1.msra.mxu0 0.0
      %242 = vmatprep.subr.mxu0 0.0
      %243 = vmatpush1.msra.mxu0 0.0
      %244 = vmatprep.subr.mxu0 0.0
      %245 = vmatpush1.msra.mxu0 0.0
      %246 = vmatprep.subr.mxu0 0.0
      %247 = vmatpush1.msra.mxu0 0.0
      %248 = vmatprep.subr.mxu0 0.0
      %249 = vmatpush1.msra.mxu0 0.0
      %250 = vmatprep.subr.mxu0 0.0
      %251 = vmatpush1.msra.mxu0 0.0
      %252 = vmatprep.subr.mxu0 0.0
      %253 = vmatpush1.msra.mxu0 0.0
      %254 = vmatprep.subr.mxu0 0.0
      %255 = vmatpush1.msra.mxu0 0.0
      %256 = vmatprep.subr.mxu0 0.0
      %257 = vmatpush1.msra.mxu0 0.0
      %258 = vmatprep.subr.mxu0 0.0
      %259 = vmatpush1.msra.mxu0 0.0
      %260 = vmatprep.subr.mxu0 0.0
      %261 = vmatpush1.msra.mxu0 0.0
      %262 = vmatprep.subr.mxu0 0.0
      %263 = vmatpush1.msra.mxu0 0.0
      %264 = vmatprep.subr.mxu0 0.0
      %265 = vmatpush1.msra.mxu0 0.0
      %266 = vmatprep.subr.mxu0 0.0
      %267 = vmatpush1.msra.mxu0 0.0
      %268 = vmatprep.subr.mxu0 0.0
      %269 = vmatpush1.msra.mxu0 0.0
      %270 = vmatprep.subr.mxu0 0.0
      %271 = vmatpush1.msra.mxu0 0.0
      %272 = vmatprep.subr.mxu0 0.0
      %273 = vmatpush1.msra.mxu0 0.0
      %274 = vmatprep.subr.mxu0 0.0
      %275 = vmatpush1.msra.mxu0 0.0
      %276 = vmatprep.subr.mxu0 0.0
      %277 = vmatpush1.msra.mxu0 0.0
      %278 = vmatprep.subr.mxu0 0.0
      %279 = vmatpush1.msra.mxu0 0.0
      %280 = vmatprep.subr.mxu0 0.0
      %281 = vmatpush1.msra.mxu0 0.0
      %282 = vmatprep.subr.mxu0 0.0
      %283 = vmatpush1.msra.mxu0 0.0
      %284 = vmatprep.mubr.f32.mxu0 0.0
      %285 = vmatmul.mubr.f32.gmra.mrb[0].mxu0 %v214
      %v286 = vpop.f32.mrb[0].mxu0
      %v287 = vadd.f32 %v210, %v286
      %v288 = vpop.f32.mrb[0].mxu0
      %289 = vdwg.mxu0
      %v290 = vmax.f32 %v287, 0.0
      %vm291 = vcmask 68608
      %292 = vst.msk [vmem:[%s199] sm:$0xf] %vm291, %v290
      %p293 = scmp.lt.s32.totalorder %s18, 1
      %s294 = scalar_select %p293, %s18, 1
      %p295 = scmp.lt.s32.totalorder %s19, 0
      %s296 = scalar_select %p295, %s19, 0
      %s297 = sadd.s32 %s296, %s294
      %s298 = smul.addr %s297, 4
      %s299 = scalar_lea.vmem %s3, %s298
      // Predicated region
      $region33: #{esa_forward.11} parent=31 // pred_check
        %p300 = pneg %p116
      $region34: #{esa_forward.11} parent=31 // pred_check_branch
        %302 = sbr.rel (%p300) target = $region36
      $region35: #{esa_forward.11} parent=31 // pred_region
        _
      $region36: #{esa_forward.11} parent=31 // pred_fallthru
        _
    $region32: #{esa_forward.11} parent=5 // pred_fallthru
      _
    %p303 = scmp.le.s32.totalorder 2, %s9
    // Predicated region
    $region37: #{esa_forward.11} parent=5 // pred_check
      %p304 = pneg %p303
    $region38: #{esa_forward.11} parent=5 // pred_check_branch
      %306 = sbr.rel (%p304) target = $region40
    $region39: #{esa_forward.11} parent=5 // pred_region
      %s307 = ssub.s32 %s9, 2
      // Predicated region
      $region41: #{esa_forward.11} parent=39 // pred_check
        %p308 = pneg %p122
      $region42: #{esa_forward.11} parent=39 // pred_check_branch
        %310 = sbr.rel (%p308) target = $region44
      $region43: #{esa_forward.11} parent=39 // pred_region
        %p311 = scmp.lt.s32.totalorder %s20, 1
        %s312 = scalar_select %p311, %s20, 1
        %p313 = scmp.lt.s32.totalorder %s21, 0
        %s314 = scalar_select %p313, %s21, 0
        %s315 = sadd.s32 %s314, %s312
        %s316 = smul.addr %s315, 4
        %s317 = scalar_lea.vmem %s3, %s316
      $region44: #{esa_forward.11} parent=39 // pred_fallthru
        _
    $region40: #{esa_forward.11} parent=5 // pred_fallthru
      _
  $region6: #{esa_forward.11} parent=0 // loop_footer
    %s13 = sadd.s32 1, %s9
  $region7: #{esa_forward.11} parent=0 // loop_footer_branch
    %8 = sbr.rel target = $region3
  $region8: #{esa_forward.11} parent=0 // loop_exit
    _

// kernel: esa_forward.13
$region0: #{esa_forward.13}
  #allocation0 [shape = 'u32[]', space=smem, size = 0x4, offset = 0x4, fixed_abs, tag = 'smem constant byte address 0x4 - core index']
  #allocation1 [shape = 'u32[144,128]{1,0:T(1,128)}', space=vmem, size = 0x12000, scoped, tag = 'internal scratch']
  %s0 = inlined_call_operand.vmem [shape: f32[4,36], index: 0, kind: input, shape index: {}]
  %s1 = inlined_call_operand.vmem [shape: f32[4,1], index: 1, kind: input, shape index: {}]
  %s2 = inlined_call_operand.vmem [shape: f32[2,36,9], index: 2, kind: input, shape index: {}]
  %s3 = inlined_call_operand.vmem [shape: f32[2,4,9], index: 3, kind: output, shape index: {}]
  %s4 = sld [smem:[#allocation0]]
  $region45: #{esa_forward.13} parent=0
    _
  %s6 = ssub.s32 1, %s4
  %s7 = scalar_select 0, %s6, %s4
  loop: start=0, step=1, limit=4
  $region2: #{esa_forward.13} parent=0 // loop_pre_header
    _
  $region3: #{esa_forward.13} parent=0 // loop_header
    %s9 = sphi 0, %s13
    %p10 = scmp.ge.s32.totalorder %s9, 4
    %s16 = sphi 0, %s28
    %s17 = sphi 0, %s24
    %s18 = sphi 0, %s16
    %s19 = sphi 0, %s17
    %s20 = sphi 0, %s18
    %s21 = sphi 0, %s19
    %s29 = sphi 0, %s29
    %s31 = sphi 0, %s29
    %s32 = sphi 0, %s31
    %s46 = sphi 0, %s32
    %s50 = sphi 0, %s50
    %s52 = sphi 0, %s50
    %s53 = sphi 0, %s52
    %s67 = sphi 0, %s53
    %s75 = sphi 0, %s77
    %s78 = sphi 0, %s75
    %s79 = sphi 0, %s78
    %s95 = sphi 0, %s79
    %s103 = sphi 0, %s105
    %s106 = sphi 0, %s103
    %s107 = sphi 0, %s106
    %s123 = sphi 0, %s107
  $region4: #{esa_forward.13} parent=0 // loop_header_branch
    %12 = sbr.rel (%p10) target = $region8
  $region5: #{esa_forward.13} parent=0 // loop_body
    %s14 = ssub.s32 %s9, 1
    %s15 = ssub.s32 %s9, 2
    %s22 = sadd.s32 1, %s17
    %p23 = scmp.ge.s32.totalorder %s22, 1
    %s24 = scalar_select %p23, 0, %s22
    %s25 = sadd.s32 1, %s16
    %s26 = scalar_select %p23, %s25, %s16
    %p27 = scmp.ge.s32.totalorder %s26, 2
    %s28 = scalar_select %p27, 0, %s26
    %s30 = sadd.s32 %s29, 1
    %p33 = scmp.eq.s32.totalorder %s9, 1
    %p34 = scmp.ne.s32.totalorder %s29, %s31
    %p35 = scmp.eq.s32.totalorder %s9, 0
    %p36 = por %p34, %p35
    %p37 = scmp.ne.s32.totalorder %s29, %s31
    %p38 = scmp.eq.s32.totalorder %s14, 1
    %p39 = por %p37, %p38
    %p40 = scmp.ne.s32.totalorder %s31, %s32
    %p41 = scmp.eq.s32.totalorder %s14, 0
    %p42 = por %p40, %p41
    %p43 = scmp.ne.s32.totalorder %s31, %s32
    %p44 = scmp.eq.s32.totalorder %s15, 1
    %p45 = por %p43, %p44
    %p47 = scmp.ne.s32.totalorder %s32, %s46
    %p48 = scmp.eq.s32.totalorder %s15, 0
    %p49 = por %p47, %p48
    %s51 = sadd.s32 %s50, 1
    %p54 = scmp.eq.s32.totalorder %s9, 1
    %p55 = scmp.ne.s32.totalorder %s50, %s52
    %p56 = scmp.eq.s32.totalorder %s9, 0
    %p57 = por %p55, %p56
    %p58 = scmp.ne.s32.totalorder %s50, %s52
    %p59 = scmp.eq.s32.totalorder %s14, 1
    %p60 = por %p58, %p59
    %p61 = scmp.ne.s32.totalorder %s52, %s53
    %p62 = scmp.eq.s32.totalorder %s14, 0
    %p63 = por %p61, %p62
    %p64 = scmp.ne.s32.totalorder %s52, %s53
    %p65 = scmp.eq.s32.totalorder %s15, 1
    %p66 = por %p64, %p65
    %p68 = scmp.ne.s32.totalorder %s53, %s67
    %p69 = scmp.eq.s32.totalorder %s15, 0
    %p70 = por %p68, %p69
    %s71 = ssub.s32 %s16, %s28
    %s72 = ssub.s32 %s17, %s24
    %s73 = sor.u32 %s71, %s72
    %p74 = scmp.eq.s32.totalorder %s73, 0
    %s76 = sadd.s32 %s75, 1
    %s77 = scalar_select %p74, %s75, %s76
    %p80 = pneg %p74
    %p81 = scmp.eq.s32.totalorder %s9, 1
    %p82 = por %p80, %p81
    %p83 = scmp.ne.s32.totalorder %s75, %s78
    %p84 = scmp.eq.s32.totalorder %s9, 0
    %p85 = por %p83, %p84
    %p86 = scmp.ne.s32.totalorder %s75, %s78
    %p87 = scmp.eq.s32.totalorder %s14, 1
    %p88 = por %p86, %p87
    %p89 = scmp.ne.s32.totalorder %s78, %s79
    %p90 = scmp.eq.s32.totalorder %s14, 0
    %p91 = por %p89, %p90
    %p92 = scmp.ne.s32.totalorder %s78, %s79
    %p93 = scmp.eq.s32.totalorder %s15, 1
    %p94 = por %p92, %p93
    %p96 = scmp.ne.s32.totalorder %s79, %s95
    %p97 = scmp.eq.s32.totalorder %s15, 0
    %p98 = por %p96, %p97
    %s99 = ssub.s32 %s16, %s28
    %s100 = ssub.s32 %s17, %s24
    %s101 = sor.u32 %s99, %s100
    %p102 = scmp.eq.s32.totalorder %s101, 0
    %s104 = sadd.s32 %s103, 1
    %s105 = scalar_select %p102, %s103, %s104
    %p108 = pneg %p102
    %p109 = scmp.eq.s32.totalorder %s9, 1
    %p110 = por %p108, %p109
    %p111 = scmp.ne.s32.totalorder %s103, %s106
    %p112 = scmp.eq.s32.totalorder %s9, 0
    %p113 = por %p111, %p112
    %p114 = scmp.ne.s32.totalorder %s103, %s106
    %p115 = scmp.eq.s32.totalorder %s14, 1
    %p116 = por %p114, %p115
    %p117 = scmp.ne.s32.totalorder %s106, %s107
    %p118 = scmp.eq.s32.totalorder %s14, 0
    %p119 = por %p117, %p118
    %p120 = scmp.ne.s32.totalorder %s106, %s107
    %p121 = scmp.eq.s32.totalorder %s15, 1
    %p122 = por %p120, %p121
    %p124 = scmp.ne.s32.totalorder %s107, %s123
    %p125 = scmp.eq.s32.totalorder %s15, 0
    %p126 = por %p124, %p125
    %p127 = scmp.le.s32.totalorder 1, %s9
    %p128 = scmp.lt.s32.totalorder %s9, 3
    %p129 = pnand %p127, %p128
    %p130 = pneg %p129
    // Predicated region
    $region9: #{esa_forward.13} parent=5 // pred_check
      _
    $region10: #{esa_forward.13} parent=5 // pred_check_branch
      %132 = sbr.rel (%p129) target = $region12
    $region11: #{esa_forward.13} parent=5 // pred_region
      %s133 = ssub.s32 %s9, 1
      // Predicated region
      $region13: #{esa_forward.13} parent=11 // pred_check
        %p134 = pneg %p42
      $region14: #{esa_forward.13} parent=11 // pred_check_branch
        %136 = sbr.rel (%p134) target = $region16
      $region15: #{esa_forward.13} parent=11 // pred_region
        _
      $region16: #{esa_forward.13} parent=11 // pred_fallthru
        _
      // Predicated region
      $region17: #{esa_forward.13} parent=11 // pred_check
        %p137 = pneg %p63
      $region18: #{esa_forward.13} parent=11 // pred_check_branch
        %139 = sbr.rel (%p137) target = $region20
      $region19: #{esa_forward.13} parent=11 // pred_region
        _
      $region20: #{esa_forward.13} parent=11 // pred_fallthru
        _
    $region12: #{esa_forward.13} parent=5 // pred_fallthru
      _
    %p140 = scmp.lt.s32.totalorder %s9, 2
    // Predicated region
    $region21: #{esa_forward.13} parent=5 // pred_check
      %p141 = pneg %p140
    $region22: #{esa_forward.13} parent=5 // pred_check_branch
      %143 = sbr.rel (%p141) target = $region24
    $region23: #{esa_forward.13} parent=5 // pred_region
      // Predicated region
      $region25: #{esa_forward.13} parent=23 // pred_check
        %p144 = pneg %p85
      $region26: #{esa_forward.13} parent=23 // pred_check_branch
        %146 = sbr.rel (%p144) target = $region28
      $region27: #{esa_forward.13} parent=23 // pred_region
        %p147 = scmp.lt.s32.totalorder %s16, 1
        %s148 = scalar_select %p147, %s16, 1
        %p149 = scmp.lt.s32.totalorder %s17, 0
        %s150 = scalar_select %p149, %s17, 0
        %s151 = smul.addr %s148, 5
        %s152 = sadd.s32 %s150, %s151
        %s153 = smul.addr %s152, 8
        %s154 = scalar_lea.vmem %s2, %s153
      $region28: #{esa_forward.13} parent=23 // pred_fallthru
        _
    $region24: #{esa_forward.13} parent=5 // pred_fallthru
      _
    %p155 = scmp.le.s32.totalorder 1, %s9
    %p156 = scmp.lt.s32.totalorder %s9, 3
    %p157 = pnand %p155, %p156
    %p158 = pneg %p157
    // Predicated region
    $region29: #{esa_forward.13} parent=5 // pred_check
      _
    $region30: #{esa_forward.13} parent=5 // pred_check_branch
      %160 = sbr.rel (%p157) target = $region32
    $region31: #{esa_forward.13} parent=5 // pred_region
      %s161 = ssub.s32 %s9, 1
      %p162 = pneg %p42
      %p163 = pneg %p39
      %p164 = pneg %p63
      %p165 = pneg %p60
      %p166 = scmp.lt.s32.totalorder %s18, 1
      %s167 = scalar_select %p166, %s18, 1
      %p168 = scmp.lt.s32.totalorder %s19, 0
      %s169 = scalar_select %p168, %s19, 0
      %s170 = smul.addr %s167, 5
      %s171 = sadd.s32 %s169, %s170
      %s172 = smul.addr %s171, 8
      %s173 = scalar_lea.vmem %s2, %s172
      %p174 = pneg %p91
      %p175 = pneg %p88
      %p176 = pneg %p119
      %p177 = pneg %p116
      %p178 = scmp.lt.s32.totalorder %s18, 1
      %s179 = scalar_select %p178, %s18, 1
      %p180 = scmp.lt.s32.totalorder %s19, 0
      %s181 = scalar_select %p180, %s19, 0
      %s182 = sadd.s32 %s181, %s179
      %s183 = smul.addr %s182, 4
      %s184 = scalar_lea.vmem %s3, %s183
      %p185 = scmp.lt.s32.totalorder %s18, 1
      %s186 = scalar_select %p185, %s18, 1
      %p187 = scmp.lt.s32.totalorder %s19, 0
      %s188 = scalar_select %p187, %s19, 0
      %s189 = smul.addr %s186, 5
      %s190 = sadd.s32 %s188, %s189
      %s191 = smul.addr %s190, 8
      %s192 = scalar_lea.vmem %s2, %s191
      %p193 = scmp.lt.s32.totalorder %s18, 1
      %s194 = scalar_select %p193, %s18, 1
      %p195 = scmp.lt.s32.totalorder %s19, 0
      %s196 = scalar_select %p195, %s19, 0
      %s197 = sadd.s32 %s196, %s194
      %s198 = smul.addr %s197, 4
      %s199 = scalar_lea.vmem %s3, %s198
      %v200 = vld [vmem:[%s0] sm:$0xf]
      %v201 = vld [vmem:[%s192] sm:$0xff]
      %v202 = vld [vmem:[%s192 + $0x8] sm:$0xff]
      %v203 = vld [vmem:[%s192 + $0x10] sm:$0xff]
      %v204 = vld [vmem:[%s192 + $0x18] sm:$0xff]
      %v205 = vld [vmem:[%s192 + $0x20] sm:$0xf]
      %v206 = vld [vmem:[%s1] sm:$0xf]
      %208 = vset.pattern.permute.xlu0 0
      %209 = vperm.xlu0 %208, %v206
      %v210 = vpop.permute.xlu0 %209
      %vm212 = vcmask 293888
      %v214 = vsel %vm212, %v200, 0
      %vm216 = vcmask 1043456
      %v218 = vsel %vm216, %v205, 0
      %220 = vmatprep.subr.mxu0 0.0
      %221 = vmatpush1.msra.mxu0 %v201
      %222 = vmatprep.subr.mxu0 0.0
      %223 = vmatpush1.msra.mxu0 %v202
      %224 = vmatprep.subr.mxu0 0.0
      %225 = vmatpush1.msra.mxu0 %v203
      %226 = vmatprep.subr.mxu0 0.0
      %227 = vmatpush1.msra.mxu0 %v204
      %228 = vmatprep.subr.mxu0 0.0
      %229 = vmatpush1.msra.mxu0 %v218
      %230 = vmatprep.subr.mxu0 0.0
      %231 = vmatpush1.msra.mxu0 0.0
      %232 = vmatprep.subr.mxu0 0.0
      %233 = vmatpush1.msra.mxu0 0.0
      %234 = vmatprep.subr.mxu0 0.0
      %235 = vmatpush1.msra.mxu0 0.0
      %236 = vmatprep.subr.mxu0 0.0
      %237 = vmatpush1.msra.mxu0 0.0
      %238 = vmatprep.subr.mxu0 0.0
      %239 = vmatpush1.msra.mxu0 0.0
      %240 = vmatprep.subr.mxu0 0.0
      %241 = vmatpush1.msra.mxu0 0.0
      %242 = vmatprep.subr.mxu0 0.0
      %243 = vmatpush1.msra.mxu0 0.0
      %244 = vmatprep.subr.mxu0 0.0
      %245 = vmatpush1.msra.mxu0 0.0
      %246 = vmatprep.subr.mxu0 0.0
      %247 = vmatpush1.msra.mxu0 0.0
      %248 = vmatprep.subr.mxu0 0.0
      %249 = vmatpush1.msra.mxu0 0.0
      %250 = vmatprep.subr.mxu0 0.0
      %251 = vmatpush1.msra.mxu0 0.0
      %252 = vmatprep.subr.mxu0 0.0
      %253 = vmatpush1.msra.mxu0 0.0
      %254 = vmatprep.subr.mxu0 0.0
      %255 = vmatpush1.msra.mxu0 0.0
      %256 = vmatprep.subr.mxu0 0.0
      %257 = vmatpush1.msra.mxu0 0.0
      %258 = vmatprep.subr.mxu0 0.0
      %259 = vmatpush1.msra.mxu0 0.0
      %260 = vmatprep.subr.mxu0 0.0
      %261 = vmatpush1.msra.mxu0 0.0
      %262 = vmatprep.subr.mxu0 0.0
      %263 = vmatpush1.msra.mxu0 0.0
      %264 = vmatprep.subr.mxu0 0.0
      %265 = vmatpush1.msra.mxu0 0.0
      %266 = vmatprep.subr.mxu0 0.0
      %267 = vmatpush1.msra.mxu0 0.0
      %268 = vmatprep.subr.mxu0 0.0
      %269 = vmatpush1.msra.mxu0 0.0
      %270 = vmatprep.subr.mxu0 0.0
      %271 = vmatpush1.msra.mxu0 0.0
      %272 = vmatprep.subr.mxu0 0.0
      %273 = vmatpush1.msra.mxu0 0.0
      %274 = vmatprep.subr.mxu0 0.0
      %275 = vmatpush1.msra.mxu0 0.0
      %276 = vmatprep.subr.mxu0 0.0
      %277 = vmatpush1.msra.mxu0 0.0
      %278 = vmatprep.subr.mxu0 0.0
      %279 = vmatpush1.msra.mxu0 0.0
      %280 = vmatprep.subr.mxu0 0.0
      %281 = vmatpush1.msra.mxu0 0.0
      %282 = vmatprep.subr.mxu0 0.0
      %283 = vmatpush1.msra.mxu0 0.0
      %284 = vmatprep.mubr.f32.mxu0 0.0
      %285 = vmatmul.mubr.f32.gmra.mrb[0].mxu0 %v214
      %v286 = vpop.f32.mrb[0].mxu0
      %v287 = vadd.f32 %v210, %v286
      %v288 = vpop.f32.mrb[0].mxu0
      %289 = vdwg.mxu0
      %vm290 = vcmask 68608
      %291 = vst.msk [vmem:[%s199] sm:$0xf] %vm290, %v287
      %p292 = scmp.lt.s32.totalorder %s18, 1
      %s293 = scalar_select %p292, %s18, 1
      %p294 = scmp.lt.s32.totalorder %s19, 0
      %s295 = scalar_select %p294, %s19, 0
      %s296 = sadd.s32 %s295, %s293
      %s297 = smul.addr %s296, 4
      %s298 = scalar_lea.vmem %s3, %s297
      // Predicated region
      $region33: #{esa_forward.13} parent=31 // pred_check
        %p299 = pneg %p116
      $region34: #{esa_forward.13} parent=31 // pred_check_branch
        %301 = sbr.rel (%p299) target = $region36
      $region35: #{esa_forward.13} parent=31 // pred_region
        _
      $region36: #{esa_forward.13} parent=31 // pred_fallthru
        _
    $region32: #{esa_forward.13} parent=5 // pred_fallthru
      _
    %p302 = scmp.le.s32.totalorder 2, %s9
    // Predicated region
    $region37: #{esa_forward.13} parent=5 // pred_check
      %p303 = pneg %p302
    $region38: #{esa_forward.13} parent=5 // pred_check_branch
      %305 = sbr.rel (%p303) target = $region40
    $region39: #{esa_forward.13} parent=5 // pred_region
      %s306 = ssub.s32 %s9, 2
      // Predicated region
      $region41: #{esa_forward.13} parent=39 // pred_check
        %p307 = pneg %p122
      $region42: #{esa_forward.13} parent=39 // pred_check_branch
        %309 = sbr.rel (%p307) target = $region44
      $region43: #{esa_forward.13} parent=39 // pred_region
        %p310 = scmp.lt.s32.totalorder %s20, 1
        %s311 = scalar_select %p310, %s20, 1
        %p312 = scmp.lt.s32.totalorder %s21, 0
        %s313 = scalar_select %p312, %s21, 0
        %s314 = sadd.s32 %s313, %s311
        %s315 = smul.addr %s314, 4
        %s316 = scalar_lea.vmem %s3, %s315
      $region44: #{esa_forward.13} parent=39 // pred_fallthru
        _
    $region40: #{esa_forward.13} parent=5 // pred_fallthru
      _
  $region6: #{esa_forward.13} parent=0 // loop_footer
    %s13 = sadd.s32 1, %s9
  $region7: #{esa_forward.13} parent=0 // loop_footer_branch
    %8 = sbr.rel target = $region3
  $region8: #{esa_forward.13} parent=0 // loop_exit
    _

// kernel: esa_forward.14
$region0: #{esa_forward.14}
  #allocation0 [shape = 'u32[]', space=smem, size = 0x4, offset = 0x4, fixed_abs, tag = 'smem constant byte address 0x4 - core index']
  #allocation1 [shape = 'u32[144,128]{1,0:T(1,128)}', space=vmem, size = 0x12000, scoped, tag = 'internal scratch']
  %s0 = inlined_call_operand.vmem [shape: f32[32,3], index: 0, kind: input, shape index: {}]
  %s1 = inlined_call_operand.vmem [shape: f32[3,32], index: 1, kind: input, shape index: {}]
  %s2 = inlined_call_operand.vmem [shape: f32[8,3,3], index: 2, kind: input, shape index: {}]
  %s3 = inlined_call_operand.vmem [shape: f32[8,32,32], index: 3, kind: output, shape index: {}]
  %s4 = sld [smem:[#allocation0]]
  $region45: #{esa_forward.14} parent=0
    _
  %s6 = ssub.s32 1, %s4
  %s7 = scalar_select 0, %s6, %s4
  loop: start=0, step=1, limit=10
  $region2: #{esa_forward.14} parent=0 // loop_pre_header
    _
  $region3: #{esa_forward.14} parent=0 // loop_header
    %s9 = sphi 0, %s13
    %p10 = scmp.ge.s32.totalorder %s9, 10
    %s17 = sphi 0, %s17
    %s19 = sphi 0, %s17
    %s20 = sphi 0, %s19
    %s34 = sphi 0, %s20
    %s38 = sphi 0, %s38
    %s40 = sphi 0, %s38
    %s41 = sphi 0, %s40
    %s55 = sphi 0, %s41
    %s61 = sphi 0, %s63
    %s64 = sphi 0, %s61
    %s65 = sphi 0, %s64
    %s81 = sphi 0, %s65
    %s87 = sphi 0, %s89
    %s90 = sphi 0, %s87
    %s91 = sphi 0, %s90
    %s107 = sphi 0, %s91
  $region4: #{esa_forward.14} parent=0 // loop_header_branch
    %12 = sbr.rel (%p10) target = $region8
  $region5: #{esa_forward.14} parent=0 // loop_body
    %s14 = ssub.s32 %s9, 1
    %s15 = ssub.s32 %s9, 2
    %s16 = sadd.s32 %s9, 1
    %s18 = sadd.s32 %s17, 1
    %p21 = scmp.eq.s32.totalorder %s9, 7
    %p22 = scmp.ne.s32.totalorder %s17, %s19
    %p23 = scmp.eq.s32.totalorder %s9, 0
    %p24 = por %p22, %p23
    %p25 = scmp.ne.s32.totalorder %s17, %s19
    %p26 = scmp.eq.s32.totalorder %s14, 7
    %p27 = por %p25, %p26
    %p28 = scmp.ne.s32.totalorder %s19, %s20
    %p29 = scmp.eq.s32.totalorder %s14, 0
    %p30 = por %p28, %p29
    %p31 = scmp.ne.s32.totalorder %s19, %s20
    %p32 = scmp.eq.s32.totalorder %s15, 7
    %p33 = por %p31, %p32
    %p35 = scmp.ne.s32.totalorder %s20, %s34
    %p36 = scmp.eq.s32.totalorder %s15, 0
    %p37 = por %p35, %p36
    %s39 = sadd.s32 %s38, 1
    %p42 = scmp.eq.s32.totalorder %s9, 7
    %p43 = scmp.ne.s32.totalorder %s38, %s40
    %p44 = scmp.eq.s32.totalorder %s9, 0
    %p45 = por %p43, %p44
    %p46 = scmp.ne.s32.totalorder %s38, %s40
    %p47 = scmp.eq.s32.totalorder %s14, 7
    %p48 = por %p46, %p47
    %p49 = scmp.ne.s32.totalorder %s40, %s41
    %p50 = scmp.eq.s32.totalorder %s14, 0
    %p51 = por %p49, %p50
    %p52 = scmp.ne.s32.totalorder %s40, %s41
    %p53 = scmp.eq.s32.totalorder %s15, 7
    %p54 = por %p52, %p53
    %p56 = scmp.ne.s32.totalorder %s41, %s55
    %p57 = scmp.eq.s32.totalorder %s15, 0
    %p58 = por %p56, %p57
    %s59 = ssub.s32 %s9, %s16
    %p60 = scmp.eq.s32.totalorder %s59, 0
    %s62 = sadd.s32 %s61, 1
    %s63 = scalar_select %p60, %s61, %s62
    %p66 = pneg %p60
    %p67 = scmp.eq.s32.totalorder %s9, 7
    %p68 = por %p66, %p67
    %p69 = scmp.ne.s32.totalorder %s61, %s64
    %p70 = scmp.eq.s32.totalorder %s9, 0
    %p71 = por %p69, %p70
    %p72 = scmp.ne.s32.totalorder %s61, %s64
    %p73 = scmp.eq.s32.totalorder %s14, 7
    %p74 = por %p72, %p73
    %p75 = scmp.ne.s32.totalorder %s64, %s65
    %p76 = scmp.eq.s32.totalorder %s14, 0
    %p77 = por %p75, %p76
    %p78 = scmp.ne.s32.totalorder %s64, %s65
    %p79 = scmp.eq.s32.totalorder %s15, 7
    %p80 = por %p78, %p79
    %p82 = scmp.ne.s32.totalorder %s65, %s81
    %p83 = scmp.eq.s32.totalorder %s15, 0
    %p84 = por %p82, %p83
    %s85 = ssub.s32 %s9, %s16
    %p86 = scmp.eq.s32.totalorder %s85, 0
    %s88 = sadd.s32 %s87, 1
    %s89 = scalar_select %p86, %s87, %s88
    %p92 = pneg %p86
    %p93 = scmp.eq.s32.totalorder %s9, 7
    %p94 = por %p92, %p93
    %p95 = scmp.ne.s32.totalorder %s87, %s90
    %p96 = scmp.eq.s32.totalorder %s9, 0
    %p97 = por %p95, %p96
    %p98 = scmp.ne.s32.totalorder %s87, %s90
    %p99 = scmp.eq.s32.totalorder %s14, 7
    %p100 = por %p98, %p99
    %p101 = scmp.ne.s32.totalorder %s90, %s91
    %p102 = scmp.eq.s32.totalorder %s14, 0
    %p103 = por %p101, %p102
    %p104 = scmp.ne.s32.totalorder %s90, %s91
    %p105 = scmp.eq.s32.totalorder %s15, 7
    %p106 = por %p104, %p105
    %p108 = scmp.ne.s32.totalorder %s91, %s107
    %p109 = scmp.eq.s32.totalorder %s15, 0
    %p110 = por %p108, %p109
    %p111 = scmp.le.s32.totalorder 1, %s9
    %p112 = scmp.lt.s32.totalorder %s9, 9
    %p113 = pnand %p111, %p112
    %p114 = pneg %p113
    // Predicated region
    $region9: #{esa_forward.14} parent=5 // pred_check
      _
    $region10: #{esa_forward.14} parent=5 // pred_check_branch
      %116 = sbr.rel (%p113) target = $region12
    $region11: #{esa_forward.14} parent=5 // pred_region
      %s117 = ssub.s32 %s9, 1
      // Predicated region
      $region13: #{esa_forward.14} parent=11 // pred_check
        %p118 = pneg %p30
      $region14: #{esa_forward.14} parent=11 // pred_check_branch
        %120 = sbr.rel (%p118) target = $region16
      $region15: #{esa_forward.14} parent=11 // pred_region
        _
      $region16: #{esa_forward.14} parent=11 // pred_fallthru
        _
      // Predicated region
      $region17: #{esa_forward.14} parent=11 // pred_check
        %p121 = pneg %p51
      $region18: #{esa_forward.14} parent=11 // pred_check_branch
        %123 = sbr.rel (%p121) target = $region20
      $region19: #{esa_forward.14} parent=11 // pred_region
        _
      $region20: #{esa_forward.14} parent=11 // pred_fallthru
        _
    $region12: #{esa_forward.14} parent=5 // pred_fallthru
      _
    %p124 = scmp.lt.s32.totalorder %s9, 8
    // Predicated region
    $region21: #{esa_forward.14} parent=5 // pred_check
      %p125 = pneg %p124
    $region22: #{esa_forward.14} parent=5 // pred_check_branch
      %127 = sbr.rel (%p125) target = $region24
    $region23: #{esa_forward.14} parent=5 // pred_region
      // Predicated region
      $region25: #{esa_forward.14} parent=23 // pred_check
        %p128 = pneg %p71
      $region26: #{esa_forward.14} parent=23 // pred_check_branch
        %130 = sbr.rel (%p128) target = $region28
      $region27: #{esa_forward.14} parent=23 // pred_region
        %p131 = scmp.lt.s32.totalorder %s9, 7
        %s132 = scalar_select %p131, %s9, 7
        %s133 = smul.addr %s132, 4
        %s134 = scalar_lea.vmem %s2, %s133
      $region28: #{esa_forward.14} parent=23 // pred_fallthru
        _
    $region24: #{esa_forward.14} parent=5 // pred_fallthru
      _
    %p135 = scmp.le.s32.totalorder 1, %s9
    %p136 = scmp.lt.s32.totalorder %s9, 9
    %p137 = pnand %p135, %p136
    %p138 = pneg %p137
    // Predicated region
    $region29: #{esa_forward.14} parent=5 // pred_check
      _
    $region30: #{esa_forward.14} parent=5 // pred_check_branch
      %140 = sbr.rel (%p137) target = $region32
    $region31: #{esa_forward.14} parent=5 // pred_region
      %s141 = ssub.s32 %s9, 1
      %p142 = pneg %p30
      %p143 = pneg %p27
      %p144 = pneg %p51
      %p145 = pneg %p48
      %p146 = scmp.lt.s32.totalorder %s14, 7
      %s147 = scalar_select %p146, %s14, 7
      %s148 = smul.addr %s147, 4
      %s149 = scalar_lea.vmem %s2, %s148
      %p150 = pneg %p77
      %p151 = pneg %p74
      %p152 = pneg %p103
      %p153 = pneg %p100
      %p154 = scmp.lt.s32.totalorder %s14, 7
      %s155 = scalar_select %p154, %s14, 7
      %s156 = smul.addr %s155, 4
      %s157 = smul.addr %s156, 8
      %s158 = scalar_lea.vmem %s3, %s157
      %p159 = scmp.lt.s32.totalorder %s14, 7
      %s160 = scalar_select %p159, %s14, 7
      %s161 = smul.addr %s160, 4
      %s162 = scalar_lea.vmem %s2, %s161
      %p163 = scmp.lt.s32.totalorder %s14, 7
      %s164 = scalar_select %p163, %s14, 7
      %s165 = smul.addr %s164, 4
      %s166 = smul.addr %s165, 8
      %s167 = scalar_lea.vmem %s3, %s166
      %v168 = vld [vmem:[%s0] sm:$0xff]
      %v169 = vld [vmem:[%s0 + $0x8] sm:$0xff]
      %v170 = vld [vmem:[%s0 + $0x10] sm:$0xff]
      %v171 = vld [vmem:[%s0 + $0x18] sm:$0xff]
      %v172 = vld [vmem:[%s162] sm:$0x7]
      %vm173 = vcmask 23552
      %v175 = vsel %vm173, %v168, 0
      %v178 = vsel %vm173, %v169, 0
      %v181 = vsel %vm173, %v170, 0
      %v184 = vsel %vm173, %v171, 0
      %vm186 = vcmask 1042432
      %v188 = vsel %vm186, %v172, 0
      %190 = vmatprep.subr.mxu0 0.0
      %191 = vmatpush1.msra.mxu0 %v188
      %192 = vmatprep.subr.mxu0 0.0
      %193 = vmatpush1.msra.mxu0 0.0
      %194 = vmatprep.subr.mxu0 0.0
      %195 = vmatpush1.msra.mxu0 0.0
      %196 = vmatprep.subr.mxu0 0.0
      %197 = vmatpush1.msra.mxu0 0.0
      %198 = vmatprep.subr.mxu0 0.0
      %199 = vmatpush1.msra.mxu0 0.0
      %200 = vmatprep.subr.mxu0 0.0
      %201 = vmatpush1.msra.mxu0 0.0
      %202 = vmatprep.subr.mxu0 0.0
      %203 = vmatpush1.msra.mxu0 0.0
      %204 = vmatprep.subr.mxu0 0.0
      %205 = vmatpush1.msra.mxu0 0.0
      %206 = vmatprep.subr.mxu0 0.0
      %207 = vmatpush1.msra.mxu0 0.0
      %208 = vmatprep.subr.mxu0 0.0
      %209 = vmatpush1.msra.mxu0 0.0
      %210 = vmatprep.subr.mxu0 0.0
      %211 = vmatpush1.msra.mxu0 0.0
      %212 = vmatprep.subr.mxu0 0.0
      %213 = vmatpush1.msra.mxu0 0.0
      %214 = vmatprep.subr.mxu0 0.0
      %215 = vmatpush1.msra.mxu0 0.0
      %216 = vmatprep.subr.mxu0 0.0
      %217 = vmatpush1.msra.mxu0 0.0
      %218 = vmatprep.subr.mxu0 0.0
      %219 = vmatpush1.msra.mxu0 0.0
      %220 = vmatprep.subr.mxu0 0.0
      %221 = vmatpush1.msra.mxu0 0.0
      %222 = vmatprep.subr.mxu0 0.0
      %223 = vmatpush1.msra.mxu0 0.0
      %224 = vmatprep.subr.mxu0 0.0
      %225 = vmatpush1.msra.mxu0 0.0
      %226 = vmatprep.subr.mxu0 0.0
      %227 = vmatpush1.msra.mxu0 0.0
      %228 = vmatprep.subr.mxu0 0.0
      %229 = vmatpush1.msra.mxu0 0.0
      %230 = vmatprep.subr.mxu0 0.0
      %231 = vmatpush1.msra.mxu0 0.0
      %232 = vmatprep.subr.mxu0 0.0
      %233 = vmatpush1.msra.mxu0 0.0
      %234 = vmatprep.subr.mxu0 0.0
      %235 = vmatpush1.msra.mxu0 0.0
      %236 = vmatprep.subr.mxu0 0.0
      %237 = vmatpush1.msra.mxu0 0.0
      %238 = vmatprep.subr.mxu0 0.0
      %239 = vmatpush1.msra.mxu0 0.0
      %240 = vmatprep.subr.mxu0 0.0
      %241 = vmatpush1.msra.mxu0 0.0
      %242 = vmatprep.subr.mxu0 0.0
      %243 = vmatpush1.msra.mxu0 0.0
      %244 = vmatprep.subr.mxu0 0.0
      %245 = vmatpush1.msra.mxu0 0.0
      %246 = vmatprep.subr.mxu0 0.0
      %247 = vmatpush1.msra.mxu0 0.0
      %248 = vmatprep.subr.mxu0 0.0
      %249 = vmatpush1.msra.mxu0 0.0
      %250 = vmatprep.subr.mxu0 0.0
      %251 = vmatpush1.msra.mxu0 0.0
      %252 = vmatprep.subr.mxu0 0.0
      %253 = vmatpush1.msra.mxu0 0.0
      %254 = vmatprep.mubr.f32.mxu0 0.0
      %255 = vmatmul.mubr.f32.gmra.mrb[0].mxu0 %v175
      %v256 = vpop.f32.mrb[0].mxu0
      %v257 = vadd.f32 0.0, %v256
      %v258 = vpop.f32.mrb[0].mxu0
      %259 = vmatprep.mubr.f32.mxu0 0.0
      %260 = vmatmul.mubr.f32.gmra.mrb[0].mxu0 %v178
      %v261 = vpop.f32.mrb[0].mxu0
      %v262 = vadd.f32 0.0, %v261
      %v263 = vpop.f32.mrb[0].mxu0
      %264 = vmatprep.mubr.f32.mxu0 0.0
      %265 = vmatmul.mubr.f32.gmra.mrb[0].mxu0 %v181
      %v266 = vpop.f32.mrb[0].mxu0
      %v267 = vadd.f32 0.0, %v266
      %v268 = vpop.f32.mrb[0].mxu0
      %269 = vmatprep.mubr.f32.mxu0 0.0
      %270 = vmatmul.mubr.f32.gmra.mrb[0].mxu0 %v184
      %v271 = vpop.f32.mrb[0].mxu0
      %v272 = vadd.f32 0.0, %v271
      %v273 = vpop.f32.mrb[0].mxu0
      %274 = vdwg.mxu0
      %v275 = vld [vmem:[%s1] sm:$0x7]
      %v277 = vsel %vm173, %v257, 0
      %v280 = vsel %vm173, %v262, 0
      %v283 = vsel %vm173, %v267, 0
      %v286 = vsel %vm173, %v272, 0
      %v289 = vsel %vm186, %v275, 0
      %291 = vmatprep.subr.mxu0 0.0
      %292 = vmatpush1.msra.mxu0 %v289
      %293 = vmatprep.subr.mxu0 0.0
      %294 = vmatpush1.msra.mxu0 0.0
      %295 = vmatprep.subr.mxu0 0.0
      %296 = vmatpush1.msra.mxu0 0.0
      %297 = vmatprep.subr.mxu0 0.0
      %298 = vmatpush1.msra.mxu0 0.0
      %299 = vmatprep.subr.mxu0 0.0
      %300 = vmatpush1.msra.mxu0 0.0
      %301 = vmatprep.subr.mxu0 0.0
      %302 = vmatpush1.msra.mxu0 0.0
      %303 = vmatprep.subr.mxu0 0.0
      %304 = vmatpush1.msra.mxu0 0.0
      %305 = vmatprep.subr.mxu0 0.0
      %306 = vmatpush1.msra.mxu0 0.0
      %307 = vmatprep.subr.mxu0 0.0
      %308 = vmatpush1.msra.mxu0 0.0
      %309 = vmatprep.subr.mxu0 0.0
      %310 = vmatpush1.msra.mxu0 0.0
      %311 = vmatprep.subr.mxu0 0.0
      %312 = vmatpush1.msra.mxu0 0.0
      %313 = vmatprep.subr.mxu0 0.0
      %314 = vmatpush1.msra.mxu0 0.0
      %315 = vmatprep.subr.mxu0 0.0
      %316 = vmatpush1.msra.mxu0 0.0
      %317 = vmatprep.subr.mxu0 0.0
      %318 = vmatpush1.msra.mxu0 0.0
      %319 = vmatprep.subr.mxu0 0.0
      %320 = vmatpush1.msra.mxu0 0.0
      %321 = vmatprep.subr.mxu0 0.0
      %322 = vmatpush1.msra.mxu0 0.0
      %323 = vmatprep.subr.mxu0 0.0
      %324 = vmatpush1.msra.mxu0 0.0
      %325 = vmatprep.subr.mxu0 0.0
      %326 = vmatpush1.msra.mxu0 0.0
      %327 = vmatprep.subr.mxu0 0.0
      %328 = vmatpush1.msra.mxu0 0.0
      %329 = vmatprep.subr.mxu0 0.0
      %330 = vmatpush1.msra.mxu0 0.0
      %331 = vmatprep.subr.mxu0 0.0
      %332 = vmatpush1.msra.mxu0 0.0
      %333 = vmatprep.subr.mxu0 0.0
      %334 = vmatpush1.msra.mxu0 0.0
      %335 = vmatprep.subr.mxu0 0.0
      %336 = vmatpush1.msra.mxu0 0.0
      %337 = vmatprep.subr.mxu0 0.0
      %338 = vmatpush1.msra.mxu0 0.0
      %339 = vmatprep.subr.mxu0 0.0
      %340 = vmatpush1.msra.mxu0 0.0
      %341 = vmatprep.subr.mxu0 0.0
      %342 = vmatpush1.msra.mxu0 0.0
      %343 = vmatprep.subr.mxu0 0.0
      %344 = vmatpush1.msra.mxu0 0.0
      %345 = vmatprep.subr.mxu0 0.0
      %346 = vmatpush1.msra.mxu0 0.0
      %347 = vmatprep.subr.mxu0 0.0
      %348 = vmatpush1.msra.mxu0 0.0
      %349 = vmatprep.subr.mxu0 0.0
      %350 = vmatpush1.msra.mxu0 0.0
      %351 = vmatprep.subr.mxu0 0.0
      %352 = vmatpush1.msra.mxu0 0.0
      %353 = vmatprep.subr.mxu0 0.0
      %354 = vmatpush1.msra.mxu0 0.0
      %355 = vmatprep.mubr.f32.mxu0 0.0
      %356 = vmatmul.mubr.f32.gmra.mrb[0].mxu0 %v277
      %v357 = vpop.f32.mrb[0].mxu0
      %v358 = vadd.f32 0.0, %v357
      %v359 = vpop.f32.mrb[0].mxu0
      %360 = vmatprep.mubr.f32.mxu0 0.0
      %361 = vmatmul.mubr.f32.gmra.mrb[0].mxu0 %v280
      %v362 = vpop.f32.mrb[0].mxu0
      %v363 = vadd.f32 0.0, %v362
      %v364 = vpop.f32.mrb[0].mxu0
      %365 = vmatprep.mubr.f32.mxu0 0.0
      %366 = vmatmul.mubr.f32.gmra.mrb[0].mxu0 %v283
      %v367 = vpop.f32.mrb[0].mxu0
      %v368 = vadd.f32 0.0, %v367
      %v369 = vpop.f32.mrb[0].mxu0
      %370 = vmatprep.mubr.f32.mxu0 0.0
      %371 = vmatmul.mubr.f32.gmra.mrb[0].mxu0 %v286
      %v372 = vpop.f32.mrb[0].mxu0
      %v373 = vadd.f32 0.0, %v372
      %v374 = vpop.f32.mrb[0].mxu0
      %375 = vdwg.mxu0
      %vm376 = vcmask 261120
      %377 = vst.msk [vmem:[%s167] sm:$0xff] %vm376, %v358
      %378 = vst.msk [vmem:[%s167 + $0x8] sm:$0xff] %vm376, %v363
      %379 = vst.msk [vmem:[%s167 + $0x10] sm:$0xff] %vm376, %v368
      %380 = vst.msk [vmem:[%s167 + $0x18] sm:$0xff] %vm376, %v373
      %p381 = scmp.lt.s32.totalorder %s14, 7
      %s382 = scalar_select %p381, %s14, 7
      %s383 = smul.addr %s382, 4
      %s384 = smul.addr %s383, 8
      %s385 = scalar_lea.vmem %s3, %s384
      // Predicated region
      $region33: #{esa_forward.14} parent=31 // pred_check
        %p386 = pneg %p100
      $region34: #{esa_forward.14} parent=31 // pred_check_branch
        %388 = sbr.rel (%p386) target = $region36
      $region35: #{esa_forward.14} parent=31 // pred_region
        _
      $region36: #{esa_forward.14} parent=31 // pred_fallthru
        _
    $region32: #{esa_forward.14} parent=5 // pred_fallthru
      _
    %p389 = scmp.le.s32.totalorder 2, %s9
    // Predicated region
    $region37: #{esa_forward.14} parent=5 // pred_check
      %p390 = pneg %p389
    $region38: #{esa_forward.14} parent=5 // pred_check_branch
      %392 = sbr.rel (%p390) target = $region40
    $region39: #{esa_forward.14} parent=5 // pred_region
      %s393 = ssub.s32 %s9, 2
      // Predicated region
      $region41: #{esa_forward.14} parent=39 // pred_check
        %p394 = pneg %p106
      $region42: #{esa_forward.14} parent=39 // pred_check_branch
        %396 = sbr.rel (%p394) target = $region44
      $region43: #{esa_forward.14} parent=39 // pred_region
        %p397 = scmp.lt.s32.totalorder %s15, 7
        %s398 = scalar_select %p397, %s15, 7
        %s399 = smul.addr %s398, 4
        %s400 = smul.addr %s399, 8
        %s401 = scalar_lea.vmem %s3, %s400
      $region44: #{esa_forward.14} parent=39 // pred_fallthru
        _
    $region40: #{esa_forward.14} parent=5 // pred_fallthru
      _
  $region6: #{esa_forward.14} parent=0 // loop_footer
    %s13 = sadd.s32 1, %s9
  $region7: #{esa_forward.14} parent=0 // loop_footer_branch
    %8 = sbr.rel target = $region3
  $region8: #{esa_forward.14} parent=0 // loop_exit
    _

// kernel: esa_forward.15
$region0: #{esa_forward.15}
  #allocation0 [shape = 'u32[]', space=smem, size = 0x4, offset = 0x4, fixed_abs, tag = 'smem constant byte address 0x4 - core index']
  #allocation1 [shape = 'u32[144,128]{1,0:T(1,128)}', space=vmem, size = 0x12000, scoped, tag = 'internal scratch']
  %s0 = inlined_call_operand.vmem [shape: f32[4,4], index: 0, kind: input, shape index: {}]
  %s1 = inlined_call_operand.vmem [shape: f32[4,1], index: 1, kind: input, shape index: {}]
  %s2 = inlined_call_operand.vmem [shape: f32[16,4], index: 2, kind: input, shape index: {}]
  %s3 = inlined_call_operand.vmem [shape: f32[16,1], index: 3, kind: input, shape index: {}]
  %s4 = inlined_call_operand.vmem [shape: f32[2,4,1024], index: 4, kind: input, shape index: {}]
  %s5 = inlined_call_operand.vmem [shape: f32[2,4,1024], index: 5, kind: input, shape index: {}]
  %s6 = inlined_call_operand.vmem [shape: f32[2,16,1024], index: 6, kind: input, shape index: {}]
  %s7 = inlined_call_operand.vmem [shape: f32[2,16,1024], index: 7, kind: output, shape index: {}]
  %s8 = sld [smem:[#allocation0]]
  $region61: #{esa_forward.15} parent=0
    _
  %s10 = ssub.s32 1, %s8
  %s11 = scalar_select 0, %s10, %s8
  loop: start=0, step=1, limit=4
  $region2: #{esa_forward.15} parent=0 // loop_pre_header
    _
  $region3: #{esa_forward.15} parent=0 // loop_header
    %s13 = sphi 0, %s17
    %p14 = scmp.ge.s32.totalorder %s13, 4
    %s20 = sphi 0, %s32
    %s21 = sphi 0, %s28
    %s22 = sphi 0, %s20
    %s23 = sphi 0, %s21
    %s24 = sphi 0, %s22
    %s25 = sphi 0, %s23
    %s33 = sphi 0, %s33
    %s35 = sphi 0, %s33
    %s36 = sphi 0, %s35
    %s50 = sphi 0, %s36
    %s54 = sphi 0, %s54
    %s56 = sphi 0, %s54
    %s57 = sphi 0, %s56
    %s71 = sphi 0, %s57
    %s75 = sphi 0, %s75
    %s77 = sphi 0, %s75
    %s78 = sphi 0, %s77
    %s92 = sphi 0, %s78
    %s96 = sphi 0, %s96
    %s98 = sphi 0, %s96
    %s99 = sphi 0, %s98
    %s113 = sphi 0, %s99
    %s121 = sphi 0, %s123
    %s124 = sphi 0, %s121
    %s125 = sphi 0, %s124
    %s141 = sphi 0, %s125
    %s149 = sphi 0, %s151
    %s152 = sphi 0, %s149
    %s153 = sphi 0, %s152
    %s169 = sphi 0, %s153
    %s177 = sphi 0, %s179
    %s180 = sphi 0, %s177
    %s181 = sphi 0, %s180
    %s197 = sphi 0, %s181
    %s205 = sphi 0, %s207
    %s208 = sphi 0, %s205
    %s209 = sphi 0, %s208
    %s225 = sphi 0, %s209
  $region4: #{esa_forward.15} parent=0 // loop_header_branch
    %16 = sbr.rel (%p14) target = $region8
  $region5: #{esa_forward.15} parent=0 // loop_body
    %s18 = ssub.s32 %s13, 1
    %s19 = ssub.s32 %s13, 2
    %s26 = sadd.s32 1, %s21
    %p27 = scmp.ge.s32.totalorder %s26, 1
    %s28 = scalar_select %p27, 0, %s26
    %s29 = sadd.s32 1, %s20
    %s30 = scalar_select %p27, %s29, %s20
    %p31 = scmp.ge.s32.totalorder %s30, 2
    %s32 = scalar_select %p31, 0, %s30
    %s34 = sadd.s32 %s33, 1
    %p37 = scmp.eq.s32.totalorder %s13, 1
    %p38 = scmp.ne.s32.totalorder %s33, %s35
    %p39 = scmp.eq.s32.totalorder %s13, 0
    %p40 = por %p38, %p39
    %p41 = scmp.ne.s32.totalorder %s33, %s35
    %p42 = scmp.eq.s32.totalorder %s18, 1
    %p43 = por %p41, %p42
    %p44 = scmp.ne.s32.totalorder %s35, %s36
    %p45 = scmp.eq.s32.totalorder %s18, 0
    %p46 = por %p44, %p45
    %p47 = scmp.ne.s32.totalorder %s35, %s36
    %p48 = scmp.eq.s32.totalorder %s19, 1
    %p49 = por %p47, %p48
    %p51 = scmp.ne.s32.totalorder %s36, %s50
    %p52 = scmp.eq.s32.totalorder %s19, 0
    %p53 = por %p51, %p52
    %s55 = sadd.s32 %s54, 1
    %p58 = scmp.eq.s32.totalorder %s13, 1
    %p59 = scmp.ne.s32.totalorder %s54, %s56
    %p60 = scmp.eq.s32.totalorder %s13, 0
    %p61 = por %p59, %p60
    %p62 = scmp.ne.s32.totalorder %s54, %s56
    %p63 = scmp.eq.s32.totalorder %s18, 1
    %p64 = por %p62, %p63
    %p65 = scmp.ne.s32.totalorder %s56, %s57
    %p66 = scmp.eq.s32.totalorder %s18, 0
    %p67 = por %p65, %p66
    %p68 = scmp.ne.s32.totalorder %s56, %s57
    %p69 = scmp.eq.s32.totalorder %s19, 1
    %p70 = por %p68, %p69
    %p72 = scmp.ne.s32.totalorder %s57, %s71
    %p73 = scmp.eq.s32.totalorder %s19, 0
    %p74 = por %p72, %p73
    %s76 = sadd.s32 %s75, 1
    %p79 = scmp.eq.s32.totalorder %s13, 1
    %p80 = scmp.ne.s32.totalorder %s75, %s77
    %p81 = scmp.eq.s32.totalorder %s13, 0
    %p82 = por %p80, %p81
    %p83 = scmp.ne.s32.totalorder %s75, %s77
    %p84 = scmp.eq.s32.totalorder %s18, 1
    %p85 = por %p83, %p84
    %p86 = scmp.ne.s32.totalorder %s77, %s78
    %p87 = scmp.eq.s32.totalorder %s18, 0
    %p88 = por %p86, %p87
    %p89 = scmp.ne.s32.totalorder %s77, %s78
    %p90 = scmp.eq.s32.totalorder %s19, 1
    %p91 = por %p89, %p90
    %p93 = scmp.ne.s32.totalorder %s78, %s92
    %p94 = scmp.eq.s32.totalorder %s19, 0
    %p95 = por %p93, %p94
    %s97 = sadd.s32 %s96, 1
    %p100 = scmp.eq.s32.totalorder %s13, 1
    %p101 = scmp.ne.s32.totalorder %s96, %s98
    %p102 = scmp.eq.s32.totalorder %s13, 0
    %p103 = por %p101, %p102
    %p104 = scmp.ne.s32.totalorder %s96, %s98
    %p105 = scmp.eq.s32.totalorder %s18, 1
    %p106 = por %p104, %p105
    %p107 = scmp.ne.s32.totalorder %s98, %s99
    %p108 = scmp.eq.s32.totalorder %s18, 0
    %p109 = por %p107, %p108
    %p110 = scmp.ne.s32.totalorder %s98, %s99
    %p111 = scmp.eq.s32.totalorder %s19, 1
    %p112 = por %p110, %p111
    %p114 = scmp.ne.s32.totalorder %s99, %s113
    %p115 = scmp.eq.s32.totalorder %s19, 0
    %p116 = por %p114, %p115
    %s117 = ssub.s32 %s20, %s32
    %s118 = ssub.s32 %s21, %s28
    %s119 = sor.u32 %s117, %s118
    %p120 = scmp.eq.s32.totalorder %s119, 0
    %s122 = sadd.s32 %s121, 1
    %s123 = scalar_select %p120, %s121, %s122
    %p126 = pneg %p120
    %p127 = scmp.eq.s32.totalorder %s13, 1
    %p128 = por %p126, %p127
    %p129 = scmp.ne.s32.totalorder %s121, %s124
    %p130 = scmp.eq.s32.totalorder %s13, 0
    %p131 = por %p129, %p130
    %p132 = scmp.ne.s32.totalorder %s121, %s124
    %p133 = scmp.eq.s32.totalorder %s18, 1
    %p134 = por %p132, %p133
    %p135 = scmp.ne.s32.totalorder %s124, %s125
    %p136 = scmp.eq.s32.totalorder %s18, 0
    %p137 = por %p135, %p136
    %p138 = scmp.ne.s32.totalorder %s124, %s125
    %p139 = scmp.eq.s32.totalorder %s19, 1
    %p140 = por %p138, %p139
    %p142 = scmp.ne.s32.totalorder %s125, %s141
    %p143 = scmp.eq.s32.totalorder %s19, 0
    %p144 = por %p142, %p143
    %s145 = ssub.s32 %s20, %s32
    %s146 = ssub.s32 %s21, %s28
    %s147 = sor.u32 %s145, %s146
    %p148 = scmp.eq.s32.totalorder %s147, 0
    %s150 = sadd.s32 %s149, 1
    %s151 = scalar_select %p148, %s149, %s150
    %p154 = pneg %p148
    %p155 = scmp.eq.s32.totalorder %s13, 1
    %p156 = por %p154, %p155
    %p157 = scmp.ne.s32.totalorder %s149, %s152
    %p158 = scmp.eq.s32.totalorder %s13, 0
    %p159 = por %p157, %p158
    %p160 = scmp.ne.s32.totalorder %s149, %s152
    %p161 = scmp.eq.s32.totalorder %s18, 1
    %p162 = por %p160, %p161
    %p163 = scmp.ne.s32.totalorder %s152, %s153
    %p164 = scmp.eq.s32.totalorder %s18, 0
    %p165 = por %p163, %p164
    %p166 = scmp.ne.s32.totalorder %s152, %s153
    %p167 = scmp.eq.s32.totalorder %s19, 1
    %p168 = por %p166, %p167
    %p170 = scmp.ne.s32.totalorder %s153, %s169
    %p171 = scmp.eq.s32.totalorder %s19, 0
    %p172 = por %p170, %p171
    %s173 = ssub.s32 %s20, %s32
    %s174 = ssub.s32 %s21, %s28
    %s175 = sor.u32 %s173, %s174
    %p176 = scmp.eq.s32.totalorder %s175, 0
    %s178 = sadd.s32 %s177, 1
    %s179 = scalar_select %p176, %s177, %s178
    %p182 = pneg %p176
    %p183 = scmp.eq.s32.totalorder %s13, 1
    %p184 = por %p182, %p183
    %p185 = scmp.ne.s32.totalorder %s177, %s180
    %p186 = scmp.eq.s32.totalorder %s13, 0
    %p187 = por %p185, %p186
    %p188 = scmp.ne.s32.totalorder %s177, %s180
    %p189 = scmp.eq.s32.totalorder %s18, 1
    %p190 = por %p188, %p189
    %p191 = scmp.ne.s32.totalorder %s180, %s181
    %p192 = scmp.eq.s32.totalorder %s18, 0
    %p193 = por %p191, %p192
    %p194 = scmp.ne.s32.totalorder %s180, %s181
    %p195 = scmp.eq.s32.totalorder %s19, 1
    %p196 = por %p194, %p195
    %p198 = scmp.ne.s32.totalorder %s181, %s197
    %p199 = scmp.eq.s32.totalorder %s19, 0
    %p200 = por %p198, %p199
    %s201 = ssub.s32 %s20, %s32
    %s202 = ssub.s32 %s21, %s28
    %s203 = sor.u32 %s201, %s202
    %p204 = scmp.eq.s32.totalorder %s203, 0
    %s206 = sadd.s32 %s205, 1
    %s207 = scalar_select %p204, %s205, %s206
    %p210 = pneg %p204
    %p211 = scmp.eq.s32.totalorder %s13, 1
    %p212 = por %p210, %p211
    %p213 = scmp.ne.s32.totalorder %s205, %s208
    %p214 = scmp.eq.s32.totalorder %s13, 0
    %p215 = por %p213, %p214
    %p216 = scmp.ne.s32.totalorder %s205, %s208
    %p217 = scmp.eq.s32.totalorder %s18, 1
    %p218 = por %p216, %p217
    %p219 = scmp.ne.s32.totalorder %s208, %s209
    %p220 = scmp.eq.s32.totalorder %s18, 0
    %p221 = por %p219, %p220
    %p222 = scmp.ne.s32.totalorder %s208, %s209
    %p223 = scmp.eq.s32.totalorder %s19, 1
    %p224 = por %p222, %p223
    %p226 = scmp.ne.s32.totalorder %s209, %s225
    %p227 = scmp.eq.s32.totalorder %s19, 0
    %p228 = por %p226, %p227
    %p229 = scmp.le.s32.totalorder 1, %s13
    %p230 = scmp.lt.s32.totalorder %s13, 3
    %p231 = pnand %p229, %p230
    %p232 = pneg %p231
    // Predicated region
    $region9: #{esa_forward.15} parent=5 // pred_check
      _
    $region10: #{esa_forward.15} parent=5 // pred_check_branch
      %234 = sbr.rel (%p231) target = $region12
    $region11: #{esa_forward.15} parent=5 // pred_region
      %s235 = ssub.s32 %s13, 1
      // Predicated region
      $region13: #{esa_forward.15} parent=11 // pred_check
        %p236 = pneg %p46
      $region14: #{esa_forward.15} parent=11 // pred_check_branch
        %238 = sbr.rel (%p236) target = $region16
      $region15: #{esa_forward.15} parent=11 // pred_region
        _
      $region16: #{esa_forward.15} parent=11 // pred_fallthru
        _
      // Predicated region
      $region17: #{esa_forward.15} parent=11 // pred_check
        %p239 = pneg %p67
      $region18: #{esa_forward.15} parent=11 // pred_check_branch
        %241 = sbr.rel (%p239) target = $region20
      $region19: #{esa_forward.15} parent=11 // pred_region
        _
      $region20: #{esa_forward.15} parent=11 // pred_fallthru
        _
      // Predicated region
      $region21: #{esa_forward.15} parent=11 // pred_check
        %p242 = pneg %p88
      $region22: #{esa_forward.15} parent=11 // pred_check_branch
        %244 = sbr.rel (%p242) target = $region24
      $region23: #{esa_forward.15} parent=11 // pred_region
        _
      $region24: #{esa_forward.15} parent=11 // pred_fallthru
        _
      // Predicated region
      $region25: #{esa_forward.15} parent=11 // pred_check
        %p245 = pneg %p109
      $region26: #{esa_forward.15} parent=11 // pred_check_branch
        %247 = sbr.rel (%p245) target = $region28
      $region27: #{esa_forward.15} parent=11 // pred_region
        _
      $region28: #{esa_forward.15} parent=11 // pred_fallthru
        _
    $region12: #{esa_forward.15} parent=5 // pred_fallthru
      _
    %p248 = scmp.lt.s32.totalorder %s13, 2
    // Predicated region
    $region29: #{esa_forward.15} parent=5 // pred_check
      %p249 = pneg %p248
    $region30: #{esa_forward.15} parent=5 // pred_check_branch
      %251 = sbr.rel (%p249) target = $region32
    $region31: #{esa_forward.15} parent=5 // pred_region
      // Predicated region
      $region33: #{esa_forward.15} parent=31 // pred_check
        %p252 = pneg %p131
      $region34: #{esa_forward.15} parent=31 // pred_check_branch
        %254 = sbr.rel (%p252) target = $region36
      $region35: #{esa_forward.15} parent=31 // pred_region
        %s255 = smul.u32 8, %s21
        %p256 = scmp.lt.s32.totalorder %s20, 1
        %s257 = scalar_select %p256, %s20, 1
        %p258 = scmp.lt.s32.totalorder %s255, 7
        %s259 = scalar_select %p258, %s255, 7
        %s260 = smul.addr %s257, 8
        %s261 = sadd.s32 %s259, %s260
        %s262 = smul.addr %s261, 4
        %s263 = scalar_lea.vmem %s4, %s262
        %s264 = smul.u32 8, %s21
      $region36: #{esa_forward.15} parent=31 // pred_fallthru
        _
      // Predicated region
      $region37: #{esa_forward.15} parent=31 // pred_check
        %p265 = pneg %p159
      $region38: #{esa_forward.15} parent=31 // pred_check_branch
        %267 = sbr.rel (%p265) target = $region40
      $region39: #{esa_forward.15} parent=31 // pred_region
        %s268 = smul.u32 8, %s21
        %p269 = scmp.lt.s32.totalorder %s20, 1
        %s270 = scalar_select %p269, %s20, 1
        %p271 = scmp.lt.s32.totalorder %s268, 7
        %s272 = scalar_select %p271, %s268, 7
        %s273 = smul.addr %s270, 8
        %s274 = sadd.s32 %s272, %s273
        %s275 = smul.addr %s274, 4
        %s276 = scalar_lea.vmem %s5, %s275
        %s277 = smul.u32 8, %s21
      $region40: #{esa_forward.15} parent=31 // pred_fallthru
        _
      // Predicated region
      $region41: #{esa_forward.15} parent=31 // pred_check
        %p278 = pneg %p187
      $region42: #{esa_forward.15} parent=31 // pred_check_branch
        %280 = sbr.rel (%p278) target = $region44
      $region43: #{esa_forward.15} parent=31 // pred_region
        %s281 = smul.u32 8, %s21
        %p282 = scmp.lt.s32.totalorder %s20, 1
        %s283 = scalar_select %p282, %s20, 1
        %p284 = scmp.lt.s32.totalorder %s281, 7
        %s285 = scalar_select %p284, %s281, 7
        %s286 = smul.addr %s283, 16
        %s287 = sadd.s32 %s285, %s286
        %s288 = smul.addr %s287, 8
        %s289 = scalar_lea.vmem %s6, %s288
        %s290 = smul.u32 8, %s21
      $region44: #{esa_forward.15} parent=31 // pred_fallthru
        _
    $region32: #{esa_forward.15} parent=5 // pred_fallthru
      _
    %p291 = scmp.le.s32.totalorder 1, %s13
    %p292 = scmp.lt.s32.totalorder %s13, 3
    %p293 = pnand %p291, %p292
    %p294 = pneg %p293
    // Predicated region
    $region45: #{esa_forward.15} parent=5 // pred_check
      _
    $region46: #{esa_forward.15} parent=5 // pred_check_branch
      %296 = sbr.rel (%p293) target = $region48
    $region47: #{esa_forward.15} parent=5 // pred_region
      %s297 = ssub.s32 %s13, 1
      %p298 = pneg %p46
      %p299 = pneg %p43
      %p300 = pneg %p67
      %p301 = pneg %p64
      %p302 = pneg %p88
      %p303 = pneg %p85
      %p304 = pneg %p109
      %p305 = pneg %p106
      %s306 = smul.u32 8, %s23
      %p307 = scmp.lt.s32.totalorder %s22, 1
      %s308 = scalar_select %p307, %s22, 1
      %p309 = scmp.lt.s32.totalorder %s306, 7
      %s310 = scalar_select %p309, %s306, 7
      %s311 = smul.addr %s308, 8
      %s312 = sadd.s32 %s310, %s311
      %s313 = smul.addr %s312, 4
      %s314 = scalar_lea.vmem %s4, %s313
      %p315 = pneg %p137
      %p316 = pneg %p134
      %s317 = smul.u32 8, %s23
      %p318 = scmp.lt.s32.totalorder %s22, 1
      %s319 = scalar_select %p318, %s22, 1
      %p320 = scmp.lt.s32.totalorder %s317, 7
      %s321 = scalar_select %p320, %s317, 7
      %s322 = smul.addr %s319, 8
      %s323 = sadd.s32 %s321, %s322
      %s324 = smul.addr %s323, 4
      %s325 = scalar_lea.vmem %s5, %s324
      %p326 = pneg %p165
      %p327 = pneg %p162
      %s328 = smul.u32 8, %s23
      %p329 = scmp.lt.s32.totalorder %s22, 1
      %s330 = scalar_select %p329, %s22, 1
      %p331 = scmp.lt.s32.totalorder %s328, 7
      %s332 = scalar_select %p331, %s328, 7
      %s333 = smul.addr %s330, 16
      %s334 = sadd.s32 %s332, %s333
      %s335 = smul.addr %s334, 8
      %s336 = scalar_lea.vmem %s6, %s335
      %p337 = pneg %p193
      %p338 = pneg %p190
      %p339 = pneg %p221
      %p340 = pneg %p218
      %s341 = smul.u32 8, %s23
      %p342 = scmp.lt.s32.totalorder %s22, 1
      %s343 = scalar_select %p342, %s22, 1
      %p344 = scmp.lt.s32.totalorder %s341, 7
      %s345 = scalar_select %p344, %s341, 7
      %s346 = smul.addr %s343, 16
      %s347 = sadd.s32 %s345, %s346
      %s348 = smul.addr %s347, 8
      %s349 = scalar_lea.vmem %s7, %s348
      %s350 = smul.u32 8, %s23
      %p351 = scmp.lt.s32.totalorder %s22, 1
      %s352 = scalar_select %p351, %s22, 1
      %p353 = scmp.lt.s32.totalorder %s350, 7
      %s354 = scalar_select %p353, %s350, 7
      %s355 = smul.addr %s352, 8
      %s356 = sadd.s32 %s354, %s355
      %s357 = smul.addr %s356, 4
      %s358 = scalar_lea.vmem %s4, %s357
      %s359 = smul.u32 8, %s23
      %s360 = smul.u32 8, %s23
      %p361 = scmp.lt.s32.totalorder %s22, 1
      %s362 = scalar_select %p361, %s22, 1
      %p363 = scmp.lt.s32.totalorder %s360, 7
      %s364 = scalar_select %p363, %s360, 7
      %s365 = smul.addr %s362, 8
      %s366 = sadd.s32 %s364, %s365
      %s367 = smul.addr %s366, 4
      %s368 = scalar_lea.vmem %s5, %s367
      %s369 = smul.u32 8, %s23
      %s370 = smul.u32 8, %s23
      %p371 = scmp.lt.s32.totalorder %s22, 1
      %s372 = scalar_select %p371, %s22, 1
      %p373 = scmp.lt.s32.totalorder %s370, 7
      %s374 = scalar_select %p373, %s370, 7
      %s375 = smul.addr %s372, 16
      %s376 = sadd.s32 %s374, %s375
      %s377 = smul.addr %s376, 8
      %s378 = scalar_lea.vmem %s6, %s377
      %s379 = smul.u32 8, %s23
      %s380 = smul.u32 8, %s23
      %p381 = scmp.lt.s32.totalorder %s22, 1
      %s382 = scalar_select %p381, %s22, 1
      %p383 = scmp.lt.s32.totalorder %s380, 7
      %s384 = scalar_select %p383, %s380, 7
      %s385 = smul.addr %s382, 16
      %s386 = sadd.s32 %s384, %s385
      %s387 = smul.addr %s386, 8
      %s388 = scalar_lea.vmem %s7, %s387
      %s389 = smul.u32 8, %s23
      %v390 = vld [vmem:[%s0] sm:$0xf]
      %v391 = vld [vmem:[%s368] sm:$0xff]
      %v392 = vld [vmem:[%s368 + $0x8] sm:$0xff]
      %v393 = vld [vmem:[%s368 + $0x10] sm:$0xff]
      %v394 = vld [vmem:[%s368 + $0x18] sm:$0xff]
      %v395 = vld [vmem:[%s1] sm:$0xf]
      %397 = vset.pattern.permute.xlu0 0
      %398 = vperm.xlu0 %397, %v395
      %v399 = vpop.permute.xlu0 %398
      %v405 = vcombine.high %v391, %v391
      %v406 = vcombine.high %v392, %v392
      %v407 = vcombine.high %v393, %v393
      %v408 = vcombine.high %v394, %v394
      %vm409 = vcmask 31744
      %v411 = vsel %vm409, %v390, 0
      %vm413 = vcmask 1043456
      %v414 = vsel %vm413, %v391, 0
      %v416 = vsel %vm413, %v405, 0
      %v418 = vsel %vm413, %v392, 0
      %v420 = vsel %vm413, %v406, 0
      %v422 = vsel %vm413, %v393, 0
      %v424 = vsel %vm413, %v407, 0
      %v426 = vsel %vm413, %v394, 0
      %v428 = vsel %vm413, %v408, 0
      %430 = vmatprep.subr.mxu0 %v416
      %431 = vmatpush1.msra.mxu0 %v414
      %432 = vmatprep.subr.mxu0 0.0
      %433 = vmatpush1.msra.mxu0 0.0
      %434 = vmatprep.subr.mxu0 0.0
      %435 = vmatpush1.msra.mxu0 0.0
      %436 = vmatprep.subr.mxu0 0.0
      %437 = vmatpush1.msra.mxu0 0.0
      %438 = vmatprep.subr.mxu0 0.0
      %439 = vmatpush1.msra.mxu0 0.0
      %440 = vmatprep.subr.mxu0 0.0
      %441 = vmatpush1.msra.mxu0 0.0
      %442 = vmatprep.subr.mxu0 0.0
      %443 = vmatpush1.msra.mxu0 0.0
      %444 = vmatprep.subr.mxu0 0.0
      %445 = vmatpush1.msra.mxu0 0.0
      %446 = vmatprep.subr.mxu0 0.0
      %447 = vmatpush1.msra.mxu0 0.0
      %448 = vmatprep.subr.mxu0 0.0
      %449 = vmatpush1.msra.mxu0 0.0
      %450 = vmatprep.subr.mxu0 0.0
      %451 = vmatpush1.msra.mxu0 0.0
      %452 = vmatprep.subr.mxu0 0.0
      %453 = vmatpush1.msra.mxu0 0.0
      %454 = vmatprep.subr.mxu0 0.0
      %455 = vmatpush1.msra.mxu0 0.0
      %456 = vmatprep.subr.mxu0 0.0
      %457 = vmatpush1.msra.mxu0 0.0
      %458 = vmatprep.subr.mxu0 0.0
      %459 = vmatpush1.msra.mxu0 0.0
      %460 = vmatprep.subr.mxu0 0.0
      %461 = vmatpush1.msra.mxu0 0.0
      %462 = vmatprep.subr.mxu0 0.0
      %463 = vmatpush1.msra.mxu0 0.0
      %464 = vmatprep.subr.mxu0 0.0
      %465 = vmatpush1.msra.mxu0 0.0
      %466 = vmatprep.subr.mxu0 0.0
      %467 = vmatpush1.msra.mxu0 0.0
      %468 = vmatprep.subr.mxu0 0.0
      %469 = vmatpush1.msra.mxu0 0.0
      %470 = vmatprep.subr.mxu0 0.0
      %471 = vmatpush1.msra.mxu0 0.0
      %472 = vmatprep.subr.mxu0 0.0
      %473 = vmatpush1.msra.mxu0 0.0
      %474 = vmatprep.subr.mxu0 0.0
      %475 = vmatpush1.msra.mxu0 0.0
      %476 = vmatprep.subr.mxu0 0.0
      %477 = vmatpush1.msra.mxu0 0.0
      %478 = vmatprep.subr.mxu0 0.0
      %479 = vmatpush1.msra.mxu0 0.0
      %480 = vmatprep.subr.mxu0 0.0
      %481 = vmatpush1.msra.mxu0 0.0
      %482 = vmatprep.subr.mxu0 0.0
      %483 = vmatpush1.msra.mxu0 0.0
      %484 = vmatprep.subr.mxu0 0.0
      %485 = vmatpush1.msra.mxu0 0.0
      %486 = vmatprep.subr.mxu0 0.0
      %487 = vmatpush1.msra.mxu0 0.0
      %488 = vmatprep.subr.mxu0 0.0
      %489 = vmatpush1.msra.mxu0 0.0
      %490 = vmatprep.subr.mxu0 0.0
      %491 = vmatpush1.msra.mxu0 0.0
      %492 = vmatprep.subr.mxu0 0.0
      %493 = vmatpush1.msra.mxu0 0.0
      %494 = vmatprep.mubr.f32.mxu0 0.0
      %495 = vmatmul.mubr.f32.gmra.mrb[0].mxu0 %v411
      %v496 = vpop.f32.mrb[0].mxu0
      %v497 = vadd.f32 %v399, %v496
      %v498 = vpop.f32.mrb[0].mxu0
      %v499 = vadd.f32 %v399, %v498
      %500 = vdwg.mxu0
      %501 = vmatprep.subr.mxu0 %v420
      %502 = vmatpush1.msra.mxu0 %v418
      %503 = vmatprep.subr.mxu0 0.0
      %504 = vmatpush1.msra.mxu0 0.0
      %505 = vmatprep.subr.mxu0 0.0
      %506 = vmatpush1.msra.mxu0 0.0
      %507 = vmatprep.subr.mxu0 0.0
      %508 = vmatpush1.msra.mxu0 0.0
      %509 = vmatprep.subr.mxu0 0.0
      %510 = vmatpush1.msra.mxu0 0.0
      %511 = vmatprep.subr.mxu0 0.0
      %512 = vmatpush1.msra.mxu0 0.0
      %513 = vmatprep.subr.mxu0 0.0
      %514 = vmatpush1.msra.mxu0 0.0
      %515 = vmatprep.subr.mxu0 0.0
      %516 = vmatpush1.msra.mxu0 0.0
      %517 = vmatprep.subr.mxu0 0.0
      %518 = vmatpush1.msra.mxu0 0.0
      %519 = vmatprep.subr.mxu0 0.0
      %520 = vmatpush1.msra.mxu0 0.0
      %521 = vmatprep.subr.mxu0 0.0
      %522 = vmatpush1.msra.mxu0 0.0
      %523 = vmatprep.subr.mxu0 0.0
      %524 = vmatpush1.msra.mxu0 0.0
      %525 = vmatprep.subr.mxu0 0.0
      %526 = vmatpush1.msra.mxu0 0.0
      %527 = vmatprep.subr.mxu0 0.0
      %528 = vmatpush1.msra.mxu0 0.0
      %529 = vmatprep.subr.mxu0 0.0
      %530 = vmatpush1.msra.mxu0 0.0
      %531 = vmatprep.subr.mxu0 0.0
      %532 = vmatpush1.msra.mxu0 0.0
      %533 = vmatprep.subr.mxu0 0.0
      %534 = vmatpush1.msra.mxu0 0.0
      %535 = vmatprep.subr.mxu0 0.0
      %536 = vmatpush1.msra.mxu0 0.0
      %537 = vmatprep.subr.mxu0 0.0
      %538 = vmatpush1.msra.mxu0 0.0
      %539 = vmatprep.subr.mxu0 0.0
      %540 = vmatpush1.msra.mxu0 0.0
      %541 = vmatprep.subr.mxu0 0.0
      %542 = vmatpush1.msra.mxu0 0.0
      %543 = vmatprep.subr.mxu0 0.0
      %544 = vmatpush1.msra.mxu0 0.0
      %545 = vmatprep.subr.mxu0 0.0
      %546 = vmatpush1.msra.mxu0 0.0
      %547 = vmatprep.subr.mxu0 0.0
      %548 = vmatpush1.msra.mxu0 0.0
      %549 = vmatprep.subr.mxu0 0.0
      %550 = vmatpush1.msra.mxu0 0.0
      %551 = vmatprep.subr.mxu0 0.0
      %552 = vmatpush1.msra.mxu0 0.0
      %553 = vmatprep.subr.mxu0 0.0
      %554 = vmatpush1.msra.mxu0 0.0
      %555 = vmatprep.subr.mxu0 0.0
      %556 = vmatpush1.msra.mxu0 0.0
      %557 = vmatprep.subr.mxu0 0.0
      %558 = vmatpush1.msra.mxu0 0.0
      %559 = vmatprep.subr.mxu0 0.0
      %560 = vmatpush1.msra.mxu0 0.0
      %561 = vmatprep.subr.mxu0 0.0
      %562 = vmatpush1.msra.mxu0 0.0
      %563 = vmatprep.subr.mxu0 0.0
      %564 = vmatpush1.msra.mxu0 0.0
      %565 = vmatprep.mubr.f32.mxu0 0.0
      %566 = vmatmul.mubr.f32.gmra.mrb[0].mxu0 %v411
      %v567 = vpop.f32.mrb[0].mxu0
      %v568 = vadd.f32 %v399, %v567
      %v569 = vpop.f32.mrb[0].mxu0
      %v570 = vadd.f32 %v399, %v569
      %571 = vdwg.mxu0
      %572 = vmatprep.subr.mxu0 %v424
      %573 = vmatpush1.msra.mxu0 %v422
      %574 = vmatprep.subr.mxu0 0.0
      %575 = vmatpush1.msra.mxu0 0.0
      %576 = vmatprep.subr.mxu0 0.0
      %577 = vmatpush1.msra.mxu0 0.0
      %578 = vmatprep.subr.mxu0 0.0
      %579 = vmatpush1.msra.mxu0 0.0
      %580 = vmatprep.subr.mxu0 0.0
      %581 = vmatpush1.msra.mxu0 0.0
      %582 = vmatprep.subr.mxu0 0.0
      %583 = vmatpush1.msra.mxu0 0.0
      %584 = vmatprep.subr.mxu0 0.0
      %585 = vmatpush1.msra.mxu0 0.0
      %586 = vmatprep.subr.mxu0 0.0
      %587 = vmatpush1.msra.mxu0 0.0
      %588 = vmatprep.subr.mxu0 0.0
      %589 = vmatpush1.msra.mxu0 0.0
      %590 = vmatprep.subr.mxu0 0.0
      %591 = vmatpush1.msra.mxu0 0.0
      %592 = vmatprep.subr.mxu0 0.0
      %593 = vmatpush1.msra.mxu0 0.0
      %594 = vmatprep.subr.mxu0 0.0
      %595 = vmatpush1.msra.mxu0 0.0
      %596 = vmatprep.subr.mxu0 0.0
      %597 = vmatpush1.msra.mxu0 0.0
      %598 = vmatprep.subr.mxu0 0.0
      %599 = vmatpush1.msra.mxu0 0.0
      %600 = vmatprep.subr.mxu0 0.0
      %601 = vmatpush1.msra.mxu0 0.0
      %602 = vmatprep.subr.mxu0 0.0
      %603 = vmatpush1.msra.mxu0 0.0
      %604 = vmatprep.subr.mxu0 0.0
      %605 = vmatpush1.msra.mxu0 0.0
      %606 = vmatprep.subr.mxu0 0.0
      %607 = vmatpush1.msra.mxu0 0.0
      %608 = vmatprep.subr.mxu0 0.0
      %609 = vmatpush1.msra.mxu0 0.0
      %610 = vmatprep.subr.mxu0 0.0
      %611 = vmatpush1.msra.mxu0 0.0
      %612 = vmatprep.subr.mxu0 0.0
      %613 = vmatpush1.msra.mxu0 0.0
      %614 = vmatprep.subr.mxu0 0.0
      %615 = vmatpush1.msra.mxu0 0.0
      %616 = vmatprep.subr.mxu0 0.0
      %617 = vmatpush1.msra.mxu0 0.0
      %618 = vmatprep.subr.mxu0 0.0
      %619 = vmatpush1.msra.mxu0 0.0
      %620 = vmatprep.subr.mxu0 0.0
      %621 = vmatpush1.msra.mxu0 0.0
      %622 = vmatprep.subr.mxu0 0.0
      %623 = vmatpush1.msra.mxu0 0.0
      %624 = vmatprep.subr.mxu0 0.0
      %625 = vmatpush1.msra.mxu0 0.0
      %626 = vmatprep.subr.mxu0 0.0
      %627 = vmatpush1.msra.mxu0 0.0
      %628 = vmatprep.subr.mxu0 0.0
      %629 = vmatpush1.msra.mxu0 0.0
      %630 = vmatprep.subr.mxu0 0.0
      %631 = vmatpush1.msra.mxu0 0.0
      %632 = vmatprep.subr.mxu0 0.0
      %633 = vmatpush1.msra.mxu0 0.0
      %634 = vmatprep.subr.mxu0 0.0
      %635 = vmatpush1.msra.mxu0 0.0
      %636 = vmatprep.mubr.f32.mxu0 0.0
      %637 = vmatmul.mubr.f32.gmra.mrb[0].mxu0 %v411
      %v638 = vpop.f32.mrb[0].mxu0
      %v639 = vadd.f32 %v399, %v638
      %v640 = vpop.f32.mrb[0].mxu0
      %v641 = vadd.f32 %v399, %v640
      %642 = vdwg.mxu0
      %643 = vmatprep.subr.mxu0 %v428
      %644 = vmatpush1.msra.mxu0 %v426
      %645 = vmatprep.subr.mxu0 0.0
      %646 = vmatpush1.msra.mxu0 0.0
      %647 = vmatprep.subr.mxu0 0.0
      %648 = vmatpush1.msra.mxu0 0.0
      %649 = vmatprep.subr.mxu0 0.0
      %650 = vmatpush1.msra.mxu0 0.0
      %651 = vmatprep.subr.mxu0 0.0
      %652 = vmatpush1.msra.mxu0 0.0
      %653 = vmatprep.subr.mxu0 0.0
      %654 = vmatpush1.msra.mxu0 0.0
      %655 = vmatprep.subr.mxu0 0.0
      %656 = vmatpush1.msra.mxu0 0.0
      %657 = vmatprep.subr.mxu0 0.0
      %658 = vmatpush1.msra.mxu0 0.0
      %659 = vmatprep.subr.mxu0 0.0
      %660 = vmatpush1.msra.mxu0 0.0
      %661 = vmatprep.subr.mxu0 0.0
      %662 = vmatpush1.msra.mxu0 0.0
      %663 = vmatprep.subr.mxu0 0.0
      %664 = vmatpush1.msra.mxu0 0.0
      %665 = vmatprep.subr.mxu0 0.0
      %666 = vmatpush1.msra.mxu0 0.0
      %667 = vmatprep.subr.mxu0 0.0
      %668 = vmatpush1.msra.mxu0 0.0
      %669 = vmatprep.subr.mxu0 0.0
      %670 = vmatpush1.msra.mxu0 0.0
      %671 = vmatprep.subr.mxu0 0.0
      %672 = vmatpush1.msra.mxu0 0.0
      %673 = vmatprep.subr.mxu0 0.0
      %674 = vmatpush1.msra.mxu0 0.0
      %675 = vmatprep.subr.mxu0 0.0
      %676 = vmatpush1.msra.mxu0 0.0
      %677 = vmatprep.subr.mxu0 0.0
      %678 = vmatpush1.msra.mxu0 0.0
      %679 = vmatprep.subr.mxu0 0.0
      %680 = vmatpush1.msra.mxu0 0.0
      %681 = vmatprep.subr.mxu0 0.0
      %682 = vmatpush1.msra.mxu0 0.0
      %683 = vmatprep.subr.mxu0 0.0
      %684 = vmatpush1.msra.mxu0 0.0
      %685 = vmatprep.subr.mxu0 0.0
      %686 = vmatpush1.msra.mxu0 0.0
      %687 = vmatprep.subr.mxu0 0.0
      %688 = vmatpush1.msra.mxu0 0.0
      %689 = vmatprep.subr.mxu0 0.0
      %690 = vmatpush1.msra.mxu0 0.0
      %691 = vmatprep.subr.mxu0 0.0
      %692 = vmatpush1.msra.mxu0 0.0
      %693 = vmatprep.subr.mxu0 0.0
      %694 = vmatpush1.msra.mxu0 0.0
      %695 = vmatprep.subr.mxu0 0.0
      %696 = vmatpush1.msra.mxu0 0.0
      %697 = vmatprep.subr.mxu0 0.0
      %698 = vmatpush1.msra.mxu0 0.0
      %699 = vmatprep.subr.mxu0 0.0
      %700 = vmatpush1.msra.mxu0 0.0
      %701 = vmatprep.subr.mxu0 0.0
      %702 = vmatpush1.msra.mxu0 0.0
      %703 = vmatprep.subr.mxu0 0.0
      %704 = vmatpush1.msra.mxu0 0.0
      %705 = vmatprep.subr.mxu0 0.0
      %706 = vmatpush1.msra.mxu0 0.0
      %707 = vmatprep.mubr.f32.mxu0 0.0
      %708 = vmatmul.mubr.f32.gmra.mrb[0].mxu0 %v411
      %v709 = vpop.f32.mrb[0].mxu0
      %v710 = vadd.f32 %v399, %v709
      %v711 = vpop.f32.mrb[0].mxu0
      %v712 = vadd.f32 %v399, %v711
      %713 = vdwg.mxu0
      %v714 = vld [vmem:[%s358] sm:$0xff]
      %v715 = vld [vmem:[%s358 + $0x8] sm:$0xff]
      %v716 = vld [vmem:[%s358 + $0x10] sm:$0xff]
      %v717 = vld [vmem:[%s358 + $0x18] sm:$0xff]
      %v726 = vcombine.low %v497, %v499
      %v727 = vcombine.low %v568, %v570
      %v728 = vcombine.low %v639, %v641
      %v729 = vcombine.low %v710, %v712
      %v734 = vadd.f32 %v714, %v726
      %v735 = vadd.f32 %v715, %v727
      %v736 = vadd.f32 %v716, %v728
      %v737 = vadd.f32 %v717, %v729
      %v738 = vld [vmem:[%s2] sm:$0xff]
      %v739 = vld [vmem:[%s2 + $0x8] sm:$0xff]
      %v740 = vld [vmem:[%s3] sm:$0xff]
      %v741 = vld [vmem:[%s3 + $0x8] sm:$0xff]
      %743 = vset.pattern.permute.xlu0 0
      %744 = vperm.xlu0 %743, %v740
      %v745 = vpop.permute.xlu0 %744
      %748 = vset.pattern.permute.xlu0 0
      %749 = vperm.xlu0 %748, %v741
      %v750 = vpop.permute.xlu0 %749
      %v756 = vcombine.high %v734, %v734
      %v757 = vcombine.high %v735, %v735
      %v758 = vcombine.high %v736, %v736
      %v759 = vcombine.high %v737, %v737
      %v761 = vsel %vm409, %v738, 0
      %v764 = vsel %vm409, %v739, 0
      %v766 = vsel %vm413, %v734, 0
      %v768 = vsel %vm413, %v756, 0
      %v770 = vsel %vm413, %v735, 0
      %v772 = vsel %vm413, %v757, 0
      %v774 = vsel %vm413, %v736, 0
      %v776 = vsel %vm413, %v758, 0
      %v778 = vsel %vm413, %v737, 0
      %v780 = vsel %vm413, %v759, 0
      %782 = vmatprep.subr.mxu0 %v768
      %783 = vmatpush1.msra.mxu0 %v766
      %784 = vmatprep.subr.mxu0 0.0
      %785 = vmatpush1.msra.mxu0 0.0
      %786 = vmatprep.subr.mxu0 0.0
      %787 = vmatpush1.msra.mxu0 0.0
      %788 = vmatprep.subr.mxu0 0.0
      %789 = vmatpush1.msra.mxu0 0.0
      %790 = vmatprep.subr.mxu0 0.0
      %791 = vmatpush1.msra.mxu0 0.0
      %792 = vmatprep.subr.mxu0 0.0
      %793 = vmatpush1.msra.mxu0 0.0
      %794 = vmatprep.subr.mxu0 0.0
      %795 = vmatpush1.msra.mxu0 0.0
      %796 = vmatprep.subr.mxu0 0.0
      %797 = vmatpush1.msra.mxu0 0.0
      %798 = vmatprep.subr.mxu0 0.0
      %799 = vmatpush1.msra.mxu0 0.0
      %800 = vmatprep.subr.mxu0 0.0
      %801 = vmatpush1.msra.mxu0 0.0
      %802 = vmatprep.subr.mxu0 0.0
      %803 = vmatpush1.msra.mxu0 0.0
      %804 = vmatprep.subr.mxu0 0.0
      %805 = vmatpush1.msra.mxu0 0.0
      %806 = vmatprep.subr.mxu0 0.0
      %807 = vmatpush1.msra.mxu0 0.0
      %808 = vmatprep.subr.mxu0 0.0
      %809 = vmatpush1.msra.mxu0 0.0
      %810 = vmatprep.subr.mxu0 0.0
      %811 = vmatpush1.msra.mxu0 0.0
      %812 = vmatprep.subr.mxu0 0.0
      %813 = vmatpush1.msra.mxu0 0.0
      %814 = vmatprep.subr.mxu0 0.0
      %815 = vmatpush1.msra.mxu0 0.0
      %816 = vmatprep.subr.mxu0 0.0
      %817 = vmatpush1.msra.mxu0 0.0
      %818 = vmatprep.subr.mxu0 0.0
      %819 = vmatpush1.msra.mxu0 0.0
      %820 = vmatprep.subr.mxu0 0.0
      %821 = vmatpush1.msra.mxu0 0.0
      %822 = vmatprep.subr.mxu0 0.0
      %823 = vmatpush1.msra.mxu0 0.0
      %824 = vmatprep.subr.mxu0 0.0
      %825 = vmatpush1.msra.mxu0 0.0
      %826 = vmatprep.subr.mxu0 0.0
      %827 = vmatpush1.msra.mxu0 0.0
      %828 = vmatprep.subr.mxu0 0.0
      %829 = vmatpush1.msra.mxu0 0.0
      %830 = vmatprep.subr.mxu0 0.0
      %831 = vmatpush1.msra.mxu0 0.0
      %832 = vmatprep.subr.mxu0 0.0
      %833 = vmatpush1.msra.mxu0 0.0
      %834 = vmatprep.subr.mxu0 0.0
      %835 = vmatpush1.msra.mxu0 0.0
      %836 = vmatprep.subr.mxu0 0.0
      %837 = vmatpush1.msra.mxu0 0.0
      %838 = vmatprep.subr.mxu0 0.0
      %839 = vmatpush1.msra.mxu0 0.0
      %840 = vmatprep.subr.mxu0 0.0
      %841 = vmatpush1.msra.mxu0 0.0
      %842 = vmatprep.subr.mxu0 0.0
      %843 = vmatpush1.msra.mxu0 0.0
      %844 = vmatprep.subr.mxu0 0.0
      %845 = vmatpush1.msra.mxu0 0.0
      %846 = vmatprep.mubr.f32.mxu0 0.0
      %847 = vmatmul.mubr.f32.gmra.mrb[0].mxu0 %v761
      %v848 = vpop.f32.mrb[0].mxu0
      %v849 = vadd.f32 %v745, %v848
      %v850 = vpop.f32.mrb[0].mxu0
      %v851 = vadd.f32 %v745, %v850
      %852 = vmatprep.mubr.f32.mxu0 0.0
      %853 = vmatmul.mubr.f32.gmra.mrb[0].mxu0 %v764
      %v854 = vpop.f32.mrb[0].mxu0
      %v855 = vadd.f32 %v750, %v854
      %v856 = vpop.f32.mrb[0].mxu0
      %v857 = vadd.f32 %v750, %v856
      %858 = vdwg.mxu0
      %859 = vmatprep.subr.mxu0 %v772
      %860 = vmatpush1.msra.mxu0 %v770
      %861 = vmatprep.subr.mxu0 0.0
      %862 = vmatpush1.msra.mxu0 0.0
      %863 = vmatprep.subr.mxu0 0.0
      %864 = vmatpush1.msra.mxu0 0.0
      %865 = vmatprep.subr.mxu0 0.0
      %866 = vmatpush1.msra.mxu0 0.0
      %867 = vmatprep.subr.mxu0 0.0
      %868 = vmatpush1.msra.mxu0 0.0
      %869 = vmatprep.subr.mxu0 0.0
      %870 = vmatpush1.msra.mxu0 0.0
      %871 = vmatprep.subr.mxu0 0.0
      %872 = vmatpush1.msra.mxu0 0.0
      %873 = vmatprep.subr.mxu0 0.0
      %874 = vmatpush1.msra.mxu0 0.0
      %875 = vmatprep.subr.mxu0 0.0
      %876 = vmatpush1.msra.mxu0 0.0
      %877 = vmatprep.subr.mxu0 0.0
      %878 = vmatpush1.msra.mxu0 0.0
      %879 = vmatprep.subr.mxu0 0.0
      %880 = vmatpush1.msra.mxu0 0.0
      %881 = vmatprep.subr.mxu0 0.0
      %882 = vmatpush1.msra.mxu0 0.0
      %883 = vmatprep.subr.mxu0 0.0
      %884 = vmatpush1.msra.mxu0 0.0
      %885 = vmatprep.subr.mxu0 0.0
      %886 = vmatpush1.msra.mxu0 0.0
      %887 = vmatprep.subr.mxu0 0.0
      %888 = vmatpush1.msra.mxu0 0.0
      %889 = vmatprep.subr.mxu0 0.0
      %890 = vmatpush1.msra.mxu0 0.0
      %891 = vmatprep.subr.mxu0 0.0
      %892 = vmatpush1.msra.mxu0 0.0
      %893 = vmatprep.subr.mxu0 0.0
      %894 = vmatpush1.msra.mxu0 0.0
      %895 = vmatprep.subr.mxu0 0.0
      %896 = vmatpush1.msra.mxu0 0.0
      %897 = vmatprep.subr.mxu0 0.0
      %898 = vmatpush1.msra.mxu0 0.0
      %899 = vmatprep.subr.mxu0 0.0
      %900 = vmatpush1.msra.mxu0 0.0
      %901 = vmatprep.subr.mxu0 0.0
      %902 = vmatpush1.msra.mxu0 0.0
      %903 = vmatprep.subr.mxu0 0.0
      %904 = vmatpush1.msra.mxu0 0.0
      %905 = vmatprep.subr.mxu0 0.0
      %906 = vmatpush1.msra.mxu0 0.0
      %907 = vmatprep.subr.mxu0 0.0
      %908 = vmatpush1.msra.mxu0 0.0
      %909 = vmatprep.subr.mxu0 0.0
      %910 = vmatpush1.msra.mxu0 0.0
      %911 = vmatprep.subr.mxu0 0.0
      %912 = vmatpush1.msra.mxu0 0.0
      %913 = vmatprep.subr.mxu0 0.0
      %914 = vmatpush1.msra.mxu0 0.0
      %915 = vmatprep.subr.mxu0 0.0
      %916 = vmatpush1.msra.mxu0 0.0
      %917 = vmatprep.subr.mxu0 0.0
      %918 = vmatpush1.msra.mxu0 0.0
      %919 = vmatprep.subr.mxu0 0.0
      %920 = vmatpush1.msra.mxu0 0.0
      %921 = vmatprep.subr.mxu0 0.0
      %922 = vmatpush1.msra.mxu0 0.0
      %923 = vmatprep.mubr.f32.mxu0 0.0
      %924 = vmatmul.mubr.f32.gmra.mrb[0].mxu0 %v761
      %v925 = vpop.f32.mrb[0].mxu0
      %v926 = vadd.f32 %v745, %v925
      %v927 = vpop.f32.mrb[0].mxu0
      %v928 = vadd.f32 %v745, %v927
      %929 = vmatprep.mubr.f32.mxu0 0.0
      %930 = vmatmul.mubr.f32.gmra.mrb[0].mxu0 %v764
      %v931 = vpop.f32.mrb[0].mxu0
      %v932 = vadd.f32 %v750, %v931
      %v933 = vpop.f32.mrb[0].mxu0
      %v934 = vadd.f32 %v750, %v933
      %935 = vdwg.mxu0
      %936 = vmatprep.subr.mxu0 %v776
      %937 = vmatpush1.msra.mxu0 %v774
      %938 = vmatprep.subr.mxu0 0.0
      %939 = vmatpush1.msra.mxu0 0.0
      %940 = vmatprep.subr.mxu0 0.0
      %941 = vmatpush1.msra.mxu0 0.0
      %942 = vmatprep.subr.mxu0 0.0
      %943 = vmatpush1.msra.mxu0 0.0
      %944 = vmatprep.subr.mxu0 0.0
      %945 = vmatpush1.msra.mxu0 0.0
      %946 = vmatprep.subr.mxu0 0.0
      %947 = vmatpush1.msra.mxu0 0.0
      %948 = vmatprep.subr.mxu0 0.0
      %949 = vmatpush1.msra.mxu0 0.0
      %950 = vmatprep.subr.mxu0 0.0
      %951 = vmatpush1.msra.mxu0 0.0
      %952 = vmatprep.subr.mxu0 0.0
      %953 = vmatpush1.msra.mxu0 0.0
      %954 = vmatprep.subr.mxu0 0.0
      %955 = vmatpush1.msra.mxu0 0.0
      %956 = vmatprep.subr.mxu0 0.0
      %957 = vmatpush1.msra.mxu0 0.0
      %958 = vmatprep.subr.mxu0 0.0
      %959 = vmatpush1.msra.mxu0 0.0
      %960 = vmatprep.subr.mxu0 0.0
      %961 = vmatpush1.msra.mxu0 0.0
      %962 = vmatprep.subr.mxu0 0.0
      %963 = vmatpush1.msra.mxu0 0.0
      %964 = vmatprep.subr.mxu0 0.0
      %965 = vmatpush1.msra.mxu0 0.0
      %966 = vmatprep.subr.mxu0 0.0
      %967 = vmatpush1.msra.mxu0 0.0
      %968 = vmatprep.subr.mxu0 0.0
      %969 = vmatpush1.msra.mxu0 0.0
      %970 = vmatprep.subr.mxu0 0.0
      %971 = vmatpush1.msra.mxu0 0.0
      %972 = vmatprep.subr.mxu0 0.0
      %973 = vmatpush1.msra.mxu0 0.0
      %974 = vmatprep.subr.mxu0 0.0
      %975 = vmatpush1.msra.mxu0 0.0
      %976 = vmatprep.subr.mxu0 0.0
      %977 = vmatpush1.msra.mxu0 0.0
      %978 = vmatprep.subr.mxu0 0.0
      %979 = vmatpush1.msra.mxu0 0.0
      %980 = vmatprep.subr.mxu0 0.0
      %981 = vmatpush1.msra.mxu0 0.0
      %982 = vmatprep.subr.mxu0 0.0
      %983 = vmatpush1.msra.mxu0 0.0
      %984 = vmatprep.subr.mxu0 0.0
      %985 = vmatpush1.msra.mxu0 0.0
      %986 = vmatprep.subr.mxu0 0.0
      %987 = vmatpush1.msra.mxu0 0.0
      %988 = vmatprep.subr.mxu0 0.0
      %989 = vmatpush1.msra.mxu0 0.0
      %990 = vmatprep.subr.mxu0 0.0
      %991 = vmatpush1.msra.mxu0 0.0
      %992 = vmatprep.subr.mxu0 0.0
      %993 = vmatpush1.msra.mxu0 0.0
      %994 = vmatprep.subr.mxu0 0.0
      %995 = vmatpush1.msra.mxu0 0.0
      %996 = vmatprep.subr.mxu0 0.0
      %997 = vmatpush1.msra.mxu0 0.0
      %998 = vmatprep.subr.mxu0 0.0
      %999 = vmatpush1.msra.mxu0 0.0
      %1000 = vmatprep.mubr.f32.mxu0 0.0
      %1001 = vmatmul.mubr.f32.gmra.mrb[0].mxu0 %v761
      %v1002 = vpop.f32.mrb[0].mxu0
      %v1003 = vadd.f32 %v745, %v1002
      %v1004 = vpop.f32.mrb[0].mxu0
      %v1005 = vadd.f32 %v745, %v1004
      %1006 = vmatprep.mubr.f32.mxu0 0.0
      %1007 = vmatmul.mubr.f32.gmra.mrb[0].mxu0 %v764
      %v1008 = vpop.f32.mrb[0].mxu0
      %v1009 = vadd.f32 %v750, %v1008
      %v1010 = vpop.f32.mrb[0].mxu0
      %v1011 = vadd.f32 %v750, %v1010
      %1012 = vdwg.mxu0
      %1013 = vmatprep.subr.mxu0 %v780
      %1014 = vmatpush1.msra.mxu0 %v778
      %1015 = vmatprep.subr.mxu0 0.0
      %1016 = vmatpush1.msra.mxu0 0.0
      %1017 = vmatprep.subr.mxu0 0.0
      %1018 = vmatpush1.msra.mxu0 0.0
      %1019 = vmatprep.subr.mxu0 0.0
      %1020 = vmatpush1.msra.mxu0 0.0
      %1021 = vmatprep.subr.mxu0 0.0
      %1022 = vmatpush1.msra.mxu0 0.0
      %1023 = vmatprep.subr.mxu0 0.0
      %1024 = vmatpush1.msra.mxu0 0.0
      %1025 = vmatprep.subr.mxu0 0.0
      %1026 = vmatpush1.msra.mxu0 0.0
      %1027 = vmatprep.subr.mxu0 0.0
      %1028 = vmatpush1.msra.mxu0 0.0
      %1029 = vmatprep.subr.mxu0 0.0
      %1030 = vmatpush1.msra.mxu0 0.0
      %1031 = vmatprep.subr.mxu0 0.0
      %1032 = vmatpush1.msra.mxu0 0.0
      %1033 = vmatprep.subr.mxu0 0.0
      %1034 = vmatpush1.msra.mxu0 0.0
      %1035 = vmatprep.subr.mxu0 0.0
      %1036 = vmatpush1.msra.mxu0 0.0
      %1037 = vmatprep.subr.mxu0 0.0
      %1038 = vmatpush1.msra.mxu0 0.0
      %1039 = vmatprep.subr.mxu0 0.0
      %1040 = vmatpush1.msra.mxu0 0.0
      %1041 = vmatprep.subr.mxu0 0.0
      %1042 = vmatpush1.msra.mxu0 0.0
      %1043 = vmatprep.subr.mxu0 0.0
      %1044 = vmatpush1.msra.mxu0 0.0
      %1045 = vmatprep.subr.mxu0 0.0
      %1046 = vmatpush1.msra.mxu0 0.0
      %1047 = vmatprep.subr.mxu0 0.0
      %1048 = vmatpush1.msra.mxu0 0.0
      %1049 = vmatprep.subr.mxu0 0.0
      %1050 = vmatpush1.msra.mxu0 0.0
      %1051 = vmatprep.subr.mxu0 0.0
      %1052 = vmatpush1.msra.mxu0 0.0
      %1053 = vmatprep.subr.mxu0 0.0
      %1054 = vmatpush1.msra.mxu0 0.0
      %1055 = vmatprep.subr.mxu0 0.0
      %1056 = vmatpush1.msra.mxu0 0.0
      %1057 = vmatprep.subr.mxu0 0.0
      %1058 = vmatpush1.msra.mxu0 0.0
      %1059 = vmatprep.subr.mxu0 0.0
      %1060 = vmatpush1.msra.mxu0 0.0
      %1061 = vmatprep.subr.mxu0 0.0
      %1062 = vmatpush1.msra.mxu0 0.0
      %1063 = vmatprep.subr.mxu0 0.0
      %1064 = vmatpush1.msra.mxu0 0.0
      %1065 = vmatprep.subr.mxu0 0.0
      %1066 = vmatpush1.msra.mxu0 0.0
      %1067 = vmatprep.subr.mxu0 0.0
      %1068 = vmatpush1.msra.mxu0 0.0
      %1069 = vmatprep.subr.mxu0 0.0
      %1070 = vmatpush1.msra.mxu0 0.0
      %1071 = vmatprep.subr.mxu0 0.0
      %1072 = vmatpush1.msra.mxu0 0.0
      %1073 = vmatprep.subr.mxu0 0.0
      %1074 = vmatpush1.msra.mxu0 0.0
      %1075 = vmatprep.subr.mxu0 0.0
      %1076 = vmatpush1.msra.mxu0 0.0
      %1077 = vmatprep.mubr.f32.mxu0 0.0
      %1078 = vmatmul.mubr.f32.gmra.mrb[0].mxu0 %v761
      %v1079 = vpop.f32.mrb[0].mxu0
      %v1080 = vadd.f32 %v745, %v1079
      %v1081 = vpop.f32.mrb[0].mxu0
      %v1082 = vadd.f32 %v745, %v1081
      %1083 = vmatprep.mubr.f32.mxu0 0.0
      %1084 = vmatmul.mubr.f32.gmra.mrb[0].mxu0 %v764
      %v1085 = vpop.f32.mrb[0].mxu0
      %v1086 = vadd.f32 %v750, %v1085
      %v1087 = vpop.f32.mrb[0].mxu0
      %v1088 = vadd.f32 %v750, %v1087
      %1089 = vdwg.mxu0
      %v1090 = vsub.f32 0.0, %v849
      %v1091 = vsub.f32 0.0, %v851
      %v1092 = vsub.f32 0.0, %v926
      %v1093 = vsub.f32 0.0, %v928
      %v1094 = vsub.f32 0.0, %v1003
      %v1095 = vsub.f32 0.0, %v1005
      %v1096 = vsub.f32 0.0, %v1080
      %v1097 = vsub.f32 0.0, %v1082
      %v1098 = vsub.f32 0.0, %v855
      %v1099 = vsub.f32 0.0, %v857
      %v1100 = vsub.f32 0.0, %v932
      %v1101 = vsub.f32 0.0, %v934
      %v1102 = vsub.f32 0.0, %v1009
      %v1103 = vsub.f32 0.0, %v1011
      %v1104 = vsub.f32 0.0, %v1086
      %v1105 = vsub.f32 0.0, %v1088
      %v1106 = vmul.f32 %v1090, 1.442695
      %v1107 = vpow.pop %v1106
      %v1108 = vmul.f32 %v1091, 1.442695
      %v1109 = vpow.pop %v1108
      %v1110 = vmul.f32 %v1092, 1.442695
      %v1111 = vpow.pop %v1110
      %v1112 = vmul.f32 %v1093, 1.442695
      %v1113 = vpow.pop %v1112
      %v1114 = vmul.f32 %v1094, 1.442695
      %v1115 = vpow.pop %v1114
      %v1116 = vmul.f32 %v1095, 1.442695
      %v1117 = vpow.pop %v1116
      %v1118 = vmul.f32 %v1096, 1.442695
      %v1119 = vpow.pop %v1118
      %v1120 = vmul.f32 %v1097, 1.442695
      %v1121 = vpow.pop %v1120
      %v1122 = vmul.f32 %v1098, 1.442695
      %v1123 = vpow.pop %v1122
      %v1124 = vmul.f32 %v1099, 1.442695
      %v1125 = vpow.pop %v1124
      %v1126 = vmul.f32 %v1100, 1.442695
      %v1127 = vpow.pop %v1126
      %v1128 = vmul.f32 %v1101, 1.442695
      %v1129 = vpow.pop %v1128
      %v1130 = vmul.f32 %v1102, 1.442695
      %v1131 = vpow.pop %v1130
      %v1132 = vmul.f32 %v1103, 1.442695
      %v1133 = vpow.pop %v1132
      %v1134 = vmul.f32 %v1104, 1.442695
      %v1135 = vpow.pop %v1134
      %v1136 = vmul.f32 %v1105, 1.442695
      %v1137 = vpow.pop %v1136
      %v1138 = vadd.f32 %v1107, 1.0
      %v1139 = vadd.f32 %v1109, 1.0
      %v1140 = vadd.f32 %v1111, 1.0
      %v1141 = vadd.f32 %v1113, 1.0
      %v1142 = vadd.f32 %v1115, 1.0
      %v1143 = vadd.f32 %v1117, 1.0
      %v1144 = vadd.f32 %v1119, 1.0
      %v1145 = vadd.f32 %v1121, 1.0
      %v1146 = vadd.f32 %v1123, 1.0
      %v1147 = vadd.f32 %v1125, 1.0
      %v1148 = vadd.f32 %v1127, 1.0
      %v1149 = vadd.f32 %v1129, 1.0
      %v1150 = vadd.f32 %v1131, 1.0
      %v1151 = vadd.f32 %v1133, 1.0
      %v1152 = vadd.f32 %v1135, 1.0
      %v1153 = vadd.f32 %v1137, 1.0
      %v1154 = vrcp.pop %v1138
      %v1155 = vmul.f32 1.0, %v1154
      %v1156 = vrcp.pop %v1139
      %v1157 = vmul.f32 1.0, %v1156
      %v1158 = vrcp.pop %v1140
      %v1159 = vmul.f32 1.0, %v1158
      %v1160 = vrcp.pop %v1141
      %v1161 = vmul.f32 1.0, %v1160
      %v1162 = vrcp.pop %v1142
      %v1163 = vmul.f32 1.0, %v1162
      %v1164 = vrcp.pop %v1143
      %v1165 = vmul.f32 1.0, %v1164
      %v1166 = vrcp.pop %v1144
      %v1167 = vmul.f32 1.0, %v1166
      %v1168 = vrcp.pop %v1145
      %v1169 = vmul.f32 1.0, %v1168
      %v1170 = vrcp.pop %v1146
      %v1171 = vmul.f32 1.0, %v1170
      %v1172 = vrcp.pop %v1147
      %v1173 = vmul.f32 1.0, %v1172
      %v1174 = vrcp.pop %v1148
      %v1175 = vmul.f32 1.0, %v1174
      %v1176 = vrcp.pop %v1149
      %v1177 = vmul.f32 1.0, %v1176
      %v1178 = vrcp.pop %v1150
      %v1179 = vmul.f32 1.0, %v1178
      %v1180 = vrcp.pop %v1151
      %v1181 = vmul.f32 1.0, %v1180
      %v1182 = vrcp.pop %v1152
      %v1183 = vmul.f32 1.0, %v1182
      %v1184 = vrcp.pop %v1153
      %v1185 = vmul.f32 1.0, %v1184
      %v1186 = vld [vmem:[%s378] sm:$0xff]
      %v1187 = vld [vmem:[%s378 + $0x8] sm:$0xff]
      %v1188 = vld [vmem:[%s378 + $0x10] sm:$0xff]
      %v1189 = vld [vmem:[%s378 + $0x18] sm:$0xff]
      %v1190 = vld [vmem:[%s378 + $0x20] sm:$0xff]
      %v1191 = vld [vmem:[%s378 + $0x28] sm:$0xff]
      %v1192 = vld [vmem:[%s378 + $0x30] sm:$0xff]
      %v1193 = vld [vmem:[%s378 + $0x38] sm:$0xff]
      %v1194 = vld [vmem:[%s378 + $0x40] sm:$0xff]
      %v1195 = vld [vmem:[%s378 + $0x48] sm:$0xff]
      %v1196 = vld [vmem:[%s378 + $0x50] sm:$0xff]
      %v1197 = vld [vmem:[%s378 + $0x58] sm:$0xff]
      %v1198 = vld [vmem:[%s378 + $0x60] sm:$0xff]
      %v1199 = vld [vmem:[%s378 + $0x68] sm:$0xff]
      %v1200 = vld [vmem:[%s378 + $0x70] sm:$0xff]
      %v1201 = vld [vmem:[%s378 + $0x78] sm:$0xff]
      %v1202 = vmul.f32 %v1186, %v1155
      %v1203 = vmul.f32 %v1187, %v1157
      %v1204 = vmul.f32 %v1188, %v1159
      %v1205 = vmul.f32 %v1189, %v1161
      %v1206 = vmul.f32 %v1190, %v1163
      %v1207 = vmul.f32 %v1191, %v1165
      %v1208 = vmul.f32 %v1192, %v1167
      %v1209 = vmul.f32 %v1193, %v1169
      %v1210 = vmul.f32 %v1194, %v1171
      %v1211 = vmul.f32 %v1195, %v1173
      %v1212 = vmul.f32 %v1196, %v1175
      %v1213 = vmul.f32 %v1197, %v1177
      %v1214 = vmul.f32 %v1198, %v1179
      %v1215 = vmul.f32 %v1199, %v1181
      %v1216 = vmul.f32 %v1200, %v1183
      %v1217 = vmul.f32 %v1201, %v1185
      %1218 = vst [vmem:[%s388] sm:$0xff] %v1202
      %1219 = vst [vmem:[%s388 + $0x8] sm:$0xff] %v1203
      %1220 = vst [vmem:[%s388 + $0x10] sm:$0xff] %v1204
      %1221 = vst [vmem:[%s388 + $0x18] sm:$0xff] %v1205
      %1222 = vst [vmem:[%s388 + $0x20] sm:$0xff] %v1206
      %1223 = vst [vmem:[%s388 + $0x28] sm:$0xff] %v1207
      %1224 = vst [vmem:[%s388 + $0x30] sm:$0xff] %v1208
      %1225 = vst [vmem:[%s388 + $0x38] sm:$0xff] %v1209
      %1226 = vst [vmem:[%s388 + $0x40] sm:$0xff] %v1210
      %1227 = vst [vmem:[%s388 + $0x48] sm:$0xff] %v1211
      %1228 = vst [vmem:[%s388 + $0x50] sm:$0xff] %v1212
      %1229 = vst [vmem:[%s388 + $0x58] sm:$0xff] %v1213
      %1230 = vst [vmem:[%s388 + $0x60] sm:$0xff] %v1214
      %1231 = vst [vmem:[%s388 + $0x68] sm:$0xff] %v1215
      %1232 = vst [vmem:[%s388 + $0x70] sm:$0xff] %v1216
      %1233 = vst [vmem:[%s388 + $0x78] sm:$0xff] %v1217
      %s1234 = smul.u32 8, %s23
      %p1235 = scmp.lt.s32.totalorder %s22, 1
      %s1236 = scalar_select %p1235, %s22, 1
      %p1237 = scmp.lt.s32.totalorder %s1234, 7
      %s1238 = scalar_select %p1237, %s1234, 7
      %s1239 = smul.addr %s1236, 16
      %s1240 = sadd.s32 %s1238, %s1239
      %s1241 = smul.addr %s1240, 8
      %s1242 = scalar_lea.vmem %s7, %s1241
      // Predicated region
      $region49: #{esa_forward.15} parent=47 // pred_check
        %p1243 = pneg %p218
      $region50: #{esa_forward.15} parent=47 // pred_check_branch
        %1245 = sbr.rel (%p1243) target = $region52
      $region51: #{esa_forward.15} parent=47 // pred_region
        %s1246 = smul.u32 8, %s23
      $region52: #{esa_forward.15} parent=47 // pred_fallthru
        _
    $region48: #{esa_forward.15} parent=5 // pred_fallthru
      _
    %p1247 = scmp.le.s32.totalorder 2, %s13
    // Predicated region
    $region53: #{esa_forward.15} parent=5 // pred_check
      %p1248 = pneg %p1247
    $region54: #{esa_forward.15} parent=5 // pred_check_branch
      %1250 = sbr.rel (%p1248) target = $region56
    $region55: #{esa_forward.15} parent=5 // pred_region
      %s1251 = ssub.s32 %s13, 2
      // Predicated region
      $region57: #{esa_forward.15} parent=55 // pred_check
        %p1252 = pneg %p224
      $region58: #{esa_forward.15} parent=55 // pred_check_branch
        %1254 = sbr.rel (%p1252) target = $region60
      $region59: #{esa_forward.15} parent=55 // pred_region
        %s1255 = smul.u32 8, %s25
        %p1256 = scmp.lt.s32.totalorder %s24, 1
        %s1257 = scalar_select %p1256, %s24, 1
        %p1258 = scmp.lt.s32.totalorder %s1255, 7
        %s1259 = scalar_select %p1258, %s1255, 7
        %s1260 = smul.addr %s1257, 16
        %s1261 = sadd.s32 %s1259, %s1260
        %s1262 = smul.addr %s1261, 8
        %s1263 = scalar_lea.vmem %s7, %s1262
      $region60: #{esa_forward.15} parent=55 // pred_fallthru
        _
    $region56: #{esa_forward.15} parent=5 // pred_fallthru
      _
  $region6: #{esa_forward.15} parent=0 // loop_footer
    %s17 = sadd.s32 1, %s13
  $region7: #{esa_forward.15} parent=0 // loop_footer_branch
    %12 = sbr.rel target = $region3
  $region8: #{esa_forward.15} parent=0 // loop_exit
    _

</llo_original>
